<compile_context>
chip_gen: v7x
topology: tpu7x:2x2x1
jax: 0.10.0
libtpu: 0.0.40
codegen_flags: <defaults>
</compile_context>

<pallas_src>
import functools
import math

import jax
import jax.numpy as jnp
from jax import lax
from jax.experimental import pallas as pl
from jax.experimental.pallas import tpu as pltpu


def _round_up(x, m):
    return (x + m - 1) // m * m


def _vmem_capacity_bytes():
    """Physical VMEM of this generation (v5e/v6e: 128 MiB, v7x: 64 MiB per TC)."""
    try:
        return int(pltpu.get_tpu_info().vmem_capacity_bytes)
    except Exception:
        return 64 * 1024 * 1024  # conservative default == v7x


# ----------------------------- resident-table path -----------------------------

def _embed_resident_kernel(ids_ref, lut_ref, out_ref, *, scale, chunk, d_model,
                           col_tile, unroll):
    """Table is VMEM-resident. Gather 8 rows, assemble them into a dense (8, w)
    block in registers (XLU shuffles), then ONE full-vreg scale + ONE dense store
    per 8 tokens -- no per-token sublane-masked vst against the output block."""
    base = pl.program_id(0) * chunk
    n_groups = chunk // 8

    def body(g, carry):
        r0 = pl.multiple_of(g * 8, 8)
        toks = [ids_ref[base + r0 + r] for r in range(8)]          # 8 SMEM scalars
        # Column tiling keeps live vregs ~9 * ceil(col_tile/128) regardless of d_model.
        for c0 in range(0, d_model, col_tile):
            w = min(col_tile, d_model - c0)
            rows = [lut_ref[pl.ds(toks[r], 1), pl.ds(c0, w)] for r in range(8)]
            blk = jnp.concatenate(rows, axis=0)                    # (8, w)
            out_ref[pl.ds(r0, 8), pl.ds(c0, w)] = (
                blk.astype(jnp.float32) * scale).astype(out_ref.dtype)
        return carry

    lax.fori_loop(0, n_groups, body, 0, unroll=unroll)


# ------------------------------ HBM-gather path --------------------------------

def _embed_hbm_gather_kernel(ids_ref, lut_hbm, out_ref, rows_vmem, sems,
                             *, scale, chunk, n_inflight, n_chunks):
    """Table stays in HBM. Per-row DMAs with n_inflight copies in flight, a
    double-banked row buffer, and a cross-chunk prefetch so the pipe never drains."""
    c = pl.program_id(0)
    base = c * chunk
    bank = c % 2
    bank_off = pl.multiple_of(bank * chunk, 8)          # rows_vmem offset for this chunk
    sem_off = bank * n_inflight
    obank_off = pl.multiple_of((1 - bank) * chunk, 8)   # other bank (next chunk)
    osem_off = (1 - bank) * n_inflight

    def start_row(tok_idx, slot, row_off, s_off):
        tok = ids_ref[tok_idx]
        pltpu.make_async_copy(
            lut_hbm.at[pl.ds(tok, 1), :],
            rows_vmem.at[pl.ds(row_off + slot, 1), :],
            sems.at[s_off + (slot & (n_inflight - 1))],
        ).start()

    def wait_row(slot, row_off, s_off):
        # Dummy src row 0: wait() only consumes the semaphore byte count and every
        # row copy has identical size.
        pltpu.make_async_copy(
            lut_hbm.at[pl.ds(0, 1), :],
            rows_vmem.at[pl.ds(row_off + slot, 1), :],
            sems.at[s_off + (slot & (n_inflight - 1))],
        ).wait()

    # Prime only on the very first grid step; every later chunk had its first
    # n_inflight rows prefetched by the previous step's tail (grid is sequential).
    @pl.when(c == 0)
    def _():
        for t in range(n_inflight):
            start_row(base + t, t, bank_off, sem_off)

    # Wait row t; immediately launch row t + n_inflight (wait-before-start keeps at
    # most one outstanding copy per semaphore).
    @pl.loop(0, chunk)
    def _(t):
        wait_row(t, bank_off, sem_off)

        @pl.when(t + n_inflight < chunk)
        def _():
            start_row(base + t + n_inflight, t + n_inflight, bank_off, sem_off)

    # One dense (chunk, d_model) scale + store.
    out_ref[...] = (rows_vmem[pl.ds(bank_off, chunk), :]
                    .astype(jnp.float32) * scale).astype(out_ref.dtype)

    # Cross-chunk prefetch into the other bank so the next grid step starts hot.
    @pl.when(c + 1 < n_chunks)
    def _():
        for t in range(n_inflight):
            start_row(base + chunk + t, t, obank_off, osem_off)


# ---------------------------------- wrapper -------------------------------------

def embeddings_forward(x_ids, lut, *, chunk=None, n_inflight=16,
                       out_dtype=jnp.float32, force_path=None):
    """Token-embedding lookup scaled by 1/sqrt(d_model).

    x_ids: int [B, S]; lut: [vocab, d_model] (f32 or bf16) -> out_dtype [B, S, d_model].
    force_path: None (auto-select), "resident", or "hbm_gather".
    out_dtype: keep f32 for exact PyTorch parity; bf16 halves output writeback.
    """
    B, S = x_ids.shape
    vocab, d_model = lut.shape
    n_tok = B * S
    out_itemsize = jnp.dtype(out_dtype).itemsize
    lut_itemsize = jnp.dtype(lut.dtype).itemsize

    # --- chunk selection: target a ~2 MiB dense output block per grid step and prefer
    # a chunk that divides n_tok exactly (no padded rows, no post-kernel slice copy).
    if chunk is None:
        target = max(64, min(1024, (2 * 1024 * 1024) // max(1, d_model * out_itemsize)))
    else:
        target = max(8, chunk)
    chunk = _round_up(min(target, _round_up(n_tok, 8)), 8)
    if n_tok % 8 == 0 and n_tok % chunk != 0:
        for cand in range(chunk, max(8, chunk // 2) - 1, -8):
            if n_tok % cand == 0:
                chunk = cand
                break

    n_pad = _round_up(n_tok, chunk)
    n_chunks = n_pad // chunk

    # Clamp ids so a bad token id cannot produce an out-of-bounds gather / DMA.
    # NOTE: ids are scalar-prefetched into SMEM (next_pow2(4*n_pad) bytes); fine for
    # typical batch*seq sizes.  TODO(synk): switch to a per-chunk SMEM-blocked ids
    # input for very long sequences (hundreds of K tokens).
    ids_flat = jnp.clip(x_ids.reshape(n_tok).astype(jnp.int32), 0, vocab - 1)
    if n_pad != n_tok:
        ids_flat = jnp.pad(ids_flat, (0, n_pad - n_tok))

    scale = 1.0 / math.sqrt(d_model)
    table_bytes = vocab * d_model * lut_itemsize
    out_block_bytes = chunk * d_model * out_itemsize

    cap = _vmem_capacity_bytes()
    # Resident budget: single-buffered table + double-buffered output blocks + margin,
    # inside ~85% of this generation's VMEM.
    resident_budget = int(0.85 * cap) - 2 * out_block_bytes - (2 << 20)

    if force_path is None:
        path = "resident" if table_bytes <= resident_budget else "hbm_gather"
    else:
        path = force_path

    cost = pl.CostEstimate(
        flops=n_tok * d_model,
        transcendentals=0,
        bytes_accessed=table_bytes + n_tok * 4 + n_tok * d_model * out_itemsize,
    )
    out_shape = jax.ShapeDtypeStruct((n_pad, d_model), out_dtype)

    def _run_resident(single_buffer_table):
        col_tile = 256
        vregs_per_group = 9 * ((min(d_model, col_tile) + 127) // 128)
        unroll = max(1, min(8, 48 // vregs_per_group))
        buffers = 1 if single_buffer_table else 2
        needed = buffers * table_bytes + 2 * out_block_bytes + (2 << 20)
        vmem_limit = int(min(cap - (4 << 20), max(32 << 20, needed)))

        spec_kwargs = {}
        if single_buffer_table:
            # Constant block index across the grid -> table DMA'd once; single-buffer
            # it so a big table doesn't also get a useless 2x double buffer.
            spec_kwargs["pipeline_mode"] = pl.Buffered(1)
        table_spec = pl.BlockSpec((vocab, d_model), lambda c, ids: (0, 0),
                                  **spec_kwargs)
        grid_spec = pltpu.PrefetchScalarGridSpec(
            num_scalar_prefetch=1,
            grid=(n_chunks,),
            in_specs=[table_spec],
            out_specs=pl.BlockSpec((chunk, d_model), lambda c, ids: (c, 0)),
        )
        return pl.pallas_call(
            functools.partial(_embed_resident_kernel, scale=scale, chunk=chunk,
                              d_model=d_model, col_tile=col_tile, unroll=unroll),
            out_shape=out_shape,
            grid_spec=grid_spec,
            compiler_params=pltpu.CompilerParams(
                # Disjoint output blocks per step -> megacore-shardable on v7x.
                # TODO(synk): on v7x, share one table copy across the two TensorCores
                # (VMEM_SHARED or per-core vocab split) instead of a private copy each.
                dimension_semantics=("parallel",),
                vmem_limit_bytes=vmem_limit,
            ),
            cost_estimate=cost,
        )(ids_flat, lut)

    def _run_hbm_gather():
        k = max(8, min(n_inflight, chunk))
        while k & (k - 1):          # power of two for cheap modular semaphore indexing
            k -= 1
        rows_bytes = 2 * chunk * d_model * lut_itemsize
        needed = rows_bytes + 2 * out_block_bytes + (2 << 20)
        vmem_limit = int(min(cap - (4 << 20), max(32 << 20, needed)))
        grid_spec = pltpu.PrefetchScalarGridSpec(
            num_scalar_prefetch=1,
            grid=(n_chunks,),
            in_specs=[pl.BlockSpec(memory_space=pl.ANY)],      # table stays in HBM
            out_specs=pl.BlockSpec((chunk, d_model), lambda c, ids: (c, 0)),
            scratch_shapes=[
                pltpu.VMEM((2 * chunk, d_model), lut.dtype),   # double-banked rows
                pltpu.SemaphoreType.DMA((2 * k,)),
            ],
        )
        return pl.pallas_call(
            functools.partial(_embed_hbm_gather_kernel, scale=scale, chunk=chunk,
                              n_inflight=k, n_chunks=n_chunks),
            out_shape=out_shape,
            grid_spec=grid_spec,
            compiler_params=pltpu.CompilerParams(
                # Sequential grid: chunk c's tail prefetches chunk c+1's head rows.
                dimension_semantics=("arbitrary",),
                vmem_limit_bytes=vmem_limit,
            ),
            cost_estimate=cost,
        )(ids_flat, lut)

    out = None
    if path == "resident":
        try:
            out = _run_resident(single_buffer_table=True)
        except Exception:
            # pipeline_mode=pl.Buffered(1) unsupported on this jax/libtpu: retry with
            # the default double-buffered table; if that also fails, use the HBM path.
            try:
                out = _run_resident(single_buffer_table=False)
            except Exception:
                out = None
    if out is None:
        out = _run_hbm_gather()

    if n_pad != n_tok:
        out = out[:n_tok]
    return out.reshape(B, S, d_model)


if __name__ == "__main__":
    # Small deterministic setup consistent with the module.
    vocab, d_model = 100, 32
    B, S = 2, 8

    key = jax.random.PRNGKey(0)
    k_lut, k_ids = jax.random.split(key)

    # nn.Embedding default init: N(0, 1)
    lut = jax.random.normal(k_lut, (vocab, d_model), dtype=jnp.float32)
    x = jax.random.randint(k_ids, (B, S), 0, vocab, dtype=jnp.int32)

    ref = jnp.take(lut, x, axis=0) / math.sqrt(d_model)

    # Auto-selected fast path: tiny table is VMEM-resident, dense 8-row stores.
    out = embeddings_forward(x, lut)
    out = jax.block_until_ready(out)
    assert out.shape == (B, S, d_model)
    assert jnp.allclose(out, ref, atol=1e-6, rtol=1e-6)

    # Large-table path (HBM table, pipelined per-row DMAs).
    out2 = embeddings_forward(x, lut, force_path="hbm_gather")
    out2 = jax.block_until_ready(out2)
    assert jnp.allclose(out2, ref, atol=1e-6, rtol=1e-6)

    # Multi-chunk check: exercises the resident multi-chunk grid and the HBM path's
    # cross-chunk DMA handoff (several grid steps).
    B2, S2 = 2, 96
    x2 = jax.random.randint(jax.random.PRNGKey(1), (B2, S2), 0, vocab, dtype=jnp.int32)
    ref2 = jnp.take(lut, x2, axis=0) / math.sqrt(d_model)
    out3 = jax.block_until_ready(embeddings_forward(x2, lut, chunk=64))
    out4 = jax.block_until_ready(
        embeddings_forward(x2, lut, chunk=64, force_path="hbm_gather"))
    assert jnp.allclose(out3, ref2, atol=1e-6, rtol=1e-6)
    assert jnp.allclose(out4, ref2, atol=1e-6, rtol=1e-6)

    print("KERNEL_OK")
</pallas_src>

<mosaic_0001>
module attributes {stable_mosaic.version = 11 : i64} {
  func.func @_embed_hbm_gather_kernel(%arg0: i32, %arg1: memref<16xi32, #tpu.memory_space<smem>>, %arg2: memref<100x32xf32, #tpu.memory_space<any>>, %arg3: memref<16x32xf32, #tpu.memory_space<vmem>>, %arg4: memref<32x32xf32, #tpu.memory_space<vmem>>, %arg5: memref<32x!tpu.dma_semaphore, #tpu.memory_space<semaphore_mem>>) attributes {dimension_semantics = [#tpu.dimension_semantics<arbitrary>], iteration_bounds = array<i64: 1>, scalar_prefetch = 1 : i64, scratch_operands = 2 : i64, tpu.core_type = #tpu.core_type<tc>, window_params = [{}, {transform_indices = @transform_1, window_bounds = array<i64: 16, 32>}]} {
    %c16_i32 = arith.constant 16 : i32
    %0 = arith.muli %arg0, %c16_i32 : i32
    %c2_i32 = arith.constant 2 : i32
    %c0_i32 = arith.constant 0 : i32
    %1 = arith.cmpi eq, %c2_i32, %c0_i32 : i32
    %c1_i32 = arith.constant 1 : i32
    %2 = arith.select %1, %c1_i32, %c2_i32 : i32
    %3 = arith.remsi %arg0, %2 : i32
    %c0_i32_0 = arith.constant 0 : i32
    %4 = arith.cmpi ne, %3, %c0_i32_0 : i32
    %c0_i32_1 = arith.constant 0 : i32
    %5 = arith.cmpi slt, %3, %c0_i32_1 : i32
    %c0_i32_2 = arith.constant 0 : i32
    %6 = arith.cmpi slt, %2, %c0_i32_2 : i32
    %7 = arith.xori %5, %6 : i1
    %8 = arith.andi %7, %4 : i1
    %9 = arith.addi %3, %2 : i32
    %10 = arith.select %8, %9, %3 : i32
    %c16_i32_3 = arith.constant 16 : i32
    %11 = arith.muli %10, %c16_i32_3 : i32
    %12 = tpu.assume_multiple %11, 8 : i32
    %c16_i32_4 = arith.constant 16 : i32
    %13 = arith.muli %10, %c16_i32_4 : i32
    %c1_i32_5 = arith.constant 1 : i32
    %14 = arith.subi %c1_i32_5, %10 : i32
    %c16_i32_6 = arith.constant 16 : i32
    %15 = arith.muli %14, %c16_i32_6 : i32
    %16 = tpu.assume_multiple %15, 8 : i32
    %c1_i32_7 = arith.constant 1 : i32
    %17 = arith.subi %c1_i32_7, %10 : i32
    %c16_i32_8 = arith.constant 16 : i32
    %18 = arith.muli %17, %c16_i32_8 : i32
    %c0_i32_9 = arith.constant 0 : i32
    %19 = arith.cmpi eq, %arg0, %c0_i32_9 : i32
    %20 = arith.extui %19 : i1 to i32
    %c0_i32_10 = arith.constant 0 : i32
    %21 = arith.cmpi ne, %20, %c0_i32_10 : i32
    scf.if %21 {
      %c0_i32_20 = arith.constant 0 : i32
      %32 = arith.addi %0, %c0_i32_20 : i32
      %33 = arith.index_cast %32 : i32 to index
      %34 = memref.load %arg1[%33] : memref<16xi32, #tpu.memory_space<smem>>
      %c0_i32_21 = arith.constant 0 : i32
      %35 = arith.addi %12, %c0_i32_21 : i32
      %c0_i32_22 = arith.constant 0 : i32
      %36 = arith.addi %13, %c0_i32_22 : i32
      %c0_i32_23 = arith.constant 0 : i32
      %37 = tpu.memref_slice %arg2[%34, %c0_i32_23] : memref<100x32xf32, #tpu.memory_space<any>> -> memref<1x32xf32, #tpu.memory_space<any>>
      %c0_i32_24 = arith.constant 0 : i32
      %38 = tpu.memref_slice %arg4[%35, %c0_i32_24] : memref<32x32xf32, #tpu.memory_space<vmem>> -> memref<1x32xf32, #tpu.memory_space<vmem>>
      %39 = tpu.memref_slice %arg5[%36] : memref<32x!tpu.dma_semaphore, #tpu.memory_space<semaphore_mem>> -> memref<1x!tpu.dma_semaphore, #tpu.memory_space<semaphore_mem>>
      %40 = tpu.memref_squeeze %39 : memref<1x!tpu.dma_semaphore, #tpu.memory_space<semaphore_mem>> -> memref<!tpu.dma_semaphore, #tpu.memory_space<semaphore_mem>>
      tpu.enqueue_dma source(%37 : memref<1x32xf32, #tpu.memory_space<any>>) target(%38 : memref<1x32xf32, #tpu.memory_space<vmem>>) target_semaphore(%40 : memref<!tpu.dma_semaphore, #tpu.memory_space<semaphore_mem>>)
      %c1_i32_25 = arith.constant 1 : i32
      %41 = arith.addi %0, %c1_i32_25 : i32
      %42 = arith.index_cast %41 : i32 to index
      %43 = memref.load %arg1[%42] : memref<16xi32, #tpu.memory_space<smem>>
      %c1_i32_26 = arith.constant 1 : i32
      %44 = arith.addi %12, %c1_i32_26 : i32
      %c1_i32_27 = arith.constant 1 : i32
      %45 = arith.addi %13, %c1_i32_27 : i32
      %c0_i32_28 = arith.constant 0 : i32
      %46 = tpu.memref_slice %arg2[%43, %c0_i32_28] : memref<100x32xf32, #tpu.memory_space<any>> -> memref<1x32xf32, #tpu.memory_space<any>>
      %c0_i32_29 = arith.constant 0 : i32
      %47 = tpu.memref_slice %arg4[%44, %c0_i32_29] : memref<32x32xf32, #tpu.memory_space<vmem>> -> memref<1x32xf32, #tpu.memory_space<vmem>>
      %48 = tpu.memref_slice %arg5[%45] : memref<32x!tpu.dma_semaphore, #tpu.memory_space<semaphore_mem>> -> memref<1x!tpu.dma_semaphore, #tpu.memory_space<semaphore_mem>>
      %49 = tpu.memref_squeeze %48 : memref<1x!tpu.dma_semaphore, #tpu.memory_space<semaphore_mem>> -> memref<!tpu.dma_semaphore, #tpu.memory_space<semaphore_mem>>
      tpu.enqueue_dma source(%46 : memref<1x32xf32, #tpu.memory_space<any>>) target(%47 : memref<1x32xf32, #tpu.memory_space<vmem>>) target_semaphore(%49 : memref<!tpu.dma_semaphore, #tpu.memory_space<semaphore_mem>>)
      %c2_i32_30 = arith.constant 2 : i32
      %50 = arith.addi %0, %c2_i32_30 : i32
      %51 = arith.index_cast %50 : i32 to index
      %52 = memref.load %arg1[%51] : memref<16xi32, #tpu.memory_space<smem>>
      %c2_i32_31 = arith.constant 2 : i32
      %53 = arith.addi %12, %c2_i32_31 : i32
      %c2_i32_32 = arith.constant 2 : i32
      %54 = arith.addi %13, %c2_i32_32 : i32
      %c0_i32_33 = arith.constant 0 : i32
      %55 = tpu.memref_slice %arg2[%52, %c0_i32_33] : memref<100x32xf32, #tpu.memory_space<any>> -> memref<1x32xf32, #tpu.memory_space<any>>
      %c0_i32_34 = arith.constant 0 : i32
      %56 = tpu.memref_slice %arg4[%53, %c0_i32_34] : memref<32x32xf32, #tpu.memory_space<vmem>> -> memref<1x32xf32, #tpu.memory_space<vmem>>
      %57 = tpu.memref_slice %arg5[%54] : memref<32x!tpu.dma_semaphore, #tpu.memory_space<semaphore_mem>> -> memref<1x!tpu.dma_semaphore, #tpu.memory_space<semaphore_mem>>
      %58 = tpu.memref_squeeze %57 : memref<1x!tpu.dma_semaphore, #tpu.memory_space<semaphore_mem>> -> memref<!tpu.dma_semaphore, #tpu.memory_space<semaphore_mem>>
      tpu.enqueue_dma source(%55 : memref<1x32xf32, #tpu.memory_space<any>>) target(%56 : memref<1x32xf32, #tpu.memory_space<vmem>>) target_semaphore(%58 : memref<!tpu.dma_semaphore, #tpu.memory_space<semaphore_mem>>)
      %c3_i32 = arith.constant 3 : i32
      %59 = arith.addi %0, %c3_i32 : i32
      %60 = arith.index_cast %59 : i32 to index
      %61 = memref.load %arg1[%60] : memref<16xi32, #tpu.memory_space<smem>>
      %c3_i32_35 = arith.constant 3 : i32
      %62 = arith.addi %12, %c3_i32_35 : i32
      %c3_i32_36 = arith.constant 3 : i32
      %63 = arith.addi %13, %c3_i32_36 : i32
      %c0_i32_37 = arith.constant 0 : i32
      %64 = tpu.memref_slice %arg2[%61, %c0_i32_37] : memref<100x32xf32, #tpu.memory_space<any>> -> memref<1x32xf32, #tpu.memory_space<any>>
      %c0_i32_38 = arith.constant 0 : i32
      %65 = tpu.memref_slice %arg4[%62, %c0_i32_38] : memref<32x32xf32, #tpu.memory_space<vmem>> -> memref<1x32xf32, #tpu.memory_space<vmem>>
      %66 = tpu.memref_slice %arg5[%63] : memref<32x!tpu.dma_semaphore, #tpu.memory_space<semaphore_mem>> -> memref<1x!tpu.dma_semaphore, #tpu.memory_space<semaphore_mem>>
      %67 = tpu.memref_squeeze %66 : memref<1x!tpu.dma_semaphore, #tpu.memory_space<semaphore_mem>> -> memref<!tpu.dma_semaphore, #tpu.memory_space<semaphore_mem>>
      tpu.enqueue_dma source(%64 : memref<1x32xf32, #tpu.memory_space<any>>) target(%65 : memref<1x32xf32, #tpu.memory_space<vmem>>) target_semaphore(%67 : memref<!tpu.dma_semaphore, #tpu.memory_space<semaphore_mem>>)
      %c4_i32 = arith.constant 4 : i32
      %68 = arith.addi %0, %c4_i32 : i32
      %69 = arith.index_cast %68 : i32 to index
      %70 = memref.load %arg1[%69] : memref<16xi32, #tpu.memory_space<smem>>
      %c4_i32_39 = arith.constant 4 : i32
      %71 = arith.addi %12, %c4_i32_39 : i32
      %c4_i32_40 = arith.constant 4 : i32
      %72 = arith.addi %13, %c4_i32_40 : i32
      %c0_i32_41 = arith.constant 0 : i32
      %73 = tpu.memref_slice %arg2[%70, %c0_i32_41] : memref<100x32xf32, #tpu.memory_space<any>> -> memref<1x32xf32, #tpu.memory_space<any>>
      %c0_i32_42 = arith.constant 0 : i32
      %74 = tpu.memref_slice %arg4[%71, %c0_i32_42] : memref<32x32xf32, #tpu.memory_space<vmem>> -> memref<1x32xf32, #tpu.memory_space<vmem>>
      %75 = tpu.memref_slice %arg5[%72] : memref<32x!tpu.dma_semaphore, #tpu.memory_space<semaphore_mem>> -> memref<1x!tpu.dma_semaphore, #tpu.memory_space<semaphore_mem>>
      %76 = tpu.memref_squeeze %75 : memref<1x!tpu.dma_semaphore, #tpu.memory_space<semaphore_mem>> -> memref<!tpu.dma_semaphore, #tpu.memory_space<semaphore_mem>>
      tpu.enqueue_dma source(%73 : memref<1x32xf32, #tpu.memory_space<any>>) target(%74 : memref<1x32xf32, #tpu.memory_space<vmem>>) target_semaphore(%76 : memref<!tpu.dma_semaphore, #tpu.memory_space<semaphore_mem>>)
      %c5_i32 = arith.constant 5 : i32
      %77 = arith.addi %0, %c5_i32 : i32
      %78 = arith.index_cast %77 : i32 to index
      %79 = memref.load %arg1[%78] : memref<16xi32, #tpu.memory_space<smem>>
      %c5_i32_43 = arith.constant 5 : i32
      %80 = arith.addi %12, %c5_i32_43 : i32
      %c5_i32_44 = arith.constant 5 : i32
      %81 = arith.addi %13, %c5_i32_44 : i32
      %c0_i32_45 = arith.constant 0 : i32
      %82 = tpu.memref_slice %arg2[%79, %c0_i32_45] : memref<100x32xf32, #tpu.memory_space<any>> -> memref<1x32xf32, #tpu.memory_space<any>>
      %c0_i32_46 = arith.constant 0 : i32
      %83 = tpu.memref_slice %arg4[%80, %c0_i32_46] : memref<32x32xf32, #tpu.memory_space<vmem>> -> memref<1x32xf32, #tpu.memory_space<vmem>>
      %84 = tpu.memref_slice %arg5[%81] : memref<32x!tpu.dma_semaphore, #tpu.memory_space<semaphore_mem>> -> memref<1x!tpu.dma_semaphore, #tpu.memory_space<semaphore_mem>>
      %85 = tpu.memref_squeeze %84 : memref<1x!tpu.dma_semaphore, #tpu.memory_space<semaphore_mem>> -> memref<!tpu.dma_semaphore, #tpu.memory_space<semaphore_mem>>
      tpu.enqueue_dma source(%82 : memref<1x32xf32, #tpu.memory_space<any>>) target(%83 : memref<1x32xf32, #tpu.memory_space<vmem>>) target_semaphore(%85 : memref<!tpu.dma_semaphore, #tpu.memory_space<semaphore_mem>>)
      %c6_i32 = arith.constant 6 : i32
      %86 = arith.addi %0, %c6_i32 : i32
      %87 = arith.index_cast %86 : i32 to index
      %88 = memref.load %arg1[%87] : memref<16xi32, #tpu.memory_space<smem>>
      %c6_i32_47 = arith.constant 6 : i32
      %89 = arith.addi %12, %c6_i32_47 : i32
      %c6_i32_48 = arith.constant 6 : i32
      %90 = arith.addi %13, %c6_i32_48 : i32
      %c0_i32_49 = arith.constant 0 : i32
      %91 = tpu.memref_slice %arg2[%88, %c0_i32_49] : memref<100x32xf32, #tpu.memory_space<any>> -> memref<1x32xf32, #tpu.memory_space<any>>
      %c0_i32_50 = arith.constant 0 : i32
      %92 = tpu.memref_slice %arg4[%89, %c0_i32_50] : memref<32x32xf32, #tpu.memory_space<vmem>> -> memref<1x32xf32, #tpu.memory_space<vmem>>
      %93 = tpu.memref_slice %arg5[%90] : memref<32x!tpu.dma_semaphore, #tpu.memory_space<semaphore_mem>> -> memref<1x!tpu.dma_semaphore, #tpu.memory_space<semaphore_mem>>
      %94 = tpu.memref_squeeze %93 : memref<1x!tpu.dma_semaphore, #tpu.memory_space<semaphore_mem>> -> memref<!tpu.dma_semaphore, #tpu.memory_space<semaphore_mem>>
      tpu.enqueue_dma source(%91 : memref<1x32xf32, #tpu.memory_space<any>>) target(%92 : memref<1x32xf32, #tpu.memory_space<vmem>>) target_semaphore(%94 : memref<!tpu.dma_semaphore, #tpu.memory_space<semaphore_mem>>)
      %c7_i32 = arith.constant 7 : i32
      %95 = arith.addi %0, %c7_i32 : i32
      %96 = arith.index_cast %95 : i32 to index
      %97 = memref.load %arg1[%96] : memref<16xi32, #tpu.memory_space<smem>>
      %c7_i32_51 = arith.constant 7 : i32
      %98 = arith.addi %12, %c7_i32_51 : i32
      %c7_i32_52 = arith.constant 7 : i32
      %99 = arith.addi %13, %c7_i32_52 : i32
      %c0_i32_53 = arith.constant 0 : i32
      %100 = tpu.memref_slice %arg2[%97, %c0_i32_53] : memref<100x32xf32, #tpu.memory_space<any>> -> memref<1x32xf32, #tpu.memory_space<any>>
      %c0_i32_54 = arith.constant 0 : i32
      %101 = tpu.memref_slice %arg4[%98, %c0_i32_54] : memref<32x32xf32, #tpu.memory_space<vmem>> -> memref<1x32xf32, #tpu.memory_space<vmem>>
      %102 = tpu.memref_slice %arg5[%99] : memref<32x!tpu.dma_semaphore, #tpu.memory_space<semaphore_mem>> -> memref<1x!tpu.dma_semaphore, #tpu.memory_space<semaphore_mem>>
      %103 = tpu.memref_squeeze %102 : memref<1x!tpu.dma_semaphore, #tpu.memory_space<semaphore_mem>> -> memref<!tpu.dma_semaphore, #tpu.memory_space<semaphore_mem>>
      tpu.enqueue_dma source(%100 : memref<1x32xf32, #tpu.memory_space<any>>) target(%101 : memref<1x32xf32, #tpu.memory_space<vmem>>) target_semaphore(%103 : memref<!tpu.dma_semaphore, #tpu.memory_space<semaphore_mem>>)
      %c8_i32 = arith.constant 8 : i32
      %104 = arith.addi %0, %c8_i32 : i32
      %105 = arith.index_cast %104 : i32 to index
      %106 = memref.load %arg1[%105] : memref<16xi32, #tpu.memory_space<smem>>
      %c8_i32_55 = arith.constant 8 : i32
      %107 = arith.addi %12, %c8_i32_55 : i32
      %c8_i32_56 = arith.constant 8 : i32
      %108 = arith.addi %13, %c8_i32_56 : i32
      %c0_i32_57 = arith.constant 0 : i32
      %109 = tpu.memref_slice %arg2[%106, %c0_i32_57] : memref<100x32xf32, #tpu.memory_space<any>> -> memref<1x32xf32, #tpu.memory_space<any>>
      %c0_i32_58 = arith.constant 0 : i32
      %110 = tpu.memref_slice %arg4[%107, %c0_i32_58] : memref<32x32xf32, #tpu.memory_space<vmem>> -> memref<1x32xf32, #tpu.memory_space<vmem>>
      %111 = tpu.memref_slice %arg5[%108] : memref<32x!tpu.dma_semaphore, #tpu.memory_space<semaphore_mem>> -> memref<1x!tpu.dma_semaphore, #tpu.memory_space<semaphore_mem>>
      %112 = tpu.memref_squeeze %111 : memref<1x!tpu.dma_semaphore, #tpu.memory_space<semaphore_mem>> -> memref<!tpu.dma_semaphore, #tpu.memory_space<semaphore_mem>>
      tpu.enqueue_dma source(%109 : memref<1x32xf32, #tpu.memory_space<any>>) target(%110 : memref<1x32xf32, #tpu.memory_space<vmem>>) target_semaphore(%112 : memref<!tpu.dma_semaphore, #tpu.memory_space<semaphore_mem>>)
      %c9_i32 = arith.constant 9 : i32
      %113 = arith.addi %0, %c9_i32 : i32
      %114 = arith.index_cast %113 : i32 to index
      %115 = memref.load %arg1[%114] : memref<16xi32, #tpu.memory_space<smem>>
      %c9_i32_59 = arith.constant 9 : i32
      %116 = arith.addi %12, %c9_i32_59 : i32
      %c9_i32_60 = arith.constant 9 : i32
      %117 = arith.addi %13, %c9_i32_60 : i32
      %c0_i32_61 = arith.constant 0 : i32
      %118 = tpu.memref_slice %arg2[%115, %c0_i32_61] : memref<100x32xf32, #tpu.memory_space<any>> -> memref<1x32xf32, #tpu.memory_space<any>>
      %c0_i32_62 = arith.constant 0 : i32
      %119 = tpu.memref_slice %arg4[%116, %c0_i32_62] : memref<32x32xf32, #tpu.memory_space<vmem>> -> memref<1x32xf32, #tpu.memory_space<vmem>>
      %120 = tpu.memref_slice %arg5[%117] : memref<32x!tpu.dma_semaphore, #tpu.memory_space<semaphore_mem>> -> memref<1x!tpu.dma_semaphore, #tpu.memory_space<semaphore_mem>>
      %121 = tpu.memref_squeeze %120 : memref<1x!tpu.dma_semaphore, #tpu.memory_space<semaphore_mem>> -> memref<!tpu.dma_semaphore, #tpu.memory_space<semaphore_mem>>
      tpu.enqueue_dma source(%118 : memref<1x32xf32, #tpu.memory_space<any>>) target(%119 : memref<1x32xf32, #tpu.memory_space<vmem>>) target_semaphore(%121 : memref<!tpu.dma_semaphore, #tpu.memory_space<semaphore_mem>>)
      %c10_i32 = arith.constant 10 : i32
      %122 = arith.addi %0, %c10_i32 : i32
      %123 = arith.index_cast %122 : i32 to index
      %124 = memref.load %arg1[%123] : memref<16xi32, #tpu.memory_space<smem>>
      %c10_i32_63 = arith.constant 10 : i32
      %125 = arith.addi %12, %c10_i32_63 : i32
      %c10_i32_64 = arith.constant 10 : i32
      %126 = arith.addi %13, %c10_i32_64 : i32
      %c0_i32_65 = arith.constant 0 : i32
      %127 = tpu.memref_slice %arg2[%124, %c0_i32_65] : memref<100x32xf32, #tpu.memory_space<any>> -> memref<1x32xf32, #tpu.memory_space<any>>
      %c0_i32_66 = arith.constant 0 : i32
      %128 = tpu.memref_slice %arg4[%125, %c0_i32_66] : memref<32x32xf32, #tpu.memory_space<vmem>> -> memref<1x32xf32, #tpu.memory_space<vmem>>
      %129 = tpu.memref_slice %arg5[%126] : memref<32x!tpu.dma_semaphore, #tpu.memory_space<semaphore_mem>> -> memref<1x!tpu.dma_semaphore, #tpu.memory_space<semaphore_mem>>
      %130 = tpu.memref_squeeze %129 : memref<1x!tpu.dma_semaphore, #tpu.memory_space<semaphore_mem>> -> memref<!tpu.dma_semaphore, #tpu.memory_space<semaphore_mem>>
      tpu.enqueue_dma source(%127 : memref<1x32xf32, #tpu.memory_space<any>>) target(%128 : memref<1x32xf32, #tpu.memory_space<vmem>>) target_semaphore(%130 : memref<!tpu.dma_semaphore, #tpu.memory_space<semaphore_mem>>)
      %c11_i32 = arith.constant 11 : i32
      %131 = arith.addi %0, %c11_i32 : i32
      %132 = arith.index_cast %131 : i32 to index
      %133 = memref.load %arg1[%132] : memref<16xi32, #tpu.memory_space<smem>>
      %c11_i32_67 = arith.constant 11 : i32
      %134 = arith.addi %12, %c11_i32_67 : i32
      %c11_i32_68 = arith.constant 11 : i32
      %135 = arith.addi %13, %c11_i32_68 : i32
      %c0_i32_69 = arith.constant 0 : i32
      %136 = tpu.memref_slice %arg2[%133, %c0_i32_69] : memref<100x32xf32, #tpu.memory_space<any>> -> memref<1x32xf32, #tpu.memory_space<any>>
      %c0_i32_70 = arith.constant 0 : i32
      %137 = tpu.memref_slice %arg4[%134, %c0_i32_70] : memref<32x32xf32, #tpu.memory_space<vmem>> -> memref<1x32xf32, #tpu.memory_space<vmem>>
      %138 = tpu.memref_slice %arg5[%135] : memref<32x!tpu.dma_semaphore, #tpu.memory_space<semaphore_mem>> -> memref<1x!tpu.dma_semaphore, #tpu.memory_space<semaphore_mem>>
      %139 = tpu.memref_squeeze %138 : memref<1x!tpu.dma_semaphore, #tpu.memory_space<semaphore_mem>> -> memref<!tpu.dma_semaphore, #tpu.memory_space<semaphore_mem>>
      tpu.enqueue_dma source(%136 : memref<1x32xf32, #tpu.memory_space<any>>) target(%137 : memref<1x32xf32, #tpu.memory_space<vmem>>) target_semaphore(%139 : memref<!tpu.dma_semaphore, #tpu.memory_space<semaphore_mem>>)
      %c12_i32 = arith.constant 12 : i32
      %140 = arith.addi %0, %c12_i32 : i32
      %141 = arith.index_cast %140 : i32 to index
      %142 = memref.load %arg1[%141] : memref<16xi32, #tpu.memory_space<smem>>
      %c12_i32_71 = arith.constant 12 : i32
      %143 = arith.addi %12, %c12_i32_71 : i32
      %c12_i32_72 = arith.constant 12 : i32
      %144 = arith.addi %13, %c12_i32_72 : i32
      %c0_i32_73 = arith.constant 0 : i32
      %145 = tpu.memref_slice %arg2[%142, %c0_i32_73] : memref<100x32xf32, #tpu.memory_space<any>> -> memref<1x32xf32, #tpu.memory_space<any>>
      %c0_i32_74 = arith.constant 0 : i32
      %146 = tpu.memref_slice %arg4[%143, %c0_i32_74] : memref<32x32xf32, #tpu.memory_space<vmem>> -> memref<1x32xf32, #tpu.memory_space<vmem>>
      %147 = tpu.memref_slice %arg5[%144] : memref<32x!tpu.dma_semaphore, #tpu.memory_space<semaphore_mem>> -> memref<1x!tpu.dma_semaphore, #tpu.memory_space<semaphore_mem>>
      %148 = tpu.memref_squeeze %147 : memref<1x!tpu.dma_semaphore, #tpu.memory_space<semaphore_mem>> -> memref<!tpu.dma_semaphore, #tpu.memory_space<semaphore_mem>>
      tpu.enqueue_dma source(%145 : memref<1x32xf32, #tpu.memory_space<any>>) target(%146 : memref<1x32xf32, #tpu.memory_space<vmem>>) target_semaphore(%148 : memref<!tpu.dma_semaphore, #tpu.memory_space<semaphore_mem>>)
      %c13_i32 = arith.constant 13 : i32
      %149 = arith.addi %0, %c13_i32 : i32
      %150 = arith.index_cast %149 : i32 to index
      %151 = memref.load %arg1[%150] : memref<16xi32, #tpu.memory_space<smem>>
      %c13_i32_75 = arith.constant 13 : i32
      %152 = arith.addi %12, %c13_i32_75 : i32
      %c13_i32_76 = arith.constant 13 : i32
      %153 = arith.addi %13, %c13_i32_76 : i32
      %c0_i32_77 = arith.constant 0 : i32
      %154 = tpu.memref_slice %arg2[%151, %c0_i32_77] : memref<100x32xf32, #tpu.memory_space<any>> -> memref<1x32xf32, #tpu.memory_space<any>>
      %c0_i32_78 = arith.constant 0 : i32
      %155 = tpu.memref_slice %arg4[%152, %c0_i32_78] : memref<32x32xf32, #tpu.memory_space<vmem>> -> memref<1x32xf32, #tpu.memory_space<vmem>>
      %156 = tpu.memref_slice %arg5[%153] : memref<32x!tpu.dma_semaphore, #tpu.memory_space<semaphore_mem>> -> memref<1x!tpu.dma_semaphore, #tpu.memory_space<semaphore_mem>>
      %157 = tpu.memref_squeeze %156 : memref<1x!tpu.dma_semaphore, #tpu.memory_space<semaphore_mem>> -> memref<!tpu.dma_semaphore, #tpu.memory_space<semaphore_mem>>
      tpu.enqueue_dma source(%154 : memref<1x32xf32, #tpu.memory_space<any>>) target(%155 : memref<1x32xf32, #tpu.memory_space<vmem>>) target_semaphore(%157 : memref<!tpu.dma_semaphore, #tpu.memory_space<semaphore_mem>>)
      %c14_i32 = arith.constant 14 : i32
      %158 = arith.addi %0, %c14_i32 : i32
      %159 = arith.index_cast %158 : i32 to index
      %160 = memref.load %arg1[%159] : memref<16xi32, #tpu.memory_space<smem>>
      %c14_i32_79 = arith.constant 14 : i32
      %161 = arith.addi %12, %c14_i32_79 : i32
      %c14_i32_80 = arith.constant 14 : i32
      %162 = arith.addi %13, %c14_i32_80 : i32
      %c0_i32_81 = arith.constant 0 : i32
      %163 = tpu.memref_slice %arg2[%160, %c0_i32_81] : memref<100x32xf32, #tpu.memory_space<any>> -> memref<1x32xf32, #tpu.memory_space<any>>
      %c0_i32_82 = arith.constant 0 : i32
      %164 = tpu.memref_slice %arg4[%161, %c0_i32_82] : memref<32x32xf32, #tpu.memory_space<vmem>> -> memref<1x32xf32, #tpu.memory_space<vmem>>
      %165 = tpu.memref_slice %arg5[%162] : memref<32x!tpu.dma_semaphore, #tpu.memory_space<semaphore_mem>> -> memref<1x!tpu.dma_semaphore, #tpu.memory_space<semaphore_mem>>
      %166 = tpu.memref_squeeze %165 : memref<1x!tpu.dma_semaphore, #tpu.memory_space<semaphore_mem>> -> memref<!tpu.dma_semaphore, #tpu.memory_space<semaphore_mem>>
      tpu.enqueue_dma source(%163 : memref<1x32xf32, #tpu.memory_space<any>>) target(%164 : memref<1x32xf32, #tpu.memory_space<vmem>>) target_semaphore(%166 : memref<!tpu.dma_semaphore, #tpu.memory_space<semaphore_mem>>)
      %c15_i32 = arith.constant 15 : i32
      %167 = arith.addi %0, %c15_i32 : i32
      %168 = arith.index_cast %167 : i32 to index
      %169 = memref.load %arg1[%168] : memref<16xi32, #tpu.memory_space<smem>>
      %c15_i32_83 = arith.constant 15 : i32
      %170 = arith.addi %12, %c15_i32_83 : i32
      %c15_i32_84 = arith.constant 15 : i32
      %171 = arith.addi %13, %c15_i32_84 : i32
      %c0_i32_85 = arith.constant 0 : i32
      %172 = tpu.memref_slice %arg2[%169, %c0_i32_85] : memref<100x32xf32, #tpu.memory_space<any>> -> memref<1x32xf32, #tpu.memory_space<any>>
      %c0_i32_86 = arith.constant 0 : i32
      %173 = tpu.memref_slice %arg4[%170, %c0_i32_86] : memref<32x32xf32, #tpu.memory_space<vmem>> -> memref<1x32xf32, #tpu.memory_space<vmem>>
      %174 = tpu.memref_slice %arg5[%171] : memref<32x!tpu.dma_semaphore, #tpu.memory_space<semaphore_mem>> -> memref<1x!tpu.dma_semaphore, #tpu.memory_space<semaphore_mem>>
      %175 = tpu.memref_squeeze %174 : memref<1x!tpu.dma_semaphore, #tpu.memory_space<semaphore_mem>> -> memref<!tpu.dma_semaphore, #tpu.memory_space<semaphore_mem>>
      tpu.enqueue_dma source(%172 : memref<1x32xf32, #tpu.memory_space<any>>) target(%173 : memref<1x32xf32, #tpu.memory_space<vmem>>) target_semaphore(%175 : memref<!tpu.dma_semaphore, #tpu.memory_space<semaphore_mem>>)
    } else {
    }
    %c0_i32_11 = arith.constant 0 : i32
    %c16_i32_12 = arith.constant 16 : i32
    %22 = arith.addi %c0_i32_11, %c16_i32_12 : i32
    %c1_i32_13 = arith.constant 1 : i32
    scf.for %arg6 = %c0_i32_11 to %22 step %c1_i32_13  : i32 {
      %c1_i32_20 = arith.constant 1 : i32
      %32 = arith.muli %arg6, %c1_i32_20 : i32
      %c0_i32_21 = arith.constant 0 : i32
      %33 = arith.addi %c0_i32_21, %32 : i32
      %34 = arith.addi %12, %33 : i32
      %c15_i32 = arith.constant 15 : i32
      %35 = arith.andi %33, %c15_i32 : i32
      %36 = arith.addi %13, %35 : i32
      %c0_i32_22 = arith.constant 0 : i32
      %c0_i32_23 = arith.constant 0 : i32
      %37 = tpu.memref_slice %arg2[%c0_i32_22, %c0_i32_23] : memref<100x32xf32, #tpu.memory_space<any>> -> memref<1x32xf32, #tpu.memory_space<any>>
      %c0_i32_24 = arith.constant 0 : i32
      %38 = tpu.memref_slice %arg4[%34, %c0_i32_24] : memref<32x32xf32, #tpu.memory_space<vmem>> -> memref<1x32xf32, #tpu.memory_space<vmem>>
      %39 = tpu.memref_slice %arg5[%36] : memref<32x!tpu.dma_semaphore, #tpu.memory_space<semaphore_mem>> -> memref<1x!tpu.dma_semaphore, #tpu.memory_space<semaphore_mem>>
      %40 = tpu.memref_squeeze %39 : memref<1x!tpu.dma_semaphore, #tpu.memory_space<semaphore_mem>> -> memref<!tpu.dma_semaphore, #tpu.memory_space<semaphore_mem>>
      tpu.wait_dma2 semaphore(%40 : memref<!tpu.dma_semaphore, #tpu.memory_space<semaphore_mem>>) src(%37 : memref<1x32xf32, #tpu.memory_space<any>>) dst(%38 : memref<1x32xf32, #tpu.memory_space<vmem>>)
      %c16_i32_25 = arith.constant 16 : i32
      %41 = arith.addi %33, %c16_i32_25 : i32
      %c16_i32_26 = arith.constant 16 : i32
      %42 = arith.cmpi slt, %41, %c16_i32_26 : i32
      %43 = arith.extui %42 : i1 to i32
      %c0_i32_27 = arith.constant 0 : i32
      %44 = arith.cmpi ne, %43, %c0_i32_27 : i32
      scf.if %44 {
        %45 = arith.addi %0, %33 : i32
        %c16_i32_28 = arith.constant 16 : i32
        %46 = arith.addi %45, %c16_i32_28 : i32
        %c16_i32_29 = arith.constant 16 : i32
        %47 = arith.addi %33, %c16_i32_29 : i32
        %48 = arith.index_cast %46 : i32 to index
        %49 = memref.load %arg1[%48] : memref<16xi32, #tpu.memory_space<smem>>
        %50 = arith.addi %12, %47 : i32
        %c15_i32_30 = arith.constant 15 : i32
        %51 = arith.andi %47, %c15_i32_30 : i32
        %52 = arith.addi %13, %51 : i32
        %c0_i32_31 = arith.constant 0 : i32
        %53 = tpu.memref_slice %arg2[%49, %c0_i32_31] : memref<100x32xf32, #tpu.memory_space<any>> -> memref<1x32xf32, #tpu.memory_space<any>>
        %c0_i32_32 = arith.constant 0 : i32
        %54 = tpu.memref_slice %arg4[%50, %c0_i32_32] : memref<32x32xf32, #tpu.memory_space<vmem>> -> memref<1x32xf32, #tpu.memory_space<vmem>>
        %55 = tpu.memref_slice %arg5[%52] : memref<32x!tpu.dma_semaphore, #tpu.memory_space<semaphore_mem>> -> memref<1x!tpu.dma_semaphore, #tpu.memory_space<semaphore_mem>>
        %56 = tpu.memref_squeeze %55 : memref<1x!tpu.dma_semaphore, #tpu.memory_space<semaphore_mem>> -> memref<!tpu.dma_semaphore, #tpu.memory_space<semaphore_mem>>
        tpu.enqueue_dma source(%53 : memref<1x32xf32, #tpu.memory_space<any>>) target(%54 : memref<1x32xf32, #tpu.memory_space<vmem>>) target_semaphore(%56 : memref<!tpu.dma_semaphore, #tpu.memory_space<semaphore_mem>>)
      } else {
      }
    }
    %c16_i32_14 = arith.constant 16 : i32
    %23 = arith.index_cast %12 : i32 to index
    %c0 = arith.constant 0 : index
    %24 = vector.load %arg4[%23, %c0] : memref<32x32xf32, #tpu.memory_space<vmem>>, vector<16x32xf32>
    %cst = arith.constant 0.176776692 : f32
    %25 = vector.broadcast %cst : f32 to vector<16x32xf32>
    %26 = arith.mulf %24, %25 : vector<16x32xf32>
    %c0_15 = arith.constant 0 : index
    %c0_16 = arith.constant 0 : index
    %27 = vector.load %arg3[%c0_15, %c0_16] : memref<16x32xf32, #tpu.memory_space<vmem>>, vector<16x32xf32>
    tpu.vector_store %arg3[%c0_15, %c0_16], %26 {strides = array<i32>} : memref<16x32xf32, #tpu.memory_space<vmem>>, vector<16x32xf32>,
    %c1_i32_17 = arith.constant 1 : i32
    %28 = arith.addi %arg0, %c1_i32_17 : i32
    %c1_i32_18 = arith.constant 1 : i32
    %29 = arith.cmpi slt, %28, %c1_i32_18 : i32
    %30 = arith.extui %29 : i1 to i32
    %c0_i32_19 = arith.constant 0 : i32
    %31 = arith.cmpi ne, %30, %c0_i32_19 : i32
    scf.if %31 {
      %c16_i32_20 = arith.constant 16 : i32
      %32 = arith.addi %0, %c16_i32_20 : i32
      %c0_i32_21 = arith.constant 0 : i32
      %33 = arith.addi %32, %c0_i32_21 : i32
      %34 = arith.index_cast %33 : i32 to index
      %35 = memref.load %arg1[%34] : memref<16xi32, #tpu.memory_space<smem>>
      %c0_i32_22 = arith.constant 0 : i32
      %36 = arith.addi %16, %c0_i32_22 : i32
      %c0_i32_23 = arith.constant 0 : i32
      %37 = arith.addi %18, %c0_i32_23 : i32
      %c0_i32_24 = arith.constant 0 : i32
      %38 = tpu.memref_slice %arg2[%35, %c0_i32_24] : memref<100x32xf32, #tpu.memory_space<any>> -> memref<1x32xf32, #tpu.memory_space<any>>
      %c0_i32_25 = arith.constant 0 : i32
      %39 = tpu.memref_slice %arg4[%36, %c0_i32_25] : memref<32x32xf32, #tpu.memory_space<vmem>> -> memref<1x32xf32, #tpu.memory_space<vmem>>
      %40 = tpu.memref_slice %arg5[%37] : memref<32x!tpu.dma_semaphore, #tpu.memory_space<semaphore_mem>> -> memref<1x!tpu.dma_semaphore, #tpu.memory_space<semaphore_mem>>
      %41 = tpu.memref_squeeze %40 : memref<1x!tpu.dma_semaphore, #tpu.memory_space<semaphore_mem>> -> memref<!tpu.dma_semaphore, #tpu.memory_space<semaphore_mem>>
      tpu.enqueue_dma source(%38 : memref<1x32xf32, #tpu.memory_space<any>>) target(%39 : memref<1x32xf32, #tpu.memory_space<vmem>>) target_semaphore(%41 : memref<!tpu.dma_semaphore, #tpu.memory_space<semaphore_mem>>)
      %c16_i32_26 = arith.constant 16 : i32
      %42 = arith.addi %0, %c16_i32_26 : i32
      %c1_i32_27 = arith.constant 1 : i32
      %43 = arith.addi %42, %c1_i32_27 : i32
      %44 = arith.index_cast %43 : i32 to index
      %45 = memref.load %arg1[%44] : memref<16xi32, #tpu.memory_space<smem>>
      %c1_i32_28 = arith.constant 1 : i32
      %46 = arith.addi %16, %c1_i32_28 : i32
      %c1_i32_29 = arith.constant 1 : i32
      %47 = arith.addi %18, %c1_i32_29 : i32
      %c0_i32_30 = arith.constant 0 : i32
      %48 = tpu.memref_slice %arg2[%45, %c0_i32_30] : memref<100x32xf32, #tpu.memory_space<any>> -> memref<1x32xf32, #tpu.memory_space<any>>
      %c0_i32_31 = arith.constant 0 : i32
      %49 = tpu.memref_slice %arg4[%46, %c0_i32_31] : memref<32x32xf32, #tpu.memory_space<vmem>> -> memref<1x32xf32, #tpu.memory_space<vmem>>
      %50 = tpu.memref_slice %arg5[%47] : memref<32x!tpu.dma_semaphore, #tpu.memory_space<semaphore_mem>> -> memref<1x!tpu.dma_semaphore, #tpu.memory_space<semaphore_mem>>
      %51 = tpu.memref_squeeze %50 : memref<1x!tpu.dma_semaphore, #tpu.memory_space<semaphore_mem>> -> memref<!tpu.dma_semaphore, #tpu.memory_space<semaphore_mem>>
      tpu.enqueue_dma source(%48 : memref<1x32xf32, #tpu.memory_space<any>>) target(%49 : memref<1x32xf32, #tpu.memory_space<vmem>>) target_semaphore(%51 : memref<!tpu.dma_semaphore, #tpu.memory_space<semaphore_mem>>)
      %c16_i32_32 = arith.constant 16 : i32
      %52 = arith.addi %0, %c16_i32_32 : i32
      %c2_i32_33 = arith.constant 2 : i32
      %53 = arith.addi %52, %c2_i32_33 : i32
      %54 = arith.index_cast %53 : i32 to index
      %55 = memref.load %arg1[%54] : memref<16xi32, #tpu.memory_space<smem>>
      %c2_i32_34 = arith.constant 2 : i32
      %56 = arith.addi %16, %c2_i32_34 : i32
      %c2_i32_35 = arith.constant 2 : i32
      %57 = arith.addi %18, %c2_i32_35 : i32
      %c0_i32_36 = arith.constant 0 : i32
      %58 = tpu.memref_slice %arg2[%55, %c0_i32_36] : memref<100x32xf32, #tpu.memory_space<any>> -> memref<1x32xf32, #tpu.memory_space<any>>
      %c0_i32_37 = arith.constant 0 : i32
      %59 = tpu.memref_slice %arg4[%56, %c0_i32_37] : memref<32x32xf32, #tpu.memory_space<vmem>> -> memref<1x32xf32, #tpu.memory_space<vmem>>
      %60 = tpu.memref_slice %arg5[%57] : memref<32x!tpu.dma_semaphore, #tpu.memory_space<semaphore_mem>> -> memref<1x!tpu.dma_semaphore, #tpu.memory_space<semaphore_mem>>
      %61 = tpu.memref_squeeze %60 : memref<1x!tpu.dma_semaphore, #tpu.memory_space<semaphore_mem>> -> memref<!tpu.dma_semaphore, #tpu.memory_space<semaphore_mem>>
      tpu.enqueue_dma source(%58 : memref<1x32xf32, #tpu.memory_space<any>>) target(%59 : memref<1x32xf32, #tpu.memory_space<vmem>>) target_semaphore(%61 : memref<!tpu.dma_semaphore, #tpu.memory_space<semaphore_mem>>)
      %c16_i32_38 = arith.constant 16 : i32
      %62 = arith.addi %0, %c16_i32_38 : i32
      %c3_i32 = arith.constant 3 : i32
      %63 = arith.addi %62, %c3_i32 : i32
      %64 = arith.index_cast %63 : i32 to index
      %65 = memref.load %arg1[%64] : memref<16xi32, #tpu.memory_space<smem>>
      %c3_i32_39 = arith.constant 3 : i32
      %66 = arith.addi %16, %c3_i32_39 : i32
      %c3_i32_40 = arith.constant 3 : i32
      %67 = arith.addi %18, %c3_i32_40 : i32
      %c0_i32_41 = arith.constant 0 : i32
      %68 = tpu.memref_slice %arg2[%65, %c0_i32_41] : memref<100x32xf32, #tpu.memory_space<any>> -> memref<1x32xf32, #tpu.memory_space<any>>
      %c0_i32_42 = arith.constant 0 : i32
      %69 = tpu.memref_slice %arg4[%66, %c0_i32_42] : memref<32x32xf32, #tpu.memory_space<vmem>> -> memref<1x32xf32, #tpu.memory_space<vmem>>
      %70 = tpu.memref_slice %arg5[%67] : memref<32x!tpu.dma_semaphore, #tpu.memory_space<semaphore_mem>> -> memref<1x!tpu.dma_semaphore, #tpu.memory_space<semaphore_mem>>
      %71 = tpu.memref_squeeze %70 : memref<1x!tpu.dma_semaphore, #tpu.memory_space<semaphore_mem>> -> memref<!tpu.dma_semaphore, #tpu.memory_space<semaphore_mem>>
      tpu.enqueue_dma source(%68 : memref<1x32xf32, #tpu.memory_space<any>>) target(%69 : memref<1x32xf32, #tpu.memory_space<vmem>>) target_semaphore(%71 : memref<!tpu.dma_semaphore, #tpu.memory_space<semaphore_mem>>)
      %c16_i32_43 = arith.constant 16 : i32
      %72 = arith.addi %0, %c16_i32_43 : i32
      %c4_i32 = arith.constant 4 : i32
      %73 = arith.addi %72, %c4_i32 : i32
      %74 = arith.index_cast %73 : i32 to index
      %75 = memref.load %arg1[%74] : memref<16xi32, #tpu.memory_space<smem>>
      %c4_i32_44 = arith.constant 4 : i32
      %76 = arith.addi %16, %c4_i32_44 : i32
      %c4_i32_45 = arith.constant 4 : i32
      %77 = arith.addi %18, %c4_i32_45 : i32
      %c0_i32_46 = arith.constant 0 : i32
      %78 = tpu.memref_slice %arg2[%75, %c0_i32_46] : memref<100x32xf32, #tpu.memory_space<any>> -> memref<1x32xf32, #tpu.memory_space<any>>
      %c0_i32_47 = arith.constant 0 : i32
      %79 = tpu.memref_slice %arg4[%76, %c0_i32_47] : memref<32x32xf32, #tpu.memory_space<vmem>> -> memref<1x32xf32, #tpu.memory_space<vmem>>
      %80 = tpu.memref_slice %arg5[%77] : memref<32x!tpu.dma_semaphore, #tpu.memory_space<semaphore_mem>> -> memref<1x!tpu.dma_semaphore, #tpu.memory_space<semaphore_mem>>
      %81 = tpu.memref_squeeze %80 : memref<1x!tpu.dma_semaphore, #tpu.memory_space<semaphore_mem>> -> memref<!tpu.dma_semaphore, #tpu.memory_space<semaphore_mem>>
      tpu.enqueue_dma source(%78 : memref<1x32xf32, #tpu.memory_space<any>>) target(%79 : memref<1x32xf32, #tpu.memory_space<vmem>>) target_semaphore(%81 : memref<!tpu.dma_semaphore, #tpu.memory_space<semaphore_mem>>)
      %c16_i32_48 = arith.constant 16 : i32
      %82 = arith.addi %0, %c16_i32_48 : i32
      %c5_i32 = arith.constant 5 : i32
      %83 = arith.addi %82, %c5_i32 : i32
      %84 = arith.index_cast %83 : i32 to index
      %85 = memref.load %arg1[%84] : memref<16xi32, #tpu.memory_space<smem>>
      %c5_i32_49 = arith.constant 5 : i32
      %86 = arith.addi %16, %c5_i32_49 : i32
      %c5_i32_50 = arith.constant 5 : i32
      %87 = arith.addi %18, %c5_i32_50 : i32
      %c0_i32_51 = arith.constant 0 : i32
      %88 = tpu.memref_slice %arg2[%85, %c0_i32_51] : memref<100x32xf32, #tpu.memory_space<any>> -> memref<1x32xf32, #tpu.memory_space<any>>
      %c0_i32_52 = arith.constant 0 : i32
      %89 = tpu.memref_slice %arg4[%86, %c0_i32_52] : memref<32x32xf32, #tpu.memory_space<vmem>> -> memref<1x32xf32, #tpu.memory_space<vmem>>
      %90 = tpu.memref_slice %arg5[%87] : memref<32x!tpu.dma_semaphore, #tpu.memory_space<semaphore_mem>> -> memref<1x!tpu.dma_semaphore, #tpu.memory_space<semaphore_mem>>
      %91 = tpu.memref_squeeze %90 : memref<1x!tpu.dma_semaphore, #tpu.memory_space<semaphore_mem>> -> memref<!tpu.dma_semaphore, #tpu.memory_space<semaphore_mem>>
      tpu.enqueue_dma source(%88 : memref<1x32xf32, #tpu.memory_space<any>>) target(%89 : memref<1x32xf32, #tpu.memory_space<vmem>>) target_semaphore(%91 : memref<!tpu.dma_semaphore, #tpu.memory_space<semaphore_mem>>)
      %c16_i32_53 = arith.constant 16 : i32
      %92 = arith.addi %0, %c16_i32_53 : i32
      %c6_i32 = arith.constant 6 : i32
      %93 = arith.addi %92, %c6_i32 : i32
      %94 = arith.index_cast %93 : i32 to index
      %95 = memref.load %arg1[%94] : memref<16xi32, #tpu.memory_space<smem>>
      %c6_i32_54 = arith.constant 6 : i32
      %96 = arith.addi %16, %c6_i32_54 : i32
      %c6_i32_55 = arith.constant 6 : i32
      %97 = arith.addi %18, %c6_i32_55 : i32
      %c0_i32_56 = arith.constant 0 : i32
      %98 = tpu.memref_slice %arg2[%95, %c0_i32_56] : memref<100x32xf32, #tpu.memory_space<any>> -> memref<1x32xf32, #tpu.memory_space<any>>
      %c0_i32_57 = arith.constant 0 : i32
      %99 = tpu.memref_slice %arg4[%96, %c0_i32_57] : memref<32x32xf32, #tpu.memory_space<vmem>> -> memref<1x32xf32, #tpu.memory_space<vmem>>
      %100 = tpu.memref_slice %arg5[%97] : memref<32x!tpu.dma_semaphore, #tpu.memory_space<semaphore_mem>> -> memref<1x!tpu.dma_semaphore, #tpu.memory_space<semaphore_mem>>
      %101 = tpu.memref_squeeze %100 : memref<1x!tpu.dma_semaphore, #tpu.memory_space<semaphore_mem>> -> memref<!tpu.dma_semaphore, #tpu.memory_space<semaphore_mem>>
      tpu.enqueue_dma source(%98 : memref<1x32xf32, #tpu.memory_space<any>>) target(%99 : memref<1x32xf32, #tpu.memory_space<vmem>>) target_semaphore(%101 : memref<!tpu.dma_semaphore, #tpu.memory_space<semaphore_mem>>)
      %c16_i32_58 = arith.constant 16 : i32
      %102 = arith.addi %0, %c16_i32_58 : i32
      %c7_i32 = arith.constant 7 : i32
      %103 = arith.addi %102, %c7_i32 : i32
      %104 = arith.index_cast %103 : i32 to index
      %105 = memref.load %arg1[%104] : memref<16xi32, #tpu.memory_space<smem>>
      %c7_i32_59 = arith.constant 7 : i32
      %106 = arith.addi %16, %c7_i32_59 : i32
      %c7_i32_60 = arith.constant 7 : i32
      %107 = arith.addi %18, %c7_i32_60 : i32
      %c0_i32_61 = arith.constant 0 : i32
      %108 = tpu.memref_slice %arg2[%105, %c0_i32_61] : memref<100x32xf32, #tpu.memory_space<any>> -> memref<1x32xf32, #tpu.memory_space<any>>
      %c0_i32_62 = arith.constant 0 : i32
      %109 = tpu.memref_slice %arg4[%106, %c0_i32_62] : memref<32x32xf32, #tpu.memory_space<vmem>> -> memref<1x32xf32, #tpu.memory_space<vmem>>
      %110 = tpu.memref_slice %arg5[%107] : memref<32x!tpu.dma_semaphore, #tpu.memory_space<semaphore_mem>> -> memref<1x!tpu.dma_semaphore, #tpu.memory_space<semaphore_mem>>
      %111 = tpu.memref_squeeze %110 : memref<1x!tpu.dma_semaphore, #tpu.memory_space<semaphore_mem>> -> memref<!tpu.dma_semaphore, #tpu.memory_space<semaphore_mem>>
      tpu.enqueue_dma source(%108 : memref<1x32xf32, #tpu.memory_space<any>>) target(%109 : memref<1x32xf32, #tpu.memory_space<vmem>>) target_semaphore(%111 : memref<!tpu.dma_semaphore, #tpu.memory_space<semaphore_mem>>)
      %c16_i32_63 = arith.constant 16 : i32
      %112 = arith.addi %0, %c16_i32_63 : i32
      %c8_i32 = arith.constant 8 : i32
      %113 = arith.addi %112, %c8_i32 : i32
      %114 = arith.index_cast %113 : i32 to index
      %115 = memref.load %arg1[%114] : memref<16xi32, #tpu.memory_space<smem>>
      %c8_i32_64 = arith.constant 8 : i32
      %116 = arith.addi %16, %c8_i32_64 : i32
      %c8_i32_65 = arith.constant 8 : i32
      %117 = arith.addi %18, %c8_i32_65 : i32
      %c0_i32_66 = arith.constant 0 : i32
      %118 = tpu.memref_slice %arg2[%115, %c0_i32_66] : memref<100x32xf32, #tpu.memory_space<any>> -> memref<1x32xf32, #tpu.memory_space<any>>
      %c0_i32_67 = arith.constant 0 : i32
      %119 = tpu.memref_slice %arg4[%116, %c0_i32_67] : memref<32x32xf32, #tpu.memory_space<vmem>> -> memref<1x32xf32, #tpu.memory_space<vmem>>
      %120 = tpu.memref_slice %arg5[%117] : memref<32x!tpu.dma_semaphore, #tpu.memory_space<semaphore_mem>> -> memref<1x!tpu.dma_semaphore, #tpu.memory_space<semaphore_mem>>
      %121 = tpu.memref_squeeze %120 : memref<1x!tpu.dma_semaphore, #tpu.memory_space<semaphore_mem>> -> memref<!tpu.dma_semaphore, #tpu.memory_space<semaphore_mem>>
      tpu.enqueue_dma source(%118 : memref<1x32xf32, #tpu.memory_space<any>>) target(%119 : memref<1x32xf32, #tpu.memory_space<vmem>>) target_semaphore(%121 : memref<!tpu.dma_semaphore, #tpu.memory_space<semaphore_mem>>)
      %c16_i32_68 = arith.constant 16 : i32
      %122 = arith.addi %0, %c16_i32_68 : i32
      %c9_i32 = arith.constant 9 : i32
      %123 = arith.addi %122, %c9_i32 : i32
      %124 = arith.index_cast %123 : i32 to index
      %125 = memref.load %arg1[%124] : memref<16xi32, #tpu.memory_space<smem>>
      %c9_i32_69 = arith.constant 9 : i32
      %126 = arith.addi %16, %c9_i32_69 : i32
      %c9_i32_70 = arith.constant 9 : i32
      %127 = arith.addi %18, %c9_i32_70 : i32
      %c0_i32_71 = arith.constant 0 : i32
      %128 = tpu.memref_slice %arg2[%125, %c0_i32_71] : memref<100x32xf32, #tpu.memory_space<any>> -> memref<1x32xf32, #tpu.memory_space<any>>
      %c0_i32_72 = arith.constant 0 : i32
      %129 = tpu.memref_slice %arg4[%126, %c0_i32_72] : memref<32x32xf32, #tpu.memory_space<vmem>> -> memref<1x32xf32, #tpu.memory_space<vmem>>
      %130 = tpu.memref_slice %arg5[%127] : memref<32x!tpu.dma_semaphore, #tpu.memory_space<semaphore_mem>> -> memref<1x!tpu.dma_semaphore, #tpu.memory_space<semaphore_mem>>
      %131 = tpu.memref_squeeze %130 : memref<1x!tpu.dma_semaphore, #tpu.memory_space<semaphore_mem>> -> memref<!tpu.dma_semaphore, #tpu.memory_space<semaphore_mem>>
      tpu.enqueue_dma source(%128 : memref<1x32xf32, #tpu.memory_space<any>>) target(%129 : memref<1x32xf32, #tpu.memory_space<vmem>>) target_semaphore(%131 : memref<!tpu.dma_semaphore, #tpu.memory_space<semaphore_mem>>)
      %c16_i32_73 = arith.constant 16 : i32
      %132 = arith.addi %0, %c16_i32_73 : i32
      %c10_i32 = arith.constant 10 : i32
      %133 = arith.addi %132, %c10_i32 : i32
      %134 = arith.index_cast %133 : i32 to index
      %135 = memref.load %arg1[%134] : memref<16xi32, #tpu.memory_space<smem>>
      %c10_i32_74 = arith.constant 10 : i32
      %136 = arith.addi %16, %c10_i32_74 : i32
      %c10_i32_75 = arith.constant 10 : i32
      %137 = arith.addi %18, %c10_i32_75 : i32
      %c0_i32_76 = arith.constant 0 : i32
      %138 = tpu.memref_slice %arg2[%135, %c0_i32_76] : memref<100x32xf32, #tpu.memory_space<any>> -> memref<1x32xf32, #tpu.memory_space<any>>
      %c0_i32_77 = arith.constant 0 : i32
      %139 = tpu.memref_slice %arg4[%136, %c0_i32_77] : memref<32x32xf32, #tpu.memory_space<vmem>> -> memref<1x32xf32, #tpu.memory_space<vmem>>
      %140 = tpu.memref_slice %arg5[%137] : memref<32x!tpu.dma_semaphore, #tpu.memory_space<semaphore_mem>> -> memref<1x!tpu.dma_semaphore, #tpu.memory_space<semaphore_mem>>
      %141 = tpu.memref_squeeze %140 : memref<1x!tpu.dma_semaphore, #tpu.memory_space<semaphore_mem>> -> memref<!tpu.dma_semaphore, #tpu.memory_space<semaphore_mem>>
      tpu.enqueue_dma source(%138 : memref<1x32xf32, #tpu.memory_space<any>>) target(%139 : memref<1x32xf32, #tpu.memory_space<vmem>>) target_semaphore(%141 : memref<!tpu.dma_semaphore, #tpu.memory_space<semaphore_mem>>)
      %c16_i32_78 = arith.constant 16 : i32
      %142 = arith.addi %0, %c16_i32_78 : i32
      %c11_i32 = arith.constant 11 : i32
      %143 = arith.addi %142, %c11_i32 : i32
      %144 = arith.index_cast %143 : i32 to index
      %145 = memref.load %arg1[%144] : memref<16xi32, #tpu.memory_space<smem>>
      %c11_i32_79 = arith.constant 11 : i32
      %146 = arith.addi %16, %c11_i32_79 : i32
      %c11_i32_80 = arith.constant 11 : i32
      %147 = arith.addi %18, %c11_i32_80 : i32
      %c0_i32_81 = arith.constant 0 : i32
      %148 = tpu.memref_slice %arg2[%145, %c0_i32_81] : memref<100x32xf32, #tpu.memory_space<any>> -> memref<1x32xf32, #tpu.memory_space<any>>
      %c0_i32_82 = arith.constant 0 : i32
      %149 = tpu.memref_slice %arg4[%146, %c0_i32_82] : memref<32x32xf32, #tpu.memory_space<vmem>> -> memref<1x32xf32, #tpu.memory_space<vmem>>
      %150 = tpu.memref_slice %arg5[%147] : memref<32x!tpu.dma_semaphore, #tpu.memory_space<semaphore_mem>> -> memref<1x!tpu.dma_semaphore, #tpu.memory_space<semaphore_mem>>
      %151 = tpu.memref_squeeze %150 : memref<1x!tpu.dma_semaphore, #tpu.memory_space<semaphore_mem>> -> memref<!tpu.dma_semaphore, #tpu.memory_space<semaphore_mem>>
      tpu.enqueue_dma source(%148 : memref<1x32xf32, #tpu.memory_space<any>>) target(%149 : memref<1x32xf32, #tpu.memory_space<vmem>>) target_semaphore(%151 : memref<!tpu.dma_semaphore, #tpu.memory_space<semaphore_mem>>)
      %c16_i32_83 = arith.constant 16 : i32
      %152 = arith.addi %0, %c16_i32_83 : i32
      %c12_i32 = arith.constant 12 : i32
      %153 = arith.addi %152, %c12_i32 : i32
      %154 = arith.index_cast %153 : i32 to index
      %155 = memref.load %arg1[%154] : memref<16xi32, #tpu.memory_space<smem>>
      %c12_i32_84 = arith.constant 12 : i32
      %156 = arith.addi %16, %c12_i32_84 : i32
      %c12_i32_85 = arith.constant 12 : i32
      %157 = arith.addi %18, %c12_i32_85 : i32
      %c0_i32_86 = arith.constant 0 : i32
      %158 = tpu.memref_slice %arg2[%155, %c0_i32_86] : memref<100x32xf32, #tpu.memory_space<any>> -> memref<1x32xf32, #tpu.memory_space<any>>
      %c0_i32_87 = arith.constant 0 : i32
      %159 = tpu.memref_slice %arg4[%156, %c0_i32_87] : memref<32x32xf32, #tpu.memory_space<vmem>> -> memref<1x32xf32, #tpu.memory_space<vmem>>
      %160 = tpu.memref_slice %arg5[%157] : memref<32x!tpu.dma_semaphore, #tpu.memory_space<semaphore_mem>> -> memref<1x!tpu.dma_semaphore, #tpu.memory_space<semaphore_mem>>
      %161 = tpu.memref_squeeze %160 : memref<1x!tpu.dma_semaphore, #tpu.memory_space<semaphore_mem>> -> memref<!tpu.dma_semaphore, #tpu.memory_space<semaphore_mem>>
      tpu.enqueue_dma source(%158 : memref<1x32xf32, #tpu.memory_space<any>>) target(%159 : memref<1x32xf32, #tpu.memory_space<vmem>>) target_semaphore(%161 : memref<!tpu.dma_semaphore, #tpu.memory_space<semaphore_mem>>)
      %c16_i32_88 = arith.constant 16 : i32
      %162 = arith.addi %0, %c16_i32_88 : i32
      %c13_i32 = arith.constant 13 : i32
      %163 = arith.addi %162, %c13_i32 : i32
      %164 = arith.index_cast %163 : i32 to index
      %165 = memref.load %arg1[%164] : memref<16xi32, #tpu.memory_space<smem>>
      %c13_i32_89 = arith.constant 13 : i32
      %166 = arith.addi %16, %c13_i32_89 : i32
      %c13_i32_90 = arith.constant 13 : i32
      %167 = arith.addi %18, %c13_i32_90 : i32
      %c0_i32_91 = arith.constant 0 : i32
      %168 = tpu.memref_slice %arg2[%165, %c0_i32_91] : memref<100x32xf32, #tpu.memory_space<any>> -> memref<1x32xf32, #tpu.memory_space<any>>
      %c0_i32_92 = arith.constant 0 : i32
      %169 = tpu.memref_slice %arg4[%166, %c0_i32_92] : memref<32x32xf32, #tpu.memory_space<vmem>> -> memref<1x32xf32, #tpu.memory_space<vmem>>
      %170 = tpu.memref_slice %arg5[%167] : memref<32x!tpu.dma_semaphore, #tpu.memory_space<semaphore_mem>> -> memref<1x!tpu.dma_semaphore, #tpu.memory_space<semaphore_mem>>
      %171 = tpu.memref_squeeze %170 : memref<1x!tpu.dma_semaphore, #tpu.memory_space<semaphore_mem>> -> memref<!tpu.dma_semaphore, #tpu.memory_space<semaphore_mem>>
      tpu.enqueue_dma source(%168 : memref<1x32xf32, #tpu.memory_space<any>>) target(%169 : memref<1x32xf32, #tpu.memory_space<vmem>>) target_semaphore(%171 : memref<!tpu.dma_semaphore, #tpu.memory_space<semaphore_mem>>)
      %c16_i32_93 = arith.constant 16 : i32
      %172 = arith.addi %0, %c16_i32_93 : i32
      %c14_i32 = arith.constant 14 : i32
      %173 = arith.addi %172, %c14_i32 : i32
      %174 = arith.index_cast %173 : i32 to index
      %175 = memref.load %arg1[%174] : memref<16xi32, #tpu.memory_space<smem>>
      %c14_i32_94 = arith.constant 14 : i32
      %176 = arith.addi %16, %c14_i32_94 : i32
      %c14_i32_95 = arith.constant 14 : i32
      %177 = arith.addi %18, %c14_i32_95 : i32
      %c0_i32_96 = arith.constant 0 : i32
      %178 = tpu.memref_slice %arg2[%175, %c0_i32_96] : memref<100x32xf32, #tpu.memory_space<any>> -> memref<1x32xf32, #tpu.memory_space<any>>
      %c0_i32_97 = arith.constant 0 : i32
      %179 = tpu.memref_slice %arg4[%176, %c0_i32_97] : memref<32x32xf32, #tpu.memory_space<vmem>> -> memref<1x32xf32, #tpu.memory_space<vmem>>
      %180 = tpu.memref_slice %arg5[%177] : memref<32x!tpu.dma_semaphore, #tpu.memory_space<semaphore_mem>> -> memref<1x!tpu.dma_semaphore, #tpu.memory_space<semaphore_mem>>
      %181 = tpu.memref_squeeze %180 : memref<1x!tpu.dma_semaphore, #tpu.memory_space<semaphore_mem>> -> memref<!tpu.dma_semaphore, #tpu.memory_space<semaphore_mem>>
      tpu.enqueue_dma source(%178 : memref<1x32xf32, #tpu.memory_space<any>>) target(%179 : memref<1x32xf32, #tpu.memory_space<vmem>>) target_semaphore(%181 : memref<!tpu.dma_semaphore, #tpu.memory_space<semaphore_mem>>)
      %c16_i32_98 = arith.constant 16 : i32
      %182 = arith.addi %0, %c16_i32_98 : i32
      %c15_i32 = arith.constant 15 : i32
      %183 = arith.addi %182, %c15_i32 : i32
      %184 = arith.index_cast %183 : i32 to index
      %185 = memref.load %arg1[%184] : memref<16xi32, #tpu.memory_space<smem>>
      %c15_i32_99 = arith.constant 15 : i32
      %186 = arith.addi %16, %c15_i32_99 : i32
      %c15_i32_100 = arith.constant 15 : i32
      %187 = arith.addi %18, %c15_i32_100 : i32
      %c0_i32_101 = arith.constant 0 : i32
      %188 = tpu.memref_slice %arg2[%185, %c0_i32_101] : memref<100x32xf32, #tpu.memory_space<any>> -> memref<1x32xf32, #tpu.memory_space<any>>
      %c0_i32_102 = arith.constant 0 : i32
      %189 = tpu.memref_slice %arg4[%186, %c0_i32_102] : memref<32x32xf32, #tpu.memory_space<vmem>> -> memref<1x32xf32, #tpu.memory_space<vmem>>
      %190 = tpu.memref_slice %arg5[%187] : memref<32x!tpu.dma_semaphore, #tpu.memory_space<semaphore_mem>> -> memref<1x!tpu.dma_semaphore, #tpu.memory_space<semaphore_mem>>
      %191 = tpu.memref_squeeze %190 : memref<1x!tpu.dma_semaphore, #tpu.memory_space<semaphore_mem>> -> memref<!tpu.dma_semaphore, #tpu.memory_space<semaphore_mem>>
      tpu.enqueue_dma source(%188 : memref<1x32xf32, #tpu.memory_space<any>>) target(%189 : memref<1x32xf32, #tpu.memory_space<vmem>>) target_semaphore(%191 : memref<!tpu.dma_semaphore, #tpu.memory_space<semaphore_mem>>)
    } else {
    }
    return
  }
  func.func @transform_1(%arg0: i32, %arg1: memref<16xi32, #tpu.memory_space<smem>>) -> (i32, i32) {
    %c0_i32 = arith.constant 0 : i32
    %c0_i32_0 = arith.constant 0 : i32
    return %arg0, %c0_i32 : i32, i32
  }
}

</mosaic_0001>

<llo_original>
// kernel: tpu_custom_call.1
$region0: #{tpu_custom_call.1}
  #allocation0 [shape = 'u32[]', space=smem, size = 0x4, offset = 0x4, fixed_abs, tag = 'smem constant byte address 0x4 - core index']
  #allocation1 [shape = 'u32[144,128]{1,0:T(1,128)}', space=vmem, size = 0x12000, scoped, tag = 'internal scratch']
  #allocation2 [shape = 'f32[32,32]{1,0:T(8,128)}', space=vmem, size = 0x4000, scoped, tag = 'scratch operand']
  #allocation3 [shape = 's32[32]{0}', space=sflag, size = 0x80, scoped, tag = 'scratch operand']
  #allocation4 [shape = 's32[1]{0}', space=sflag, size = 0x4, scoped, tag = 'scoped memory for tpu_custom_call.1']
  #allocation5 [shape = 'u8[512]{0}', space=smem, size = 0x200, scoped, tag = 'prefetched SMEM operand 0']
  #allocation8 [shape = 's32[]', space=sflag, size = 0x4, offset = 0, fixed_abs, tag = 'sflag constant byte address 0x0 - dummy sync flag']
  #allocation9 [shape = 's32[]', space=sflag, size = 0x4, offset = 0, fixed_abs, tag = 'sflag constant byte address 0x0 - dummy sync flag']
  #allocation10 [shape = 's32[]', space=sflag, size = 0x4, offset = 0, fixed_abs, tag = 'sflag constant byte address 0x0 - dummy sync flag']
  #allocation11 [shape = 's32[]', space=sflag, size = 0x4, offset = 0, fixed_abs, tag = 'sflag constant byte address 0x0 - dummy sync flag']
  #allocation12 [shape = 's32[]', space=sflag, size = 0x4, offset = 0, fixed_abs, tag = 'sflag constant byte address 0x0 - dummy sync flag']
  #allocation13 [shape = 's32[]', space=sflag, size = 0x4, offset = 0, fixed_abs, tag = 'sflag constant byte address 0x0 - dummy sync flag']
  #allocation14 [shape = 's32[]', space=sflag, size = 0x4, offset = 0, fixed_abs, tag = 'sflag constant byte address 0x0 - dummy sync flag']
  #allocation15 [shape = 's32[]', space=sflag, size = 0x4, offset = 0, fixed_abs, tag = 'sflag constant byte address 0x0 - dummy sync flag']
  #allocation16 [shape = 's32[]', space=sflag, size = 0x4, offset = 0, fixed_abs, tag = 'sflag constant byte address 0x0 - dummy sync flag']
  #allocation17 [shape = 's32[]', space=sflag, size = 0x4, offset = 0, fixed_abs, tag = 'sflag constant byte address 0x0 - dummy sync flag']
  #allocation18 [shape = 's32[]', space=sflag, size = 0x4, offset = 0, fixed_abs, tag = 'sflag constant byte address 0x0 - dummy sync flag']
  #allocation19 [shape = 's32[]', space=sflag, size = 0x4, offset = 0, fixed_abs, tag = 'sflag constant byte address 0x0 - dummy sync flag']
  #allocation20 [shape = 's32[]', space=sflag, size = 0x4, offset = 0, fixed_abs, tag = 'sflag constant byte address 0x0 - dummy sync flag']
  #allocation21 [shape = 's32[]', space=sflag, size = 0x4, offset = 0, fixed_abs, tag = 'sflag constant byte address 0x0 - dummy sync flag']
  #allocation22 [shape = 's32[]', space=sflag, size = 0x4, offset = 0, fixed_abs, tag = 'sflag constant byte address 0x0 - dummy sync flag']
  #allocation23 [shape = 's32[]', space=sflag, size = 0x4, offset = 0, fixed_abs, tag = 'sflag constant byte address 0x0 - dummy sync flag']
  #allocation24 [shape = 's32[]', space=sflag, size = 0x4, offset = 0, fixed_abs, tag = 'sflag constant byte address 0x0 - dummy sync flag']
  #allocation25 [shape = 's32[]', space=sflag, size = 0x4, offset = 0, fixed_abs, tag = 'sflag constant byte address 0x0 - dummy sync flag']
  #allocation26 [shape = 's32[]', space=sflag, size = 0x4, offset = 0, fixed_abs, tag = 'sflag constant byte address 0x0 - dummy sync flag']
  #allocation27 [shape = 's32[]', space=sflag, size = 0x4, offset = 0, fixed_abs, tag = 'sflag constant byte address 0x0 - dummy sync flag']
  #allocation28 [shape = 's32[]', space=sflag, size = 0x4, offset = 0, fixed_abs, tag = 'sflag constant byte address 0x0 - dummy sync flag']
  #allocation29 [shape = 's32[]', space=sflag, size = 0x4, offset = 0, fixed_abs, tag = 'sflag constant byte address 0x0 - dummy sync flag']
  #allocation30 [shape = 's32[]', space=sflag, size = 0x4, offset = 0, fixed_abs, tag = 'sflag constant byte address 0x0 - dummy sync flag']
  #allocation31 [shape = 's32[]', space=sflag, size = 0x4, offset = 0, fixed_abs, tag = 'sflag constant byte address 0x0 - dummy sync flag']
  #allocation32 [shape = 's32[]', space=sflag, size = 0x4, offset = 0, fixed_abs, tag = 'sflag constant byte address 0x0 - dummy sync flag']
  #allocation33 [shape = 's32[]', space=sflag, size = 0x4, offset = 0, fixed_abs, tag = 'sflag constant byte address 0x0 - dummy sync flag']
  #allocation34 [shape = 's32[]', space=sflag, size = 0x4, offset = 0, fixed_abs, tag = 'sflag constant byte address 0x0 - dummy sync flag']
  #allocation35 [shape = 's32[]', space=sflag, size = 0x4, offset = 0, fixed_abs, tag = 'sflag constant byte address 0x0 - dummy sync flag']
  #allocation36 [shape = 's32[]', space=sflag, size = 0x4, offset = 0, fixed_abs, tag = 'sflag constant byte address 0x0 - dummy sync flag']
  #allocation37 [shape = 's32[]', space=sflag, size = 0x4, offset = 0, fixed_abs, tag = 'sflag constant byte address 0x0 - dummy sync flag']
  #allocation38 [shape = 's32[]', space=sflag, size = 0x4, offset = 0, fixed_abs, tag = 'sflag constant byte address 0x0 - dummy sync flag']
  #allocation39 [shape = 's32[]', space=sflag, size = 0x4, offset = 0, fixed_abs, tag = 'sflag constant byte address 0x0 - dummy sync flag']
  #allocation40 [shape = 's32[]', space=sflag, size = 0x4, offset = 0, fixed_abs, tag = 'sflag constant byte address 0x0 - dummy sync flag']
  %s0 = inlined_call_operand.vmem [shape: s32[16], index: 0, kind: input, shape index: {}]
  %s1 = inlined_call_operand.vmem [shape: f32[100,32], index: 1, kind: input, shape index: {}]
  %s2 = inlined_call_operand.hbm [shape: f32[16,32], index: 2, kind: output, shape index: {}]
  %s3 = sld [smem:[#allocation0]]
  $region1019: #{tpu_custom_call.1} parent=0
    _
  %s5 = ssub.s32 1, %s3
  %s6 = scalar_select 0, %s5, %s3
  %s7 = sshll.u32 %s0, 4
  %s8 = int_to_ptr.vmem [resolvable:$true] %s7
  %10 = dma.vmem_to_smem %s8, 16, [#allocation5], [#allocation4]
  %11 = dma.done [#allocation4], 16
  %12 = sfence
  $region1: #{tpu_custom_call.1} parent=0
    #allocation6 [shape = 'u8[8192]{0}', space=vmem, size = 0x2000, scoped, tag = 'output window, operand 0, single buffered']
    #allocation7 [shape = 's32[1]{0}', space=sflag, size = 0x4, scoped, tag = 'scoped memory for tpu_custom_call.1']
    %13 = vsyncpa [#allocation7], 0
    %s14 = smul.u32 0, 16
    %s15 = ssub.s32 0, 0
    %s16 = ssub.s32 0, 0
    %p17 = scmp.ne.s32.totalorder 0, 0
    %p18 = scmp.lt.s32.totalorder 0, 0
    %p19 = pnand %p18, %p17
    %p20 = pneg %p19
    %s21 = sadd.s32 0, 2
    %s22 = scalar_select %p20, %s21, 0
    %s23 = smul.u32 %s22, 16
    %s24 = ssub.s32 1, %s22
    %s25 = smul.u32 %s24, 16
    %p26 = scmp.eq.s32.totalorder 0, 0
    // Predicated region
    $region2: #{tpu_custom_call.1} parent=1 // pred_check
      %p27 = pneg %p26
    $region3: #{tpu_custom_call.1} parent=1 // pred_check_branch
      %29 = sbr.rel (%p27) target = $region5
    $region4: #{tpu_custom_call.1} parent=1 // pred_region
      %s30 = sld [smem:[#allocation5 + %s14]]
      %s31 = scalar_lea.vmem %s1, %s30
      %s32 = scalar_lea.vmem [#allocation2], %s23
      %s33 = scalar_lea.sflag [#allocation3], %s23
      %p35 = scmp.lt.u32.totalorder 1, 8
      %p36 = pneg %p35
      // Predicated region
      $region6: #{tpu_custom_call.1} parent=4 // pred_check
        _
      $region7: #{tpu_custom_call.1} parent=4 // pred_check_branch
        %38 = sbr.rel (%p35) target = $region9
      $region8: #{tpu_custom_call.1} parent=4 // pred_region
        %s53 = sand.u32 1, 7
        %p54 = scmp.eq.s32.totalorder %s53, 0
        %p55 = pneg %p54
        // Predicated region
        $region21: #{tpu_custom_call.1} parent=8 // pred_check
          _
        $region22: #{tpu_custom_call.1} parent=8 // pred_check_branch
          %57 = sbr.rel (%p54) target = $region24
        $region23: #{tpu_custom_call.1} parent=8 // pred_region
          %s58 = sand.u32 1, 7
          %s59 = ssub.s32 1, %s58
          %s60 = scalar_lea.vmem %s31, %s59
          %s61 = ssub.s32 1, %s58
          %s62 = scalar_lea.vmem %s32, %s61 [#allocation2]
          %s63 = sshllo.u32 0, %s58
          loop: start=0, step=1, limit=1
          $region25: #{tpu_custom_call.1} parent=23 // loop_pre_header
            _
          $region26: #{tpu_custom_call.1} parent=23 // loop_header
            %s65 = sphi 0, %s69
            %p66 = scmp.ge.s32.totalorder %s65, 1
            %s70 = sphi %s60, %s60
            %s71 = sphi %s62, %s62
          $region27: #{tpu_custom_call.1} parent=23 // loop_header_branch
            %68 = sbr.rel (%p66) target = $region31
          $region28: #{tpu_custom_call.1} parent=23 // loop_body
            %v72 = vld [vmem:[%s70] sm:%s63]
            %73 = vst [vmem:[%s71] sm:%s63] %v72
          $region29: #{tpu_custom_call.1} parent=23 // loop_footer
            %s69 = sadd.s32 1, %s65
          $region30: #{tpu_custom_call.1} parent=23 // loop_footer_branch
            %64 = sbr.rel target = $region26
          $region31: #{tpu_custom_call.1} parent=23 // loop_exit
            _
        $region24: #{tpu_custom_call.1} parent=8 // pred_fallthru
          _
      $region9: #{tpu_custom_call.1} parent=4 // pred_fallthru
        _
      // Predicated region
      $region10: #{tpu_custom_call.1} parent=4 // pred_check
        %p39 = pneg %p35
      $region11: #{tpu_custom_call.1} parent=4 // pred_check_branch
        %41 = sbr.rel (%p39) target = $region13
      $region12: #{tpu_custom_call.1} parent=4 // pred_region
        %s42 = sshllo.u32 0, 1
        loop: start=0, step=1, limit=1
        $region14: #{tpu_custom_call.1} parent=12 // loop_pre_header
          _
        $region15: #{tpu_custom_call.1} parent=12 // loop_header
          %s44 = sphi 0, %s48
          %p45 = scmp.ge.s32.totalorder %s44, 1
          %s49 = sphi %s31, %s31
          %s50 = sphi %s32, %s32
        $region16: #{tpu_custom_call.1} parent=12 // loop_header_branch
          %47 = sbr.rel (%p45) target = $region20
        $region17: #{tpu_custom_call.1} parent=12 // loop_body
          %v51 = vld [vmem:[%s49] sm:%s42]
          %52 = vst [vmem:[%s50] sm:%s42] %v51
        $region18: #{tpu_custom_call.1} parent=12 // loop_footer
          %s48 = sadd.s32 1, %s44
        $region19: #{tpu_custom_call.1} parent=12 // loop_footer_branch
          %43 = sbr.rel target = $region15
        $region20: #{tpu_custom_call.1} parent=12 // loop_exit
          _
      $region13: #{tpu_custom_call.1} parent=4 // pred_fallthru
        _
      // Predicated region
      $region32: #{tpu_custom_call.1} parent=4 // pred_check
        _
      $region33: #{tpu_custom_call.1} parent=4 // pred_check_branch
        %76 = sbr.rel (0) target = $region35
      $region34: #{tpu_custom_call.1} parent=4 // pred_region
        %77 = vsyncadd %s33, 16
      $region35: #{tpu_custom_call.1} parent=4 // pred_fallthru
        _
      %s78 = sadd.s32 %s14, 1
      %s79 = sld [smem:[#allocation5 + %s78]]
      %s80 = sadd.s32 %s23, 1
      %s81 = sadd.s32 %s23, 1
      %s82 = scalar_lea.vmem %s1, %s79
      %s83 = scalar_lea.vmem [#allocation2], %s80
      %s84 = scalar_lea.sflag [#allocation3], %s81
      %p86 = scmp.lt.u32.totalorder 1, 8
      %p87 = pneg %p86
      // Predicated region
      $region36: #{tpu_custom_call.1} parent=4 // pred_check
        _
      $region37: #{tpu_custom_call.1} parent=4 // pred_check_branch
        %89 = sbr.rel (%p86) target = $region39
      $region38: #{tpu_custom_call.1} parent=4 // pred_region
        %s104 = sand.u32 1, 7
        %p105 = scmp.eq.s32.totalorder %s104, 0
        %p106 = pneg %p105
        // Predicated region
        $region51: #{tpu_custom_call.1} parent=38 // pred_check
          _
        $region52: #{tpu_custom_call.1} parent=38 // pred_check_branch
          %108 = sbr.rel (%p105) target = $region54
        $region53: #{tpu_custom_call.1} parent=38 // pred_region
          %s109 = sand.u32 1, 7
          %s110 = ssub.s32 1, %s109
          %s111 = scalar_lea.vmem %s82, %s110
          %s112 = ssub.s32 1, %s109
          %s113 = scalar_lea.vmem %s83, %s112 [#allocation2]
          %s114 = sshllo.u32 0, %s109
          loop: start=0, step=1, limit=1
          $region55: #{tpu_custom_call.1} parent=53 // loop_pre_header
            _
          $region56: #{tpu_custom_call.1} parent=53 // loop_header
            %s116 = sphi 0, %s120
            %p117 = scmp.ge.s32.totalorder %s116, 1
            %s121 = sphi %s111, %s111
            %s122 = sphi %s113, %s113
          $region57: #{tpu_custom_call.1} parent=53 // loop_header_branch
            %119 = sbr.rel (%p117) target = $region61
          $region58: #{tpu_custom_call.1} parent=53 // loop_body
            %v123 = vld [vmem:[%s121] sm:%s114]
            %124 = vst [vmem:[%s122] sm:%s114] %v123
          $region59: #{tpu_custom_call.1} parent=53 // loop_footer
            %s120 = sadd.s32 1, %s116
          $region60: #{tpu_custom_call.1} parent=53 // loop_footer_branch
            %115 = sbr.rel target = $region56
          $region61: #{tpu_custom_call.1} parent=53 // loop_exit
            _
        $region54: #{tpu_custom_call.1} parent=38 // pred_fallthru
          _
      $region39: #{tpu_custom_call.1} parent=4 // pred_fallthru
        _
      // Predicated region
      $region40: #{tpu_custom_call.1} parent=4 // pred_check
        %p90 = pneg %p86
      $region41: #{tpu_custom_call.1} parent=4 // pred_check_branch
        %92 = sbr.rel (%p90) target = $region43
      $region42: #{tpu_custom_call.1} parent=4 // pred_region
        %s93 = sshllo.u32 0, 1
        loop: start=0, step=1, limit=1
        $region44: #{tpu_custom_call.1} parent=42 // loop_pre_header
          _
        $region45: #{tpu_custom_call.1} parent=42 // loop_header
          %s95 = sphi 0, %s99
          %p96 = scmp.ge.s32.totalorder %s95, 1
          %s100 = sphi %s82, %s82
          %s101 = sphi %s83, %s83
        $region46: #{tpu_custom_call.1} parent=42 // loop_header_branch
          %98 = sbr.rel (%p96) target = $region50
        $region47: #{tpu_custom_call.1} parent=42 // loop_body
          %v102 = vld [vmem:[%s100] sm:%s93]
          %103 = vst [vmem:[%s101] sm:%s93] %v102
        $region48: #{tpu_custom_call.1} parent=42 // loop_footer
          %s99 = sadd.s32 1, %s95
        $region49: #{tpu_custom_call.1} parent=42 // loop_footer_branch
          %94 = sbr.rel target = $region45
        $region50: #{tpu_custom_call.1} parent=42 // loop_exit
          _
      $region43: #{tpu_custom_call.1} parent=4 // pred_fallthru
        _
      // Predicated region
      $region62: #{tpu_custom_call.1} parent=4 // pred_check
        _
      $region63: #{tpu_custom_call.1} parent=4 // pred_check_branch
        %127 = sbr.rel (0) target = $region65
      $region64: #{tpu_custom_call.1} parent=4 // pred_region
        %128 = vsyncadd %s84, 16
      $region65: #{tpu_custom_call.1} parent=4 // pred_fallthru
        _
      %s129 = sadd.s32 %s14, 2
      %s130 = sld [smem:[#allocation5 + %s129]]
      %s131 = sadd.s32 %s23, 2
      %s132 = sadd.s32 %s23, 2
      %s133 = scalar_lea.vmem %s1, %s130
      %s134 = scalar_lea.vmem [#allocation2], %s131
      %s135 = scalar_lea.sflag [#allocation3], %s132
      %p137 = scmp.lt.u32.totalorder 1, 8
      %p138 = pneg %p137
      // Predicated region
      $region66: #{tpu_custom_call.1} parent=4 // pred_check
        _
      $region67: #{tpu_custom_call.1} parent=4 // pred_check_branch
        %140 = sbr.rel (%p137) target = $region69
      $region68: #{tpu_custom_call.1} parent=4 // pred_region
        %s155 = sand.u32 1, 7
        %p156 = scmp.eq.s32.totalorder %s155, 0
        %p157 = pneg %p156
        // Predicated region
        $region81: #{tpu_custom_call.1} parent=68 // pred_check
          _
        $region82: #{tpu_custom_call.1} parent=68 // pred_check_branch
          %159 = sbr.rel (%p156) target = $region84
        $region83: #{tpu_custom_call.1} parent=68 // pred_region
          %s160 = sand.u32 1, 7
          %s161 = ssub.s32 1, %s160
          %s162 = scalar_lea.vmem %s133, %s161
          %s163 = ssub.s32 1, %s160
          %s164 = scalar_lea.vmem %s134, %s163 [#allocation2]
          %s165 = sshllo.u32 0, %s160
          loop: start=0, step=1, limit=1
          $region85: #{tpu_custom_call.1} parent=83 // loop_pre_header
            _
          $region86: #{tpu_custom_call.1} parent=83 // loop_header
            %s167 = sphi 0, %s171
            %p168 = scmp.ge.s32.totalorder %s167, 1
            %s172 = sphi %s162, %s162
            %s173 = sphi %s164, %s164
          $region87: #{tpu_custom_call.1} parent=83 // loop_header_branch
            %170 = sbr.rel (%p168) target = $region91
          $region88: #{tpu_custom_call.1} parent=83 // loop_body
            %v174 = vld [vmem:[%s172] sm:%s165]
            %175 = vst [vmem:[%s173] sm:%s165] %v174
          $region89: #{tpu_custom_call.1} parent=83 // loop_footer
            %s171 = sadd.s32 1, %s167
          $region90: #{tpu_custom_call.1} parent=83 // loop_footer_branch
            %166 = sbr.rel target = $region86
          $region91: #{tpu_custom_call.1} parent=83 // loop_exit
            _
        $region84: #{tpu_custom_call.1} parent=68 // pred_fallthru
          _
      $region69: #{tpu_custom_call.1} parent=4 // pred_fallthru
        _
      // Predicated region
      $region70: #{tpu_custom_call.1} parent=4 // pred_check
        %p141 = pneg %p137
      $region71: #{tpu_custom_call.1} parent=4 // pred_check_branch
        %143 = sbr.rel (%p141) target = $region73
      $region72: #{tpu_custom_call.1} parent=4 // pred_region
        %s144 = sshllo.u32 0, 1
        loop: start=0, step=1, limit=1
        $region74: #{tpu_custom_call.1} parent=72 // loop_pre_header
          _
        $region75: #{tpu_custom_call.1} parent=72 // loop_header
          %s146 = sphi 0, %s150
          %p147 = scmp.ge.s32.totalorder %s146, 1
          %s151 = sphi %s133, %s133
          %s152 = sphi %s134, %s134
        $region76: #{tpu_custom_call.1} parent=72 // loop_header_branch
          %149 = sbr.rel (%p147) target = $region80
        $region77: #{tpu_custom_call.1} parent=72 // loop_body
          %v153 = vld [vmem:[%s151] sm:%s144]
          %154 = vst [vmem:[%s152] sm:%s144] %v153
        $region78: #{tpu_custom_call.1} parent=72 // loop_footer
          %s150 = sadd.s32 1, %s146
        $region79: #{tpu_custom_call.1} parent=72 // loop_footer_branch
          %145 = sbr.rel target = $region75
        $region80: #{tpu_custom_call.1} parent=72 // loop_exit
          _
      $region73: #{tpu_custom_call.1} parent=4 // pred_fallthru
        _
      // Predicated region
      $region92: #{tpu_custom_call.1} parent=4 // pred_check
        _
      $region93: #{tpu_custom_call.1} parent=4 // pred_check_branch
        %178 = sbr.rel (0) target = $region95
      $region94: #{tpu_custom_call.1} parent=4 // pred_region
        %179 = vsyncadd %s135, 16
      $region95: #{tpu_custom_call.1} parent=4 // pred_fallthru
        _
      %s180 = sadd.s32 %s14, 3
      %s181 = sld [smem:[#allocation5 + %s180]]
      %s182 = sadd.s32 %s23, 3
      %s183 = sadd.s32 %s23, 3
      %s184 = scalar_lea.vmem %s1, %s181
      %s185 = scalar_lea.vmem [#allocation2], %s182
      %s186 = scalar_lea.sflag [#allocation3], %s183
      %p188 = scmp.lt.u32.totalorder 1, 8
      %p189 = pneg %p188
      // Predicated region
      $region96: #{tpu_custom_call.1} parent=4 // pred_check
        _
      $region97: #{tpu_custom_call.1} parent=4 // pred_check_branch
        %191 = sbr.rel (%p188) target = $region99
      $region98: #{tpu_custom_call.1} parent=4 // pred_region
        %s206 = sand.u32 1, 7
        %p207 = scmp.eq.s32.totalorder %s206, 0
        %p208 = pneg %p207
        // Predicated region
        $region111: #{tpu_custom_call.1} parent=98 // pred_check
          _
        $region112: #{tpu_custom_call.1} parent=98 // pred_check_branch
          %210 = sbr.rel (%p207) target = $region114
        $region113: #{tpu_custom_call.1} parent=98 // pred_region
          %s211 = sand.u32 1, 7
          %s212 = ssub.s32 1, %s211
          %s213 = scalar_lea.vmem %s184, %s212
          %s214 = ssub.s32 1, %s211
          %s215 = scalar_lea.vmem %s185, %s214 [#allocation2]
          %s216 = sshllo.u32 0, %s211
          loop: start=0, step=1, limit=1
          $region115: #{tpu_custom_call.1} parent=113 // loop_pre_header
            _
          $region116: #{tpu_custom_call.1} parent=113 // loop_header
            %s218 = sphi 0, %s222
            %p219 = scmp.ge.s32.totalorder %s218, 1
            %s223 = sphi %s213, %s213
            %s224 = sphi %s215, %s215
          $region117: #{tpu_custom_call.1} parent=113 // loop_header_branch
            %221 = sbr.rel (%p219) target = $region121
          $region118: #{tpu_custom_call.1} parent=113 // loop_body
            %v225 = vld [vmem:[%s223] sm:%s216]
            %226 = vst [vmem:[%s224] sm:%s216] %v225
          $region119: #{tpu_custom_call.1} parent=113 // loop_footer
            %s222 = sadd.s32 1, %s218
          $region120: #{tpu_custom_call.1} parent=113 // loop_footer_branch
            %217 = sbr.rel target = $region116
          $region121: #{tpu_custom_call.1} parent=113 // loop_exit
            _
        $region114: #{tpu_custom_call.1} parent=98 // pred_fallthru
          _
      $region99: #{tpu_custom_call.1} parent=4 // pred_fallthru
        _
      // Predicated region
      $region100: #{tpu_custom_call.1} parent=4 // pred_check
        %p192 = pneg %p188
      $region101: #{tpu_custom_call.1} parent=4 // pred_check_branch
        %194 = sbr.rel (%p192) target = $region103
      $region102: #{tpu_custom_call.1} parent=4 // pred_region
        %s195 = sshllo.u32 0, 1
        loop: start=0, step=1, limit=1
        $region104: #{tpu_custom_call.1} parent=102 // loop_pre_header
          _
        $region105: #{tpu_custom_call.1} parent=102 // loop_header
          %s197 = sphi 0, %s201
          %p198 = scmp.ge.s32.totalorder %s197, 1
          %s202 = sphi %s184, %s184
          %s203 = sphi %s185, %s185
        $region106: #{tpu_custom_call.1} parent=102 // loop_header_branch
          %200 = sbr.rel (%p198) target = $region110
        $region107: #{tpu_custom_call.1} parent=102 // loop_body
          %v204 = vld [vmem:[%s202] sm:%s195]
          %205 = vst [vmem:[%s203] sm:%s195] %v204
        $region108: #{tpu_custom_call.1} parent=102 // loop_footer
          %s201 = sadd.s32 1, %s197
        $region109: #{tpu_custom_call.1} parent=102 // loop_footer_branch
          %196 = sbr.rel target = $region105
        $region110: #{tpu_custom_call.1} parent=102 // loop_exit
          _
      $region103: #{tpu_custom_call.1} parent=4 // pred_fallthru
        _
      // Predicated region
      $region122: #{tpu_custom_call.1} parent=4 // pred_check
        _
      $region123: #{tpu_custom_call.1} parent=4 // pred_check_branch
        %229 = sbr.rel (0) target = $region125
      $region124: #{tpu_custom_call.1} parent=4 // pred_region
        %230 = vsyncadd %s186, 16
      $region125: #{tpu_custom_call.1} parent=4 // pred_fallthru
        _
      %s231 = sadd.s32 %s14, 4
      %s232 = sld [smem:[#allocation5 + %s231]]
      %s233 = sadd.s32 %s23, 4
      %s234 = sadd.s32 %s23, 4
      %s235 = scalar_lea.vmem %s1, %s232
      %s236 = scalar_lea.vmem [#allocation2], %s233
      %s237 = scalar_lea.sflag [#allocation3], %s234
      %p239 = scmp.lt.u32.totalorder 1, 8
      %p240 = pneg %p239
      // Predicated region
      $region126: #{tpu_custom_call.1} parent=4 // pred_check
        _
      $region127: #{tpu_custom_call.1} parent=4 // pred_check_branch
        %242 = sbr.rel (%p239) target = $region129
      $region128: #{tpu_custom_call.1} parent=4 // pred_region
        %s257 = sand.u32 1, 7
        %p258 = scmp.eq.s32.totalorder %s257, 0
        %p259 = pneg %p258
        // Predicated region
        $region141: #{tpu_custom_call.1} parent=128 // pred_check
          _
        $region142: #{tpu_custom_call.1} parent=128 // pred_check_branch
          %261 = sbr.rel (%p258) target = $region144
        $region143: #{tpu_custom_call.1} parent=128 // pred_region
          %s262 = sand.u32 1, 7
          %s263 = ssub.s32 1, %s262
          %s264 = scalar_lea.vmem %s235, %s263
          %s265 = ssub.s32 1, %s262
          %s266 = scalar_lea.vmem %s236, %s265 [#allocation2]
          %s267 = sshllo.u32 0, %s262
          loop: start=0, step=1, limit=1
          $region145: #{tpu_custom_call.1} parent=143 // loop_pre_header
            _
          $region146: #{tpu_custom_call.1} parent=143 // loop_header
            %s269 = sphi 0, %s273
            %p270 = scmp.ge.s32.totalorder %s269, 1
            %s274 = sphi %s264, %s264
            %s275 = sphi %s266, %s266
          $region147: #{tpu_custom_call.1} parent=143 // loop_header_branch
            %272 = sbr.rel (%p270) target = $region151
          $region148: #{tpu_custom_call.1} parent=143 // loop_body
            %v276 = vld [vmem:[%s274] sm:%s267]
            %277 = vst [vmem:[%s275] sm:%s267] %v276
          $region149: #{tpu_custom_call.1} parent=143 // loop_footer
            %s273 = sadd.s32 1, %s269
          $region150: #{tpu_custom_call.1} parent=143 // loop_footer_branch
            %268 = sbr.rel target = $region146
          $region151: #{tpu_custom_call.1} parent=143 // loop_exit
            _
        $region144: #{tpu_custom_call.1} parent=128 // pred_fallthru
          _
      $region129: #{tpu_custom_call.1} parent=4 // pred_fallthru
        _
      // Predicated region
      $region130: #{tpu_custom_call.1} parent=4 // pred_check
        %p243 = pneg %p239
      $region131: #{tpu_custom_call.1} parent=4 // pred_check_branch
        %245 = sbr.rel (%p243) target = $region133
      $region132: #{tpu_custom_call.1} parent=4 // pred_region
        %s246 = sshllo.u32 0, 1
        loop: start=0, step=1, limit=1
        $region134: #{tpu_custom_call.1} parent=132 // loop_pre_header
          _
        $region135: #{tpu_custom_call.1} parent=132 // loop_header
          %s248 = sphi 0, %s252
          %p249 = scmp.ge.s32.totalorder %s248, 1
          %s253 = sphi %s235, %s235
          %s254 = sphi %s236, %s236
        $region136: #{tpu_custom_call.1} parent=132 // loop_header_branch
          %251 = sbr.rel (%p249) target = $region140
        $region137: #{tpu_custom_call.1} parent=132 // loop_body
          %v255 = vld [vmem:[%s253] sm:%s246]
          %256 = vst [vmem:[%s254] sm:%s246] %v255
        $region138: #{tpu_custom_call.1} parent=132 // loop_footer
          %s252 = sadd.s32 1, %s248
        $region139: #{tpu_custom_call.1} parent=132 // loop_footer_branch
          %247 = sbr.rel target = $region135
        $region140: #{tpu_custom_call.1} parent=132 // loop_exit
          _
      $region133: #{tpu_custom_call.1} parent=4 // pred_fallthru
        _
      // Predicated region
      $region152: #{tpu_custom_call.1} parent=4 // pred_check
        _
      $region153: #{tpu_custom_call.1} parent=4 // pred_check_branch
        %280 = sbr.rel (0) target = $region155
      $region154: #{tpu_custom_call.1} parent=4 // pred_region
        %281 = vsyncadd %s237, 16
      $region155: #{tpu_custom_call.1} parent=4 // pred_fallthru
        _
      %s282 = sadd.s32 %s14, 5
      %s283 = sld [smem:[#allocation5 + %s282]]
      %s284 = sadd.s32 %s23, 5
      %s285 = sadd.s32 %s23, 5
      %s286 = scalar_lea.vmem %s1, %s283
      %s287 = scalar_lea.vmem [#allocation2], %s284
      %s288 = scalar_lea.sflag [#allocation3], %s285
      %p290 = scmp.lt.u32.totalorder 1, 8
      %p291 = pneg %p290
      // Predicated region
      $region156: #{tpu_custom_call.1} parent=4 // pred_check
        _
      $region157: #{tpu_custom_call.1} parent=4 // pred_check_branch
        %293 = sbr.rel (%p290) target = $region159
      $region158: #{tpu_custom_call.1} parent=4 // pred_region
        %s308 = sand.u32 1, 7
        %p309 = scmp.eq.s32.totalorder %s308, 0
        %p310 = pneg %p309
        // Predicated region
        $region171: #{tpu_custom_call.1} parent=158 // pred_check
          _
        $region172: #{tpu_custom_call.1} parent=158 // pred_check_branch
          %312 = sbr.rel (%p309) target = $region174
        $region173: #{tpu_custom_call.1} parent=158 // pred_region
          %s313 = sand.u32 1, 7
          %s314 = ssub.s32 1, %s313
          %s315 = scalar_lea.vmem %s286, %s314
          %s316 = ssub.s32 1, %s313
          %s317 = scalar_lea.vmem %s287, %s316 [#allocation2]
          %s318 = sshllo.u32 0, %s313
          loop: start=0, step=1, limit=1
          $region175: #{tpu_custom_call.1} parent=173 // loop_pre_header
            _
          $region176: #{tpu_custom_call.1} parent=173 // loop_header
            %s320 = sphi 0, %s324
            %p321 = scmp.ge.s32.totalorder %s320, 1
            %s325 = sphi %s315, %s315
            %s326 = sphi %s317, %s317
          $region177: #{tpu_custom_call.1} parent=173 // loop_header_branch
            %323 = sbr.rel (%p321) target = $region181
          $region178: #{tpu_custom_call.1} parent=173 // loop_body
            %v327 = vld [vmem:[%s325] sm:%s318]
            %328 = vst [vmem:[%s326] sm:%s318] %v327
          $region179: #{tpu_custom_call.1} parent=173 // loop_footer
            %s324 = sadd.s32 1, %s320
          $region180: #{tpu_custom_call.1} parent=173 // loop_footer_branch
            %319 = sbr.rel target = $region176
          $region181: #{tpu_custom_call.1} parent=173 // loop_exit
            _
        $region174: #{tpu_custom_call.1} parent=158 // pred_fallthru
          _
      $region159: #{tpu_custom_call.1} parent=4 // pred_fallthru
        _
      // Predicated region
      $region160: #{tpu_custom_call.1} parent=4 // pred_check
        %p294 = pneg %p290
      $region161: #{tpu_custom_call.1} parent=4 // pred_check_branch
        %296 = sbr.rel (%p294) target = $region163
      $region162: #{tpu_custom_call.1} parent=4 // pred_region
        %s297 = sshllo.u32 0, 1
        loop: start=0, step=1, limit=1
        $region164: #{tpu_custom_call.1} parent=162 // loop_pre_header
          _
        $region165: #{tpu_custom_call.1} parent=162 // loop_header
          %s299 = sphi 0, %s303
          %p300 = scmp.ge.s32.totalorder %s299, 1
          %s304 = sphi %s286, %s286
          %s305 = sphi %s287, %s287
        $region166: #{tpu_custom_call.1} parent=162 // loop_header_branch
          %302 = sbr.rel (%p300) target = $region170
        $region167: #{tpu_custom_call.1} parent=162 // loop_body
          %v306 = vld [vmem:[%s304] sm:%s297]
          %307 = vst [vmem:[%s305] sm:%s297] %v306
        $region168: #{tpu_custom_call.1} parent=162 // loop_footer
          %s303 = sadd.s32 1, %s299
        $region169: #{tpu_custom_call.1} parent=162 // loop_footer_branch
          %298 = sbr.rel target = $region165
        $region170: #{tpu_custom_call.1} parent=162 // loop_exit
          _
      $region163: #{tpu_custom_call.1} parent=4 // pred_fallthru
        _
      // Predicated region
      $region182: #{tpu_custom_call.1} parent=4 // pred_check
        _
      $region183: #{tpu_custom_call.1} parent=4 // pred_check_branch
        %331 = sbr.rel (0) target = $region185
      $region184: #{tpu_custom_call.1} parent=4 // pred_region
        %332 = vsyncadd %s288, 16
      $region185: #{tpu_custom_call.1} parent=4 // pred_fallthru
        _
      %s333 = sadd.s32 %s14, 6
      %s334 = sld [smem:[#allocation5 + %s333]]
      %s335 = sadd.s32 %s23, 6
      %s336 = sadd.s32 %s23, 6
      %s337 = scalar_lea.vmem %s1, %s334
      %s338 = scalar_lea.vmem [#allocation2], %s335
      %s339 = scalar_lea.sflag [#allocation3], %s336
      %p341 = scmp.lt.u32.totalorder 1, 8
      %p342 = pneg %p341
      // Predicated region
      $region186: #{tpu_custom_call.1} parent=4 // pred_check
        _
      $region187: #{tpu_custom_call.1} parent=4 // pred_check_branch
        %344 = sbr.rel (%p341) target = $region189
      $region188: #{tpu_custom_call.1} parent=4 // pred_region
        %s359 = sand.u32 1, 7
        %p360 = scmp.eq.s32.totalorder %s359, 0
        %p361 = pneg %p360
        // Predicated region
        $region201: #{tpu_custom_call.1} parent=188 // pred_check
          _
        $region202: #{tpu_custom_call.1} parent=188 // pred_check_branch
          %363 = sbr.rel (%p360) target = $region204
        $region203: #{tpu_custom_call.1} parent=188 // pred_region
          %s364 = sand.u32 1, 7
          %s365 = ssub.s32 1, %s364
          %s366 = scalar_lea.vmem %s337, %s365
          %s367 = ssub.s32 1, %s364
          %s368 = scalar_lea.vmem %s338, %s367 [#allocation2]
          %s369 = sshllo.u32 0, %s364
          loop: start=0, step=1, limit=1
          $region205: #{tpu_custom_call.1} parent=203 // loop_pre_header
            _
          $region206: #{tpu_custom_call.1} parent=203 // loop_header
            %s371 = sphi 0, %s375
            %p372 = scmp.ge.s32.totalorder %s371, 1
            %s376 = sphi %s366, %s366
            %s377 = sphi %s368, %s368
          $region207: #{tpu_custom_call.1} parent=203 // loop_header_branch
            %374 = sbr.rel (%p372) target = $region211
          $region208: #{tpu_custom_call.1} parent=203 // loop_body
            %v378 = vld [vmem:[%s376] sm:%s369]
            %379 = vst [vmem:[%s377] sm:%s369] %v378
          $region209: #{tpu_custom_call.1} parent=203 // loop_footer
            %s375 = sadd.s32 1, %s371
          $region210: #{tpu_custom_call.1} parent=203 // loop_footer_branch
            %370 = sbr.rel target = $region206
          $region211: #{tpu_custom_call.1} parent=203 // loop_exit
            _
        $region204: #{tpu_custom_call.1} parent=188 // pred_fallthru
          _
      $region189: #{tpu_custom_call.1} parent=4 // pred_fallthru
        _
      // Predicated region
      $region190: #{tpu_custom_call.1} parent=4 // pred_check
        %p345 = pneg %p341
      $region191: #{tpu_custom_call.1} parent=4 // pred_check_branch
        %347 = sbr.rel (%p345) target = $region193
      $region192: #{tpu_custom_call.1} parent=4 // pred_region
        %s348 = sshllo.u32 0, 1
        loop: start=0, step=1, limit=1
        $region194: #{tpu_custom_call.1} parent=192 // loop_pre_header
          _
        $region195: #{tpu_custom_call.1} parent=192 // loop_header
          %s350 = sphi 0, %s354
          %p351 = scmp.ge.s32.totalorder %s350, 1
          %s355 = sphi %s337, %s337
          %s356 = sphi %s338, %s338
        $region196: #{tpu_custom_call.1} parent=192 // loop_header_branch
          %353 = sbr.rel (%p351) target = $region200
        $region197: #{tpu_custom_call.1} parent=192 // loop_body
          %v357 = vld [vmem:[%s355] sm:%s348]
          %358 = vst [vmem:[%s356] sm:%s348] %v357
        $region198: #{tpu_custom_call.1} parent=192 // loop_footer
          %s354 = sadd.s32 1, %s350
        $region199: #{tpu_custom_call.1} parent=192 // loop_footer_branch
          %349 = sbr.rel target = $region195
        $region200: #{tpu_custom_call.1} parent=192 // loop_exit
          _
      $region193: #{tpu_custom_call.1} parent=4 // pred_fallthru
        _
      // Predicated region
      $region212: #{tpu_custom_call.1} parent=4 // pred_check
        _
      $region213: #{tpu_custom_call.1} parent=4 // pred_check_branch
        %382 = sbr.rel (0) target = $region215
      $region214: #{tpu_custom_call.1} parent=4 // pred_region
        %383 = vsyncadd %s339, 16
      $region215: #{tpu_custom_call.1} parent=4 // pred_fallthru
        _
      %s384 = sadd.s32 %s14, 7
      %s385 = sld [smem:[#allocation5 + %s384]]
      %s386 = sadd.s32 %s23, 7
      %s387 = sadd.s32 %s23, 7
      %s388 = scalar_lea.vmem %s1, %s385
      %s389 = scalar_lea.vmem [#allocation2], %s386
      %s390 = scalar_lea.sflag [#allocation3], %s387
      %p392 = scmp.lt.u32.totalorder 1, 8
      %p393 = pneg %p392
      // Predicated region
      $region216: #{tpu_custom_call.1} parent=4 // pred_check
        _
      $region217: #{tpu_custom_call.1} parent=4 // pred_check_branch
        %395 = sbr.rel (%p392) target = $region219
      $region218: #{tpu_custom_call.1} parent=4 // pred_region
        %s410 = sand.u32 1, 7
        %p411 = scmp.eq.s32.totalorder %s410, 0
        %p412 = pneg %p411
        // Predicated region
        $region231: #{tpu_custom_call.1} parent=218 // pred_check
          _
        $region232: #{tpu_custom_call.1} parent=218 // pred_check_branch
          %414 = sbr.rel (%p411) target = $region234
        $region233: #{tpu_custom_call.1} parent=218 // pred_region
          %s415 = sand.u32 1, 7
          %s416 = ssub.s32 1, %s415
          %s417 = scalar_lea.vmem %s388, %s416
          %s418 = ssub.s32 1, %s415
          %s419 = scalar_lea.vmem %s389, %s418 [#allocation2]
          %s420 = sshllo.u32 0, %s415
          loop: start=0, step=1, limit=1
          $region235: #{tpu_custom_call.1} parent=233 // loop_pre_header
            _
          $region236: #{tpu_custom_call.1} parent=233 // loop_header
            %s422 = sphi 0, %s426
            %p423 = scmp.ge.s32.totalorder %s422, 1
            %s427 = sphi %s417, %s417
            %s428 = sphi %s419, %s419
          $region237: #{tpu_custom_call.1} parent=233 // loop_header_branch
            %425 = sbr.rel (%p423) target = $region241
          $region238: #{tpu_custom_call.1} parent=233 // loop_body
            %v429 = vld [vmem:[%s427] sm:%s420]
            %430 = vst [vmem:[%s428] sm:%s420] %v429
          $region239: #{tpu_custom_call.1} parent=233 // loop_footer
            %s426 = sadd.s32 1, %s422
          $region240: #{tpu_custom_call.1} parent=233 // loop_footer_branch
            %421 = sbr.rel target = $region236
          $region241: #{tpu_custom_call.1} parent=233 // loop_exit
            _
        $region234: #{tpu_custom_call.1} parent=218 // pred_fallthru
          _
      $region219: #{tpu_custom_call.1} parent=4 // pred_fallthru
        _
      // Predicated region
      $region220: #{tpu_custom_call.1} parent=4 // pred_check
        %p396 = pneg %p392
      $region221: #{tpu_custom_call.1} parent=4 // pred_check_branch
        %398 = sbr.rel (%p396) target = $region223
      $region222: #{tpu_custom_call.1} parent=4 // pred_region
        %s399 = sshllo.u32 0, 1
        loop: start=0, step=1, limit=1
        $region224: #{tpu_custom_call.1} parent=222 // loop_pre_header
          _
        $region225: #{tpu_custom_call.1} parent=222 // loop_header
          %s401 = sphi 0, %s405
          %p402 = scmp.ge.s32.totalorder %s401, 1
          %s406 = sphi %s388, %s388
          %s407 = sphi %s389, %s389
        $region226: #{tpu_custom_call.1} parent=222 // loop_header_branch
          %404 = sbr.rel (%p402) target = $region230
        $region227: #{tpu_custom_call.1} parent=222 // loop_body
          %v408 = vld [vmem:[%s406] sm:%s399]
          %409 = vst [vmem:[%s407] sm:%s399] %v408
        $region228: #{tpu_custom_call.1} parent=222 // loop_footer
          %s405 = sadd.s32 1, %s401
        $region229: #{tpu_custom_call.1} parent=222 // loop_footer_branch
          %400 = sbr.rel target = $region225
        $region230: #{tpu_custom_call.1} parent=222 // loop_exit
          _
      $region223: #{tpu_custom_call.1} parent=4 // pred_fallthru
        _
      // Predicated region
      $region242: #{tpu_custom_call.1} parent=4 // pred_check
        _
      $region243: #{tpu_custom_call.1} parent=4 // pred_check_branch
        %433 = sbr.rel (0) target = $region245
      $region244: #{tpu_custom_call.1} parent=4 // pred_region
        %434 = vsyncadd %s390, 16
      $region245: #{tpu_custom_call.1} parent=4 // pred_fallthru
        _
      %s435 = sadd.s32 %s14, 8
      %s436 = sld [smem:[#allocation5 + %s435]]
      %s437 = sadd.s32 %s23, 8
      %s438 = sadd.s32 %s23, 8
      %s439 = scalar_lea.vmem %s1, %s436
      %s440 = scalar_lea.vmem [#allocation2], %s437
      %s441 = scalar_lea.sflag [#allocation3], %s438
      %p443 = scmp.lt.u32.totalorder 1, 8
      %p444 = pneg %p443
      // Predicated region
      $region246: #{tpu_custom_call.1} parent=4 // pred_check
        _
      $region247: #{tpu_custom_call.1} parent=4 // pred_check_branch
        %446 = sbr.rel (%p443) target = $region249
      $region248: #{tpu_custom_call.1} parent=4 // pred_region
        %s461 = sand.u32 1, 7
        %p462 = scmp.eq.s32.totalorder %s461, 0
        %p463 = pneg %p462
        // Predicated region
        $region261: #{tpu_custom_call.1} parent=248 // pred_check
          _
        $region262: #{tpu_custom_call.1} parent=248 // pred_check_branch
          %465 = sbr.rel (%p462) target = $region264
        $region263: #{tpu_custom_call.1} parent=248 // pred_region
          %s466 = sand.u32 1, 7
          %s467 = ssub.s32 1, %s466
          %s468 = scalar_lea.vmem %s439, %s467
          %s469 = ssub.s32 1, %s466
          %s470 = scalar_lea.vmem %s440, %s469 [#allocation2]
          %s471 = sshllo.u32 0, %s466
          loop: start=0, step=1, limit=1
          $region265: #{tpu_custom_call.1} parent=263 // loop_pre_header
            _
          $region266: #{tpu_custom_call.1} parent=263 // loop_header
            %s473 = sphi 0, %s477
            %p474 = scmp.ge.s32.totalorder %s473, 1
            %s478 = sphi %s468, %s468
            %s479 = sphi %s470, %s470
          $region267: #{tpu_custom_call.1} parent=263 // loop_header_branch
            %476 = sbr.rel (%p474) target = $region271
          $region268: #{tpu_custom_call.1} parent=263 // loop_body
            %v480 = vld [vmem:[%s478] sm:%s471]
            %481 = vst [vmem:[%s479] sm:%s471] %v480
          $region269: #{tpu_custom_call.1} parent=263 // loop_footer
            %s477 = sadd.s32 1, %s473
          $region270: #{tpu_custom_call.1} parent=263 // loop_footer_branch
            %472 = sbr.rel target = $region266
          $region271: #{tpu_custom_call.1} parent=263 // loop_exit
            _
        $region264: #{tpu_custom_call.1} parent=248 // pred_fallthru
          _
      $region249: #{tpu_custom_call.1} parent=4 // pred_fallthru
        _
      // Predicated region
      $region250: #{tpu_custom_call.1} parent=4 // pred_check
        %p447 = pneg %p443
      $region251: #{tpu_custom_call.1} parent=4 // pred_check_branch
        %449 = sbr.rel (%p447) target = $region253
      $region252: #{tpu_custom_call.1} parent=4 // pred_region
        %s450 = sshllo.u32 0, 1
        loop: start=0, step=1, limit=1
        $region254: #{tpu_custom_call.1} parent=252 // loop_pre_header
          _
        $region255: #{tpu_custom_call.1} parent=252 // loop_header
          %s452 = sphi 0, %s456
          %p453 = scmp.ge.s32.totalorder %s452, 1
          %s457 = sphi %s439, %s439
          %s458 = sphi %s440, %s440
        $region256: #{tpu_custom_call.1} parent=252 // loop_header_branch
          %455 = sbr.rel (%p453) target = $region260
        $region257: #{tpu_custom_call.1} parent=252 // loop_body
          %v459 = vld [vmem:[%s457] sm:%s450]
          %460 = vst [vmem:[%s458] sm:%s450] %v459
        $region258: #{tpu_custom_call.1} parent=252 // loop_footer
          %s456 = sadd.s32 1, %s452
        $region259: #{tpu_custom_call.1} parent=252 // loop_footer_branch
          %451 = sbr.rel target = $region255
        $region260: #{tpu_custom_call.1} parent=252 // loop_exit
          _
      $region253: #{tpu_custom_call.1} parent=4 // pred_fallthru
        _
      // Predicated region
      $region272: #{tpu_custom_call.1} parent=4 // pred_check
        _
      $region273: #{tpu_custom_call.1} parent=4 // pred_check_branch
        %484 = sbr.rel (0) target = $region275
      $region274: #{tpu_custom_call.1} parent=4 // pred_region
        %485 = vsyncadd %s441, 16
      $region275: #{tpu_custom_call.1} parent=4 // pred_fallthru
        _
      %s486 = sadd.s32 %s14, 9
      %s487 = sld [smem:[#allocation5 + %s486]]
      %s488 = sadd.s32 %s23, 9
      %s489 = sadd.s32 %s23, 9
      %s490 = scalar_lea.vmem %s1, %s487
      %s491 = scalar_lea.vmem [#allocation2], %s488
      %s492 = scalar_lea.sflag [#allocation3], %s489
      %p494 = scmp.lt.u32.totalorder 1, 8
      %p495 = pneg %p494
      // Predicated region
      $region276: #{tpu_custom_call.1} parent=4 // pred_check
        _
      $region277: #{tpu_custom_call.1} parent=4 // pred_check_branch
        %497 = sbr.rel (%p494) target = $region279
      $region278: #{tpu_custom_call.1} parent=4 // pred_region
        %s512 = sand.u32 1, 7
        %p513 = scmp.eq.s32.totalorder %s512, 0
        %p514 = pneg %p513
        // Predicated region
        $region291: #{tpu_custom_call.1} parent=278 // pred_check
          _
        $region292: #{tpu_custom_call.1} parent=278 // pred_check_branch
          %516 = sbr.rel (%p513) target = $region294
        $region293: #{tpu_custom_call.1} parent=278 // pred_region
          %s517 = sand.u32 1, 7
          %s518 = ssub.s32 1, %s517
          %s519 = scalar_lea.vmem %s490, %s518
          %s520 = ssub.s32 1, %s517
          %s521 = scalar_lea.vmem %s491, %s520 [#allocation2]
          %s522 = sshllo.u32 0, %s517
          loop: start=0, step=1, limit=1
          $region295: #{tpu_custom_call.1} parent=293 // loop_pre_header
            _
          $region296: #{tpu_custom_call.1} parent=293 // loop_header
            %s524 = sphi 0, %s528
            %p525 = scmp.ge.s32.totalorder %s524, 1
            %s529 = sphi %s519, %s519
            %s530 = sphi %s521, %s521
          $region297: #{tpu_custom_call.1} parent=293 // loop_header_branch
            %527 = sbr.rel (%p525) target = $region301
          $region298: #{tpu_custom_call.1} parent=293 // loop_body
            %v531 = vld [vmem:[%s529] sm:%s522]
            %532 = vst [vmem:[%s530] sm:%s522] %v531
          $region299: #{tpu_custom_call.1} parent=293 // loop_footer
            %s528 = sadd.s32 1, %s524
          $region300: #{tpu_custom_call.1} parent=293 // loop_footer_branch
            %523 = sbr.rel target = $region296
          $region301: #{tpu_custom_call.1} parent=293 // loop_exit
            _
        $region294: #{tpu_custom_call.1} parent=278 // pred_fallthru
          _
      $region279: #{tpu_custom_call.1} parent=4 // pred_fallthru
        _
      // Predicated region
      $region280: #{tpu_custom_call.1} parent=4 // pred_check
        %p498 = pneg %p494
      $region281: #{tpu_custom_call.1} parent=4 // pred_check_branch
        %500 = sbr.rel (%p498) target = $region283
      $region282: #{tpu_custom_call.1} parent=4 // pred_region
        %s501 = sshllo.u32 0, 1
        loop: start=0, step=1, limit=1
        $region284: #{tpu_custom_call.1} parent=282 // loop_pre_header
          _
        $region285: #{tpu_custom_call.1} parent=282 // loop_header
          %s503 = sphi 0, %s507
          %p504 = scmp.ge.s32.totalorder %s503, 1
          %s508 = sphi %s490, %s490
          %s509 = sphi %s491, %s491
        $region286: #{tpu_custom_call.1} parent=282 // loop_header_branch
          %506 = sbr.rel (%p504) target = $region290
        $region287: #{tpu_custom_call.1} parent=282 // loop_body
          %v510 = vld [vmem:[%s508] sm:%s501]
          %511 = vst [vmem:[%s509] sm:%s501] %v510
        $region288: #{tpu_custom_call.1} parent=282 // loop_footer
          %s507 = sadd.s32 1, %s503
        $region289: #{tpu_custom_call.1} parent=282 // loop_footer_branch
          %502 = sbr.rel target = $region285
        $region290: #{tpu_custom_call.1} parent=282 // loop_exit
          _
      $region283: #{tpu_custom_call.1} parent=4 // pred_fallthru
        _
      // Predicated region
      $region302: #{tpu_custom_call.1} parent=4 // pred_check
        _
      $region303: #{tpu_custom_call.1} parent=4 // pred_check_branch
        %535 = sbr.rel (0) target = $region305
      $region304: #{tpu_custom_call.1} parent=4 // pred_region
        %536 = vsyncadd %s492, 16
      $region305: #{tpu_custom_call.1} parent=4 // pred_fallthru
        _
      %s537 = sadd.s32 %s14, 10
      %s538 = sld [smem:[#allocation5 + %s537]]
      %s539 = sadd.s32 %s23, 10
      %s540 = sadd.s32 %s23, 10
      %s541 = scalar_lea.vmem %s1, %s538
      %s542 = scalar_lea.vmem [#allocation2], %s539
      %s543 = scalar_lea.sflag [#allocation3], %s540
      %p545 = scmp.lt.u32.totalorder 1, 8
      %p546 = pneg %p545
      // Predicated region
      $region306: #{tpu_custom_call.1} parent=4 // pred_check
        _
      $region307: #{tpu_custom_call.1} parent=4 // pred_check_branch
        %548 = sbr.rel (%p545) target = $region309
      $region308: #{tpu_custom_call.1} parent=4 // pred_region
        %s563 = sand.u32 1, 7
        %p564 = scmp.eq.s32.totalorder %s563, 0
        %p565 = pneg %p564
        // Predicated region
        $region321: #{tpu_custom_call.1} parent=308 // pred_check
          _
        $region322: #{tpu_custom_call.1} parent=308 // pred_check_branch
          %567 = sbr.rel (%p564) target = $region324
        $region323: #{tpu_custom_call.1} parent=308 // pred_region
          %s568 = sand.u32 1, 7
          %s569 = ssub.s32 1, %s568
          %s570 = scalar_lea.vmem %s541, %s569
          %s571 = ssub.s32 1, %s568
          %s572 = scalar_lea.vmem %s542, %s571 [#allocation2]
          %s573 = sshllo.u32 0, %s568
          loop: start=0, step=1, limit=1
          $region325: #{tpu_custom_call.1} parent=323 // loop_pre_header
            _
          $region326: #{tpu_custom_call.1} parent=323 // loop_header
            %s575 = sphi 0, %s579
            %p576 = scmp.ge.s32.totalorder %s575, 1
            %s580 = sphi %s570, %s570
            %s581 = sphi %s572, %s572
          $region327: #{tpu_custom_call.1} parent=323 // loop_header_branch
            %578 = sbr.rel (%p576) target = $region331
          $region328: #{tpu_custom_call.1} parent=323 // loop_body
            %v582 = vld [vmem:[%s580] sm:%s573]
            %583 = vst [vmem:[%s581] sm:%s573] %v582
          $region329: #{tpu_custom_call.1} parent=323 // loop_footer
            %s579 = sadd.s32 1, %s575
          $region330: #{tpu_custom_call.1} parent=323 // loop_footer_branch
            %574 = sbr.rel target = $region326
          $region331: #{tpu_custom_call.1} parent=323 // loop_exit
            _
        $region324: #{tpu_custom_call.1} parent=308 // pred_fallthru
          _
      $region309: #{tpu_custom_call.1} parent=4 // pred_fallthru
        _
      // Predicated region
      $region310: #{tpu_custom_call.1} parent=4 // pred_check
        %p549 = pneg %p545
      $region311: #{tpu_custom_call.1} parent=4 // pred_check_branch
        %551 = sbr.rel (%p549) target = $region313
      $region312: #{tpu_custom_call.1} parent=4 // pred_region
        %s552 = sshllo.u32 0, 1
        loop: start=0, step=1, limit=1
        $region314: #{tpu_custom_call.1} parent=312 // loop_pre_header
          _
        $region315: #{tpu_custom_call.1} parent=312 // loop_header
          %s554 = sphi 0, %s558
          %p555 = scmp.ge.s32.totalorder %s554, 1
          %s559 = sphi %s541, %s541
          %s560 = sphi %s542, %s542
        $region316: #{tpu_custom_call.1} parent=312 // loop_header_branch
          %557 = sbr.rel (%p555) target = $region320
        $region317: #{tpu_custom_call.1} parent=312 // loop_body
          %v561 = vld [vmem:[%s559] sm:%s552]
          %562 = vst [vmem:[%s560] sm:%s552] %v561
        $region318: #{tpu_custom_call.1} parent=312 // loop_footer
          %s558 = sadd.s32 1, %s554
        $region319: #{tpu_custom_call.1} parent=312 // loop_footer_branch
          %553 = sbr.rel target = $region315
        $region320: #{tpu_custom_call.1} parent=312 // loop_exit
          _
      $region313: #{tpu_custom_call.1} parent=4 // pred_fallthru
        _
      // Predicated region
      $region332: #{tpu_custom_call.1} parent=4 // pred_check
        _
      $region333: #{tpu_custom_call.1} parent=4 // pred_check_branch
        %586 = sbr.rel (0) target = $region335
      $region334: #{tpu_custom_call.1} parent=4 // pred_region
        %587 = vsyncadd %s543, 16
      $region335: #{tpu_custom_call.1} parent=4 // pred_fallthru
        _
      %s588 = sadd.s32 %s14, 11
      %s589 = sld [smem:[#allocation5 + %s588]]
      %s590 = sadd.s32 %s23, 11
      %s591 = sadd.s32 %s23, 11
      %s592 = scalar_lea.vmem %s1, %s589
      %s593 = scalar_lea.vmem [#allocation2], %s590
      %s594 = scalar_lea.sflag [#allocation3], %s591
      %p596 = scmp.lt.u32.totalorder 1, 8
      %p597 = pneg %p596
      // Predicated region
      $region336: #{tpu_custom_call.1} parent=4 // pred_check
        _
      $region337: #{tpu_custom_call.1} parent=4 // pred_check_branch
        %599 = sbr.rel (%p596) target = $region339
      $region338: #{tpu_custom_call.1} parent=4 // pred_region
        %s614 = sand.u32 1, 7
        %p615 = scmp.eq.s32.totalorder %s614, 0
        %p616 = pneg %p615
        // Predicated region
        $region351: #{tpu_custom_call.1} parent=338 // pred_check
          _
        $region352: #{tpu_custom_call.1} parent=338 // pred_check_branch
          %618 = sbr.rel (%p615) target = $region354
        $region353: #{tpu_custom_call.1} parent=338 // pred_region
          %s619 = sand.u32 1, 7
          %s620 = ssub.s32 1, %s619
          %s621 = scalar_lea.vmem %s592, %s620
          %s622 = ssub.s32 1, %s619
          %s623 = scalar_lea.vmem %s593, %s622 [#allocation2]
          %s624 = sshllo.u32 0, %s619
          loop: start=0, step=1, limit=1
          $region355: #{tpu_custom_call.1} parent=353 // loop_pre_header
            _
          $region356: #{tpu_custom_call.1} parent=353 // loop_header
            %s626 = sphi 0, %s630
            %p627 = scmp.ge.s32.totalorder %s626, 1
            %s631 = sphi %s621, %s621
            %s632 = sphi %s623, %s623
          $region357: #{tpu_custom_call.1} parent=353 // loop_header_branch
            %629 = sbr.rel (%p627) target = $region361
          $region358: #{tpu_custom_call.1} parent=353 // loop_body
            %v633 = vld [vmem:[%s631] sm:%s624]
            %634 = vst [vmem:[%s632] sm:%s624] %v633
          $region359: #{tpu_custom_call.1} parent=353 // loop_footer
            %s630 = sadd.s32 1, %s626
          $region360: #{tpu_custom_call.1} parent=353 // loop_footer_branch
            %625 = sbr.rel target = $region356
          $region361: #{tpu_custom_call.1} parent=353 // loop_exit
            _
        $region354: #{tpu_custom_call.1} parent=338 // pred_fallthru
          _
      $region339: #{tpu_custom_call.1} parent=4 // pred_fallthru
        _
      // Predicated region
      $region340: #{tpu_custom_call.1} parent=4 // pred_check
        %p600 = pneg %p596
      $region341: #{tpu_custom_call.1} parent=4 // pred_check_branch
        %602 = sbr.rel (%p600) target = $region343
      $region342: #{tpu_custom_call.1} parent=4 // pred_region
        %s603 = sshllo.u32 0, 1
        loop: start=0, step=1, limit=1
        $region344: #{tpu_custom_call.1} parent=342 // loop_pre_header
          _
        $region345: #{tpu_custom_call.1} parent=342 // loop_header
          %s605 = sphi 0, %s609
          %p606 = scmp.ge.s32.totalorder %s605, 1
          %s610 = sphi %s592, %s592
          %s611 = sphi %s593, %s593
        $region346: #{tpu_custom_call.1} parent=342 // loop_header_branch
          %608 = sbr.rel (%p606) target = $region350
        $region347: #{tpu_custom_call.1} parent=342 // loop_body
          %v612 = vld [vmem:[%s610] sm:%s603]
          %613 = vst [vmem:[%s611] sm:%s603] %v612
        $region348: #{tpu_custom_call.1} parent=342 // loop_footer
          %s609 = sadd.s32 1, %s605
        $region349: #{tpu_custom_call.1} parent=342 // loop_footer_branch
          %604 = sbr.rel target = $region345
        $region350: #{tpu_custom_call.1} parent=342 // loop_exit
          _
      $region343: #{tpu_custom_call.1} parent=4 // pred_fallthru
        _
      // Predicated region
      $region362: #{tpu_custom_call.1} parent=4 // pred_check
        _
      $region363: #{tpu_custom_call.1} parent=4 // pred_check_branch
        %637 = sbr.rel (0) target = $region365
      $region364: #{tpu_custom_call.1} parent=4 // pred_region
        %638 = vsyncadd %s594, 16
      $region365: #{tpu_custom_call.1} parent=4 // pred_fallthru
        _
      %s639 = sadd.s32 %s14, 12
      %s640 = sld [smem:[#allocation5 + %s639]]
      %s641 = sadd.s32 %s23, 12
      %s642 = sadd.s32 %s23, 12
      %s643 = scalar_lea.vmem %s1, %s640
      %s644 = scalar_lea.vmem [#allocation2], %s641
      %s645 = scalar_lea.sflag [#allocation3], %s642
      %p647 = scmp.lt.u32.totalorder 1, 8
      %p648 = pneg %p647
      // Predicated region
      $region366: #{tpu_custom_call.1} parent=4 // pred_check
        _
      $region367: #{tpu_custom_call.1} parent=4 // pred_check_branch
        %650 = sbr.rel (%p647) target = $region369
      $region368: #{tpu_custom_call.1} parent=4 // pred_region
        %s665 = sand.u32 1, 7
        %p666 = scmp.eq.s32.totalorder %s665, 0
        %p667 = pneg %p666
        // Predicated region
        $region381: #{tpu_custom_call.1} parent=368 // pred_check
          _
        $region382: #{tpu_custom_call.1} parent=368 // pred_check_branch
          %669 = sbr.rel (%p666) target = $region384
        $region383: #{tpu_custom_call.1} parent=368 // pred_region
          %s670 = sand.u32 1, 7
          %s671 = ssub.s32 1, %s670
          %s672 = scalar_lea.vmem %s643, %s671
          %s673 = ssub.s32 1, %s670
          %s674 = scalar_lea.vmem %s644, %s673 [#allocation2]
          %s675 = sshllo.u32 0, %s670
          loop: start=0, step=1, limit=1
          $region385: #{tpu_custom_call.1} parent=383 // loop_pre_header
            _
          $region386: #{tpu_custom_call.1} parent=383 // loop_header
            %s677 = sphi 0, %s681
            %p678 = scmp.ge.s32.totalorder %s677, 1
            %s682 = sphi %s672, %s672
            %s683 = sphi %s674, %s674
          $region387: #{tpu_custom_call.1} parent=383 // loop_header_branch
            %680 = sbr.rel (%p678) target = $region391
          $region388: #{tpu_custom_call.1} parent=383 // loop_body
            %v684 = vld [vmem:[%s682] sm:%s675]
            %685 = vst [vmem:[%s683] sm:%s675] %v684
          $region389: #{tpu_custom_call.1} parent=383 // loop_footer
            %s681 = sadd.s32 1, %s677
          $region390: #{tpu_custom_call.1} parent=383 // loop_footer_branch
            %676 = sbr.rel target = $region386
          $region391: #{tpu_custom_call.1} parent=383 // loop_exit
            _
        $region384: #{tpu_custom_call.1} parent=368 // pred_fallthru
          _
      $region369: #{tpu_custom_call.1} parent=4 // pred_fallthru
        _
      // Predicated region
      $region370: #{tpu_custom_call.1} parent=4 // pred_check
        %p651 = pneg %p647
      $region371: #{tpu_custom_call.1} parent=4 // pred_check_branch
        %653 = sbr.rel (%p651) target = $region373
      $region372: #{tpu_custom_call.1} parent=4 // pred_region
        %s654 = sshllo.u32 0, 1
        loop: start=0, step=1, limit=1
        $region374: #{tpu_custom_call.1} parent=372 // loop_pre_header
          _
        $region375: #{tpu_custom_call.1} parent=372 // loop_header
          %s656 = sphi 0, %s660
          %p657 = scmp.ge.s32.totalorder %s656, 1
          %s661 = sphi %s643, %s643
          %s662 = sphi %s644, %s644
        $region376: #{tpu_custom_call.1} parent=372 // loop_header_branch
          %659 = sbr.rel (%p657) target = $region380
        $region377: #{tpu_custom_call.1} parent=372 // loop_body
          %v663 = vld [vmem:[%s661] sm:%s654]
          %664 = vst [vmem:[%s662] sm:%s654] %v663
        $region378: #{tpu_custom_call.1} parent=372 // loop_footer
          %s660 = sadd.s32 1, %s656
        $region379: #{tpu_custom_call.1} parent=372 // loop_footer_branch
          %655 = sbr.rel target = $region375
        $region380: #{tpu_custom_call.1} parent=372 // loop_exit
          _
      $region373: #{tpu_custom_call.1} parent=4 // pred_fallthru
        _
      // Predicated region
      $region392: #{tpu_custom_call.1} parent=4 // pred_check
        _
      $region393: #{tpu_custom_call.1} parent=4 // pred_check_branch
        %688 = sbr.rel (0) target = $region395
      $region394: #{tpu_custom_call.1} parent=4 // pred_region
        %689 = vsyncadd %s645, 16
      $region395: #{tpu_custom_call.1} parent=4 // pred_fallthru
        _
      %s690 = sadd.s32 %s14, 13
      %s691 = sld [smem:[#allocation5 + %s690]]
      %s692 = sadd.s32 %s23, 13
      %s693 = sadd.s32 %s23, 13
      %s694 = scalar_lea.vmem %s1, %s691
      %s695 = scalar_lea.vmem [#allocation2], %s692
      %s696 = scalar_lea.sflag [#allocation3], %s693
      %p698 = scmp.lt.u32.totalorder 1, 8
      %p699 = pneg %p698
      // Predicated region
      $region396: #{tpu_custom_call.1} parent=4 // pred_check
        _
      $region397: #{tpu_custom_call.1} parent=4 // pred_check_branch
        %701 = sbr.rel (%p698) target = $region399
      $region398: #{tpu_custom_call.1} parent=4 // pred_region
        %s716 = sand.u32 1, 7
        %p717 = scmp.eq.s32.totalorder %s716, 0
        %p718 = pneg %p717
        // Predicated region
        $region411: #{tpu_custom_call.1} parent=398 // pred_check
          _
        $region412: #{tpu_custom_call.1} parent=398 // pred_check_branch
          %720 = sbr.rel (%p717) target = $region414
        $region413: #{tpu_custom_call.1} parent=398 // pred_region
          %s721 = sand.u32 1, 7
          %s722 = ssub.s32 1, %s721
          %s723 = scalar_lea.vmem %s694, %s722
          %s724 = ssub.s32 1, %s721
          %s725 = scalar_lea.vmem %s695, %s724 [#allocation2]
          %s726 = sshllo.u32 0, %s721
          loop: start=0, step=1, limit=1
          $region415: #{tpu_custom_call.1} parent=413 // loop_pre_header
            _
          $region416: #{tpu_custom_call.1} parent=413 // loop_header
            %s728 = sphi 0, %s732
            %p729 = scmp.ge.s32.totalorder %s728, 1
            %s733 = sphi %s723, %s723
            %s734 = sphi %s725, %s725
          $region417: #{tpu_custom_call.1} parent=413 // loop_header_branch
            %731 = sbr.rel (%p729) target = $region421
          $region418: #{tpu_custom_call.1} parent=413 // loop_body
            %v735 = vld [vmem:[%s733] sm:%s726]
            %736 = vst [vmem:[%s734] sm:%s726] %v735
          $region419: #{tpu_custom_call.1} parent=413 // loop_footer
            %s732 = sadd.s32 1, %s728
          $region420: #{tpu_custom_call.1} parent=413 // loop_footer_branch
            %727 = sbr.rel target = $region416
          $region421: #{tpu_custom_call.1} parent=413 // loop_exit
            _
        $region414: #{tpu_custom_call.1} parent=398 // pred_fallthru
          _
      $region399: #{tpu_custom_call.1} parent=4 // pred_fallthru
        _
      // Predicated region
      $region400: #{tpu_custom_call.1} parent=4 // pred_check
        %p702 = pneg %p698
      $region401: #{tpu_custom_call.1} parent=4 // pred_check_branch
        %704 = sbr.rel (%p702) target = $region403
      $region402: #{tpu_custom_call.1} parent=4 // pred_region
        %s705 = sshllo.u32 0, 1
        loop: start=0, step=1, limit=1
        $region404: #{tpu_custom_call.1} parent=402 // loop_pre_header
          _
        $region405: #{tpu_custom_call.1} parent=402 // loop_header
          %s707 = sphi 0, %s711
          %p708 = scmp.ge.s32.totalorder %s707, 1
          %s712 = sphi %s694, %s694
          %s713 = sphi %s695, %s695
        $region406: #{tpu_custom_call.1} parent=402 // loop_header_branch
          %710 = sbr.rel (%p708) target = $region410
        $region407: #{tpu_custom_call.1} parent=402 // loop_body
          %v714 = vld [vmem:[%s712] sm:%s705]
          %715 = vst [vmem:[%s713] sm:%s705] %v714
        $region408: #{tpu_custom_call.1} parent=402 // loop_footer
          %s711 = sadd.s32 1, %s707
        $region409: #{tpu_custom_call.1} parent=402 // loop_footer_branch
          %706 = sbr.rel target = $region405
        $region410: #{tpu_custom_call.1} parent=402 // loop_exit
          _
      $region403: #{tpu_custom_call.1} parent=4 // pred_fallthru
        _
      // Predicated region
      $region422: #{tpu_custom_call.1} parent=4 // pred_check
        _
      $region423: #{tpu_custom_call.1} parent=4 // pred_check_branch
        %739 = sbr.rel (0) target = $region425
      $region424: #{tpu_custom_call.1} parent=4 // pred_region
        %740 = vsyncadd %s696, 16
      $region425: #{tpu_custom_call.1} parent=4 // pred_fallthru
        _
      %s741 = sadd.s32 %s14, 14
      %s742 = sld [smem:[#allocation5 + %s741]]
      %s743 = sadd.s32 %s23, 14
      %s744 = sadd.s32 %s23, 14
      %s745 = scalar_lea.vmem %s1, %s742
      %s746 = scalar_lea.vmem [#allocation2], %s743
      %s747 = scalar_lea.sflag [#allocation3], %s744
      %p749 = scmp.lt.u32.totalorder 1, 8
      %p750 = pneg %p749
      // Predicated region
      $region426: #{tpu_custom_call.1} parent=4 // pred_check
        _
      $region427: #{tpu_custom_call.1} parent=4 // pred_check_branch
        %752 = sbr.rel (%p749) target = $region429
      $region428: #{tpu_custom_call.1} parent=4 // pred_region
        %s767 = sand.u32 1, 7
        %p768 = scmp.eq.s32.totalorder %s767, 0
        %p769 = pneg %p768
        // Predicated region
        $region441: #{tpu_custom_call.1} parent=428 // pred_check
          _
        $region442: #{tpu_custom_call.1} parent=428 // pred_check_branch
          %771 = sbr.rel (%p768) target = $region444
        $region443: #{tpu_custom_call.1} parent=428 // pred_region
          %s772 = sand.u32 1, 7
          %s773 = ssub.s32 1, %s772
          %s774 = scalar_lea.vmem %s745, %s773
          %s775 = ssub.s32 1, %s772
          %s776 = scalar_lea.vmem %s746, %s775 [#allocation2]
          %s777 = sshllo.u32 0, %s772
          loop: start=0, step=1, limit=1
          $region445: #{tpu_custom_call.1} parent=443 // loop_pre_header
            _
          $region446: #{tpu_custom_call.1} parent=443 // loop_header
            %s779 = sphi 0, %s783
            %p780 = scmp.ge.s32.totalorder %s779, 1
            %s784 = sphi %s774, %s774
            %s785 = sphi %s776, %s776
          $region447: #{tpu_custom_call.1} parent=443 // loop_header_branch
            %782 = sbr.rel (%p780) target = $region451
          $region448: #{tpu_custom_call.1} parent=443 // loop_body
            %v786 = vld [vmem:[%s784] sm:%s777]
            %787 = vst [vmem:[%s785] sm:%s777] %v786
          $region449: #{tpu_custom_call.1} parent=443 // loop_footer
            %s783 = sadd.s32 1, %s779
          $region450: #{tpu_custom_call.1} parent=443 // loop_footer_branch
            %778 = sbr.rel target = $region446
          $region451: #{tpu_custom_call.1} parent=443 // loop_exit
            _
        $region444: #{tpu_custom_call.1} parent=428 // pred_fallthru
          _
      $region429: #{tpu_custom_call.1} parent=4 // pred_fallthru
        _
      // Predicated region
      $region430: #{tpu_custom_call.1} parent=4 // pred_check
        %p753 = pneg %p749
      $region431: #{tpu_custom_call.1} parent=4 // pred_check_branch
        %755 = sbr.rel (%p753) target = $region433
      $region432: #{tpu_custom_call.1} parent=4 // pred_region
        %s756 = sshllo.u32 0, 1
        loop: start=0, step=1, limit=1
        $region434: #{tpu_custom_call.1} parent=432 // loop_pre_header
          _
        $region435: #{tpu_custom_call.1} parent=432 // loop_header
          %s758 = sphi 0, %s762
          %p759 = scmp.ge.s32.totalorder %s758, 1
          %s763 = sphi %s745, %s745
          %s764 = sphi %s746, %s746
        $region436: #{tpu_custom_call.1} parent=432 // loop_header_branch
          %761 = sbr.rel (%p759) target = $region440
        $region437: #{tpu_custom_call.1} parent=432 // loop_body
          %v765 = vld [vmem:[%s763] sm:%s756]
          %766 = vst [vmem:[%s764] sm:%s756] %v765
        $region438: #{tpu_custom_call.1} parent=432 // loop_footer
          %s762 = sadd.s32 1, %s758
        $region439: #{tpu_custom_call.1} parent=432 // loop_footer_branch
          %757 = sbr.rel target = $region435
        $region440: #{tpu_custom_call.1} parent=432 // loop_exit
          _
      $region433: #{tpu_custom_call.1} parent=4 // pred_fallthru
        _
      // Predicated region
      $region452: #{tpu_custom_call.1} parent=4 // pred_check
        _
      $region453: #{tpu_custom_call.1} parent=4 // pred_check_branch
        %790 = sbr.rel (0) target = $region455
      $region454: #{tpu_custom_call.1} parent=4 // pred_region
        %791 = vsyncadd %s747, 16
      $region455: #{tpu_custom_call.1} parent=4 // pred_fallthru
        _
      %s792 = sadd.s32 %s14, 15
      %s793 = sld [smem:[#allocation5 + %s792]]
      %s794 = sadd.s32 %s23, 15
      %s795 = sadd.s32 %s23, 15
      %s796 = scalar_lea.vmem %s1, %s793
      %s797 = scalar_lea.vmem [#allocation2], %s794
      %s798 = scalar_lea.sflag [#allocation3], %s795
      %p800 = scmp.lt.u32.totalorder 1, 8
      %p801 = pneg %p800
      // Predicated region
      $region456: #{tpu_custom_call.1} parent=4 // pred_check
        _
      $region457: #{tpu_custom_call.1} parent=4 // pred_check_branch
        %803 = sbr.rel (%p800) target = $region459
      $region458: #{tpu_custom_call.1} parent=4 // pred_region
        %s818 = sand.u32 1, 7
        %p819 = scmp.eq.s32.totalorder %s818, 0
        %p820 = pneg %p819
        // Predicated region
        $region471: #{tpu_custom_call.1} parent=458 // pred_check
          _
        $region472: #{tpu_custom_call.1} parent=458 // pred_check_branch
          %822 = sbr.rel (%p819) target = $region474
        $region473: #{tpu_custom_call.1} parent=458 // pred_region
          %s823 = sand.u32 1, 7
          %s824 = ssub.s32 1, %s823
          %s825 = scalar_lea.vmem %s796, %s824
          %s826 = ssub.s32 1, %s823
          %s827 = scalar_lea.vmem %s797, %s826 [#allocation2]
          %s828 = sshllo.u32 0, %s823
          loop: start=0, step=1, limit=1
          $region475: #{tpu_custom_call.1} parent=473 // loop_pre_header
            _
          $region476: #{tpu_custom_call.1} parent=473 // loop_header
            %s830 = sphi 0, %s834
            %p831 = scmp.ge.s32.totalorder %s830, 1
            %s835 = sphi %s825, %s825
            %s836 = sphi %s827, %s827
          $region477: #{tpu_custom_call.1} parent=473 // loop_header_branch
            %833 = sbr.rel (%p831) target = $region481
          $region478: #{tpu_custom_call.1} parent=473 // loop_body
            %v837 = vld [vmem:[%s835] sm:%s828]
            %838 = vst [vmem:[%s836] sm:%s828] %v837
          $region479: #{tpu_custom_call.1} parent=473 // loop_footer
            %s834 = sadd.s32 1, %s830
          $region480: #{tpu_custom_call.1} parent=473 // loop_footer_branch
            %829 = sbr.rel target = $region476
          $region481: #{tpu_custom_call.1} parent=473 // loop_exit
            _
        $region474: #{tpu_custom_call.1} parent=458 // pred_fallthru
          _
      $region459: #{tpu_custom_call.1} parent=4 // pred_fallthru
        _
      // Predicated region
      $region460: #{tpu_custom_call.1} parent=4 // pred_check
        %p804 = pneg %p800
      $region461: #{tpu_custom_call.1} parent=4 // pred_check_branch
        %806 = sbr.rel (%p804) target = $region463
      $region462: #{tpu_custom_call.1} parent=4 // pred_region
        %s807 = sshllo.u32 0, 1
        loop: start=0, step=1, limit=1
        $region464: #{tpu_custom_call.1} parent=462 // loop_pre_header
          _
        $region465: #{tpu_custom_call.1} parent=462 // loop_header
          %s809 = sphi 0, %s813
          %p810 = scmp.ge.s32.totalorder %s809, 1
          %s814 = sphi %s796, %s796
          %s815 = sphi %s797, %s797
        $region466: #{tpu_custom_call.1} parent=462 // loop_header_branch
          %812 = sbr.rel (%p810) target = $region470
        $region467: #{tpu_custom_call.1} parent=462 // loop_body
          %v816 = vld [vmem:[%s814] sm:%s807]
          %817 = vst [vmem:[%s815] sm:%s807] %v816
        $region468: #{tpu_custom_call.1} parent=462 // loop_footer
          %s813 = sadd.s32 1, %s809
        $region469: #{tpu_custom_call.1} parent=462 // loop_footer_branch
          %808 = sbr.rel target = $region465
        $region470: #{tpu_custom_call.1} parent=462 // loop_exit
          _
      $region463: #{tpu_custom_call.1} parent=4 // pred_fallthru
        _
      // Predicated region
      $region482: #{tpu_custom_call.1} parent=4 // pred_check
        _
      $region483: #{tpu_custom_call.1} parent=4 // pred_check_branch
        %841 = sbr.rel (0) target = $region485
      $region484: #{tpu_custom_call.1} parent=4 // pred_region
        %842 = vsyncadd %s798, 16
      $region485: #{tpu_custom_call.1} parent=4 // pred_fallthru
        _
    $region5: #{tpu_custom_call.1} parent=1 // pred_fallthru
      _
    loop: start=0, step=1, limit=16
    $region486: #{tpu_custom_call.1} parent=1 // loop_pre_header
      _
    $region487: #{tpu_custom_call.1} parent=1 // loop_header
      %s844 = sphi 0, %s848
      %p845 = scmp.ge.s32.totalorder %s844, 16
    $region488: #{tpu_custom_call.1} parent=1 // loop_header_branch
      %847 = sbr.rel (%p845) target = $region492
    $region489: #{tpu_custom_call.1} parent=1 // loop_body
      %s849 = sand.u32 %s844, 15
      %s850 = sadd.s32 %s23, %s849
      %s851 = scalar_lea.sflag [#allocation3], %s850
      %s852 = smul.u32 1, 1
      %s853 = sshll.u32 %s852, 4
      %854 = dma.done %s851, %s853
      %s855 = sadd.s32 %s844, 16
      %p856 = scmp.lt.s32.totalorder %s855, 16
      // Predicated region
      $region493: #{tpu_custom_call.1} parent=489 // pred_check
        %p857 = pneg %p856
      $region494: #{tpu_custom_call.1} parent=489 // pred_check_branch
        %859 = sbr.rel (%p857) target = $region496
      $region495: #{tpu_custom_call.1} parent=489 // pred_region
        %s860 = sadd.s32 %s14, %s844
        %s861 = sadd.s32 %s860, 16
        %s862 = sld [smem:[#allocation5 + %s861]]
        %s863 = sadd.s32 %s23, %s855
        %s864 = sand.u32 %s855, 15
        %s865 = sadd.s32 %s23, %s864
        %s866 = scalar_lea.vmem %s1, %s862
        %s867 = scalar_lea.vmem [#allocation2], %s863
        %s868 = scalar_lea.sflag [#allocation3], %s865
        %p870 = scmp.lt.u32.totalorder 1, 8
        %p871 = pneg %p870
        // Predicated region
        $region497: #{tpu_custom_call.1} parent=495 // pred_check
          _
        $region498: #{tpu_custom_call.1} parent=495 // pred_check_branch
          %873 = sbr.rel (%p870) target = $region500
        $region499: #{tpu_custom_call.1} parent=495 // pred_region
          %s888 = sand.u32 1, 7
          %p889 = scmp.eq.s32.totalorder %s888, 0
          %p890 = pneg %p889
          // Predicated region
          $region512: #{tpu_custom_call.1} parent=499 // pred_check
            _
          $region513: #{tpu_custom_call.1} parent=499 // pred_check_branch
            %892 = sbr.rel (%p889) target = $region515
          $region514: #{tpu_custom_call.1} parent=499 // pred_region
            %s893 = sand.u32 1, 7
            %s894 = ssub.s32 1, %s893
            %s895 = scalar_lea.vmem %s866, %s894
            %s896 = ssub.s32 1, %s893
            %s897 = scalar_lea.vmem %s867, %s896 [#allocation2]
            %s898 = sshllo.u32 0, %s893
            loop: start=0, step=1, limit=1
            $region516: #{tpu_custom_call.1} parent=514 // loop_pre_header
              _
            $region517: #{tpu_custom_call.1} parent=514 // loop_header
              %s900 = sphi 0, %s904
              %p901 = scmp.ge.s32.totalorder %s900, 1
              %s905 = sphi %s895, %s895
              %s906 = sphi %s897, %s897
            $region518: #{tpu_custom_call.1} parent=514 // loop_header_branch
              %903 = sbr.rel (%p901) target = $region522
            $region519: #{tpu_custom_call.1} parent=514 // loop_body
              %v907 = vld [vmem:[%s905] sm:%s898]
              %908 = vst [vmem:[%s906] sm:%s898] %v907
            $region520: #{tpu_custom_call.1} parent=514 // loop_footer
              %s904 = sadd.s32 1, %s900
            $region521: #{tpu_custom_call.1} parent=514 // loop_footer_branch
              %899 = sbr.rel target = $region517
            $region522: #{tpu_custom_call.1} parent=514 // loop_exit
              _
          $region515: #{tpu_custom_call.1} parent=499 // pred_fallthru
            _
        $region500: #{tpu_custom_call.1} parent=495 // pred_fallthru
          _
        // Predicated region
        $region501: #{tpu_custom_call.1} parent=495 // pred_check
          %p874 = pneg %p870
        $region502: #{tpu_custom_call.1} parent=495 // pred_check_branch
          %876 = sbr.rel (%p874) target = $region504
        $region503: #{tpu_custom_call.1} parent=495 // pred_region
          %s877 = sshllo.u32 0, 1
          loop: start=0, step=1, limit=1
          $region505: #{tpu_custom_call.1} parent=503 // loop_pre_header
            _
          $region506: #{tpu_custom_call.1} parent=503 // loop_header
            %s879 = sphi 0, %s883
            %p880 = scmp.ge.s32.totalorder %s879, 1
            %s884 = sphi %s866, %s866
            %s885 = sphi %s867, %s867
          $region507: #{tpu_custom_call.1} parent=503 // loop_header_branch
            %882 = sbr.rel (%p880) target = $region511
          $region508: #{tpu_custom_call.1} parent=503 // loop_body
            %v886 = vld [vmem:[%s884] sm:%s877]
            %887 = vst [vmem:[%s885] sm:%s877] %v886
          $region509: #{tpu_custom_call.1} parent=503 // loop_footer
            %s883 = sadd.s32 1, %s879
          $region510: #{tpu_custom_call.1} parent=503 // loop_footer_branch
            %878 = sbr.rel target = $region506
          $region511: #{tpu_custom_call.1} parent=503 // loop_exit
            _
        $region504: #{tpu_custom_call.1} parent=495 // pred_fallthru
          _
        // Predicated region
        $region523: #{tpu_custom_call.1} parent=495 // pred_check
          _
        $region524: #{tpu_custom_call.1} parent=495 // pred_check_branch
          %911 = sbr.rel (0) target = $region526
        $region525: #{tpu_custom_call.1} parent=495 // pred_region
          %912 = vsyncadd %s868, 16
        $region526: #{tpu_custom_call.1} parent=495 // pred_fallthru
          _
      $region496: #{tpu_custom_call.1} parent=489 // pred_fallthru
        _
    $region490: #{tpu_custom_call.1} parent=1 // loop_footer
      %s848 = sadd.s32 1, %s844
    $region491: #{tpu_custom_call.1} parent=1 // loop_footer_branch
      %843 = sbr.rel target = $region487
    $region492: #{tpu_custom_call.1} parent=1 // loop_exit
      _
    %s913 = scalar_lea.vmem [#allocation2], %s23
    %v914 = vld [vmem:[%s913] sm:$0xff]
    %v915 = vld [vmem:[%s913 + $0x8] sm:$0xff]
    %v916 = vmul.f32 %v914, 0.17677669
    %v917 = vmul.f32 %v915, 0.17677669
    %vm918 = vcmask 261120
    %919 = vst.msk [vmem:[#allocation6] sm:$0xff] %vm918, %v916
    %920 = vst.msk [vmem:[#allocation6 + $0x8] sm:$0xff] %vm918, %v917
    %s921 = sadd.s32 0, 1
    %p922 = scmp.lt.s32.totalorder %s921, 1
    // Predicated region
    $region527: #{tpu_custom_call.1} parent=1 // pred_check
      %p923 = pneg %p922
    $region528: #{tpu_custom_call.1} parent=1 // pred_check_branch
      %925 = sbr.rel (%p923) target = $region530
    $region529: #{tpu_custom_call.1} parent=1 // pred_region
      %s926 = sadd.s32 %s14, 16
      %s927 = sld [smem:[#allocation5 + %s926]]
      %s928 = scalar_lea.vmem %s1, %s927
      %s929 = scalar_lea.vmem [#allocation2], %s25
      %s930 = scalar_lea.sflag [#allocation3], %s25
      %p932 = scmp.lt.u32.totalorder 1, 8
      %p933 = pneg %p932
      // Predicated region
      $region531: #{tpu_custom_call.1} parent=529 // pred_check
        _
      $region532: #{tpu_custom_call.1} parent=529 // pred_check_branch
        %935 = sbr.rel (%p932) target = $region534
      $region533: #{tpu_custom_call.1} parent=529 // pred_region
        %s950 = sand.u32 1, 7
        %p951 = scmp.eq.s32.totalorder %s950, 0
        %p952 = pneg %p951
        // Predicated region
        $region546: #{tpu_custom_call.1} parent=533 // pred_check
          _
        $region547: #{tpu_custom_call.1} parent=533 // pred_check_branch
          %954 = sbr.rel (%p951) target = $region549
        $region548: #{tpu_custom_call.1} parent=533 // pred_region
          %s955 = sand.u32 1, 7
          %s956 = ssub.s32 1, %s955
          %s957 = scalar_lea.vmem %s928, %s956
          %s958 = ssub.s32 1, %s955
          %s959 = scalar_lea.vmem %s929, %s958 [#allocation2]
          %s960 = sshllo.u32 0, %s955
          loop: start=0, step=1, limit=1
          $region550: #{tpu_custom_call.1} parent=548 // loop_pre_header
            _
          $region551: #{tpu_custom_call.1} parent=548 // loop_header
            %s962 = sphi 0, %s966
            %p963 = scmp.ge.s32.totalorder %s962, 1
            %s967 = sphi %s957, %s957
            %s968 = sphi %s959, %s959
          $region552: #{tpu_custom_call.1} parent=548 // loop_header_branch
            %965 = sbr.rel (%p963) target = $region556
          $region553: #{tpu_custom_call.1} parent=548 // loop_body
            %v969 = vld [vmem:[%s967] sm:%s960]
            %970 = vst [vmem:[%s968] sm:%s960] %v969
          $region554: #{tpu_custom_call.1} parent=548 // loop_footer
            %s966 = sadd.s32 1, %s962
          $region555: #{tpu_custom_call.1} parent=548 // loop_footer_branch
            %961 = sbr.rel target = $region551
          $region556: #{tpu_custom_call.1} parent=548 // loop_exit
            _
        $region549: #{tpu_custom_call.1} parent=533 // pred_fallthru
          _
      $region534: #{tpu_custom_call.1} parent=529 // pred_fallthru
        _
      // Predicated region
      $region535: #{tpu_custom_call.1} parent=529 // pred_check
        %p936 = pneg %p932
      $region536: #{tpu_custom_call.1} parent=529 // pred_check_branch
        %938 = sbr.rel (%p936) target = $region538
      $region537: #{tpu_custom_call.1} parent=529 // pred_region
        %s939 = sshllo.u32 0, 1
        loop: start=0, step=1, limit=1
        $region539: #{tpu_custom_call.1} parent=537 // loop_pre_header
          _
        $region540: #{tpu_custom_call.1} parent=537 // loop_header
          %s941 = sphi 0, %s945
          %p942 = scmp.ge.s32.totalorder %s941, 1
          %s946 = sphi %s928, %s928
          %s947 = sphi %s929, %s929
        $region541: #{tpu_custom_call.1} parent=537 // loop_header_branch
          %944 = sbr.rel (%p942) target = $region545
        $region542: #{tpu_custom_call.1} parent=537 // loop_body
          %v948 = vld [vmem:[%s946] sm:%s939]
          %949 = vst [vmem:[%s947] sm:%s939] %v948
        $region543: #{tpu_custom_call.1} parent=537 // loop_footer
          %s945 = sadd.s32 1, %s941
        $region544: #{tpu_custom_call.1} parent=537 // loop_footer_branch
          %940 = sbr.rel target = $region540
        $region545: #{tpu_custom_call.1} parent=537 // loop_exit
          _
      $region538: #{tpu_custom_call.1} parent=529 // pred_fallthru
        _
      // Predicated region
      $region557: #{tpu_custom_call.1} parent=529 // pred_check
        _
      $region558: #{tpu_custom_call.1} parent=529 // pred_check_branch
        %973 = sbr.rel (0) target = $region560
      $region559: #{tpu_custom_call.1} parent=529 // pred_region
        %974 = vsyncadd %s930, 16
      $region560: #{tpu_custom_call.1} parent=529 // pred_fallthru
        _
      %s975 = sadd.s32 %s14, 17
      %s976 = sld [smem:[#allocation5 + %s975]]
      %s977 = sadd.s32 %s25, 1
      %s978 = sadd.s32 %s25, 1
      %s979 = scalar_lea.vmem %s1, %s976
      %s980 = scalar_lea.vmem [#allocation2], %s977
      %s981 = scalar_lea.sflag [#allocation3], %s978
      %p983 = scmp.lt.u32.totalorder 1, 8
      %p984 = pneg %p983
      // Predicated region
      $region561: #{tpu_custom_call.1} parent=529 // pred_check
        _
      $region562: #{tpu_custom_call.1} parent=529 // pred_check_branch
        %986 = sbr.rel (%p983) target = $region564
      $region563: #{tpu_custom_call.1} parent=529 // pred_region
        %s1001 = sand.u32 1, 7
        %p1002 = scmp.eq.s32.totalorder %s1001, 0
        %p1003 = pneg %p1002
        // Predicated region
        $region576: #{tpu_custom_call.1} parent=563 // pred_check
          _
        $region577: #{tpu_custom_call.1} parent=563 // pred_check_branch
          %1005 = sbr.rel (%p1002) target = $region579
        $region578: #{tpu_custom_call.1} parent=563 // pred_region
          %s1006 = sand.u32 1, 7
          %s1007 = ssub.s32 1, %s1006
          %s1008 = scalar_lea.vmem %s979, %s1007
          %s1009 = ssub.s32 1, %s1006
          %s1010 = scalar_lea.vmem %s980, %s1009 [#allocation2]
          %s1011 = sshllo.u32 0, %s1006
          loop: start=0, step=1, limit=1
          $region580: #{tpu_custom_call.1} parent=578 // loop_pre_header
            _
          $region581: #{tpu_custom_call.1} parent=578 // loop_header
            %s1013 = sphi 0, %s1017
            %p1014 = scmp.ge.s32.totalorder %s1013, 1
            %s1018 = sphi %s1008, %s1008
            %s1019 = sphi %s1010, %s1010
          $region582: #{tpu_custom_call.1} parent=578 // loop_header_branch
            %1016 = sbr.rel (%p1014) target = $region586
          $region583: #{tpu_custom_call.1} parent=578 // loop_body
            %v1020 = vld [vmem:[%s1018] sm:%s1011]
            %1021 = vst [vmem:[%s1019] sm:%s1011] %v1020
          $region584: #{tpu_custom_call.1} parent=578 // loop_footer
            %s1017 = sadd.s32 1, %s1013
          $region585: #{tpu_custom_call.1} parent=578 // loop_footer_branch
            %1012 = sbr.rel target = $region581
          $region586: #{tpu_custom_call.1} parent=578 // loop_exit
            _
        $region579: #{tpu_custom_call.1} parent=563 // pred_fallthru
          _
      $region564: #{tpu_custom_call.1} parent=529 // pred_fallthru
        _
      // Predicated region
      $region565: #{tpu_custom_call.1} parent=529 // pred_check
        %p987 = pneg %p983
      $region566: #{tpu_custom_call.1} parent=529 // pred_check_branch
        %989 = sbr.rel (%p987) target = $region568
      $region567: #{tpu_custom_call.1} parent=529 // pred_region
        %s990 = sshllo.u32 0, 1
        loop: start=0, step=1, limit=1
        $region569: #{tpu_custom_call.1} parent=567 // loop_pre_header
          _
        $region570: #{tpu_custom_call.1} parent=567 // loop_header
          %s992 = sphi 0, %s996
          %p993 = scmp.ge.s32.totalorder %s992, 1
          %s997 = sphi %s979, %s979
          %s998 = sphi %s980, %s980
        $region571: #{tpu_custom_call.1} parent=567 // loop_header_branch
          %995 = sbr.rel (%p993) target = $region575
        $region572: #{tpu_custom_call.1} parent=567 // loop_body
          %v999 = vld [vmem:[%s997] sm:%s990]
          %1000 = vst [vmem:[%s998] sm:%s990] %v999
        $region573: #{tpu_custom_call.1} parent=567 // loop_footer
          %s996 = sadd.s32 1, %s992
        $region574: #{tpu_custom_call.1} parent=567 // loop_footer_branch
          %991 = sbr.rel target = $region570
        $region575: #{tpu_custom_call.1} parent=567 // loop_exit
          _
      $region568: #{tpu_custom_call.1} parent=529 // pred_fallthru
        _
      // Predicated region
      $region587: #{tpu_custom_call.1} parent=529 // pred_check
        _
      $region588: #{tpu_custom_call.1} parent=529 // pred_check_branch
        %1024 = sbr.rel (0) target = $region590
      $region589: #{tpu_custom_call.1} parent=529 // pred_region
        %1025 = vsyncadd %s981, 16
      $region590: #{tpu_custom_call.1} parent=529 // pred_fallthru
        _
      %s1026 = sadd.s32 %s14, 18
      %s1027 = sld [smem:[#allocation5 + %s1026]]
      %s1028 = sadd.s32 %s25, 2
      %s1029 = sadd.s32 %s25, 2
      %s1030 = scalar_lea.vmem %s1, %s1027
      %s1031 = scalar_lea.vmem [#allocation2], %s1028
      %s1032 = scalar_lea.sflag [#allocation3], %s1029
      %p1034 = scmp.lt.u32.totalorder 1, 8
      %p1035 = pneg %p1034
      // Predicated region
      $region591: #{tpu_custom_call.1} parent=529 // pred_check
        _
      $region592: #{tpu_custom_call.1} parent=529 // pred_check_branch
        %1037 = sbr.rel (%p1034) target = $region594
      $region593: #{tpu_custom_call.1} parent=529 // pred_region
        %s1052 = sand.u32 1, 7
        %p1053 = scmp.eq.s32.totalorder %s1052, 0
        %p1054 = pneg %p1053
        // Predicated region
        $region606: #{tpu_custom_call.1} parent=593 // pred_check
          _
        $region607: #{tpu_custom_call.1} parent=593 // pred_check_branch
          %1056 = sbr.rel (%p1053) target = $region609
        $region608: #{tpu_custom_call.1} parent=593 // pred_region
          %s1057 = sand.u32 1, 7
          %s1058 = ssub.s32 1, %s1057
          %s1059 = scalar_lea.vmem %s1030, %s1058
          %s1060 = ssub.s32 1, %s1057
          %s1061 = scalar_lea.vmem %s1031, %s1060 [#allocation2]
          %s1062 = sshllo.u32 0, %s1057
          loop: start=0, step=1, limit=1
          $region610: #{tpu_custom_call.1} parent=608 // loop_pre_header
            _
          $region611: #{tpu_custom_call.1} parent=608 // loop_header
            %s1064 = sphi 0, %s1068
            %p1065 = scmp.ge.s32.totalorder %s1064, 1
            %s1069 = sphi %s1059, %s1059
            %s1070 = sphi %s1061, %s1061
          $region612: #{tpu_custom_call.1} parent=608 // loop_header_branch
            %1067 = sbr.rel (%p1065) target = $region616
          $region613: #{tpu_custom_call.1} parent=608 // loop_body
            %v1071 = vld [vmem:[%s1069] sm:%s1062]
            %1072 = vst [vmem:[%s1070] sm:%s1062] %v1071
          $region614: #{tpu_custom_call.1} parent=608 // loop_footer
            %s1068 = sadd.s32 1, %s1064
          $region615: #{tpu_custom_call.1} parent=608 // loop_footer_branch
            %1063 = sbr.rel target = $region611
          $region616: #{tpu_custom_call.1} parent=608 // loop_exit
            _
        $region609: #{tpu_custom_call.1} parent=593 // pred_fallthru
          _
      $region594: #{tpu_custom_call.1} parent=529 // pred_fallthru
        _
      // Predicated region
      $region595: #{tpu_custom_call.1} parent=529 // pred_check
        %p1038 = pneg %p1034
      $region596: #{tpu_custom_call.1} parent=529 // pred_check_branch
        %1040 = sbr.rel (%p1038) target = $region598
      $region597: #{tpu_custom_call.1} parent=529 // pred_region
        %s1041 = sshllo.u32 0, 1
        loop: start=0, step=1, limit=1
        $region599: #{tpu_custom_call.1} parent=597 // loop_pre_header
          _
        $region600: #{tpu_custom_call.1} parent=597 // loop_header
          %s1043 = sphi 0, %s1047
          %p1044 = scmp.ge.s32.totalorder %s1043, 1
          %s1048 = sphi %s1030, %s1030
          %s1049 = sphi %s1031, %s1031
        $region601: #{tpu_custom_call.1} parent=597 // loop_header_branch
          %1046 = sbr.rel (%p1044) target = $region605
        $region602: #{tpu_custom_call.1} parent=597 // loop_body
          %v1050 = vld [vmem:[%s1048] sm:%s1041]
          %1051 = vst [vmem:[%s1049] sm:%s1041] %v1050
        $region603: #{tpu_custom_call.1} parent=597 // loop_footer
          %s1047 = sadd.s32 1, %s1043
        $region604: #{tpu_custom_call.1} parent=597 // loop_footer_branch
          %1042 = sbr.rel target = $region600
        $region605: #{tpu_custom_call.1} parent=597 // loop_exit
          _
      $region598: #{tpu_custom_call.1} parent=529 // pred_fallthru
        _
      // Predicated region
      $region617: #{tpu_custom_call.1} parent=529 // pred_check
        _
      $region618: #{tpu_custom_call.1} parent=529 // pred_check_branch
        %1075 = sbr.rel (0) target = $region620
      $region619: #{tpu_custom_call.1} parent=529 // pred_region
        %1076 = vsyncadd %s1032, 16
      $region620: #{tpu_custom_call.1} parent=529 // pred_fallthru
        _
      %s1077 = sadd.s32 %s14, 19
      %s1078 = sld [smem:[#allocation5 + %s1077]]
      %s1079 = sadd.s32 %s25, 3
      %s1080 = sadd.s32 %s25, 3
      %s1081 = scalar_lea.vmem %s1, %s1078
      %s1082 = scalar_lea.vmem [#allocation2], %s1079
      %s1083 = scalar_lea.sflag [#allocation3], %s1080
      %p1085 = scmp.lt.u32.totalorder 1, 8
      %p1086 = pneg %p1085
      // Predicated region
      $region621: #{tpu_custom_call.1} parent=529 // pred_check
        _
      $region622: #{tpu_custom_call.1} parent=529 // pred_check_branch
        %1088 = sbr.rel (%p1085) target = $region624
      $region623: #{tpu_custom_call.1} parent=529 // pred_region
        %s1103 = sand.u32 1, 7
        %p1104 = scmp.eq.s32.totalorder %s1103, 0
        %p1105 = pneg %p1104
        // Predicated region
        $region636: #{tpu_custom_call.1} parent=623 // pred_check
          _
        $region637: #{tpu_custom_call.1} parent=623 // pred_check_branch
          %1107 = sbr.rel (%p1104) target = $region639
        $region638: #{tpu_custom_call.1} parent=623 // pred_region
          %s1108 = sand.u32 1, 7
          %s1109 = ssub.s32 1, %s1108
          %s1110 = scalar_lea.vmem %s1081, %s1109
          %s1111 = ssub.s32 1, %s1108
          %s1112 = scalar_lea.vmem %s1082, %s1111 [#allocation2]
          %s1113 = sshllo.u32 0, %s1108
          loop: start=0, step=1, limit=1
          $region640: #{tpu_custom_call.1} parent=638 // loop_pre_header
            _
          $region641: #{tpu_custom_call.1} parent=638 // loop_header
            %s1115 = sphi 0, %s1119
            %p1116 = scmp.ge.s32.totalorder %s1115, 1
            %s1120 = sphi %s1110, %s1110
            %s1121 = sphi %s1112, %s1112
          $region642: #{tpu_custom_call.1} parent=638 // loop_header_branch
            %1118 = sbr.rel (%p1116) target = $region646
          $region643: #{tpu_custom_call.1} parent=638 // loop_body
            %v1122 = vld [vmem:[%s1120] sm:%s1113]
            %1123 = vst [vmem:[%s1121] sm:%s1113] %v1122
          $region644: #{tpu_custom_call.1} parent=638 // loop_footer
            %s1119 = sadd.s32 1, %s1115
          $region645: #{tpu_custom_call.1} parent=638 // loop_footer_branch
            %1114 = sbr.rel target = $region641
          $region646: #{tpu_custom_call.1} parent=638 // loop_exit
            _
        $region639: #{tpu_custom_call.1} parent=623 // pred_fallthru
          _
      $region624: #{tpu_custom_call.1} parent=529 // pred_fallthru
        _
      // Predicated region
      $region625: #{tpu_custom_call.1} parent=529 // pred_check
        %p1089 = pneg %p1085
      $region626: #{tpu_custom_call.1} parent=529 // pred_check_branch
        %1091 = sbr.rel (%p1089) target = $region628
      $region627: #{tpu_custom_call.1} parent=529 // pred_region
        %s1092 = sshllo.u32 0, 1
        loop: start=0, step=1, limit=1
        $region629: #{tpu_custom_call.1} parent=627 // loop_pre_header
          _
        $region630: #{tpu_custom_call.1} parent=627 // loop_header
          %s1094 = sphi 0, %s1098
          %p1095 = scmp.ge.s32.totalorder %s1094, 1
          %s1099 = sphi %s1081, %s1081
          %s1100 = sphi %s1082, %s1082
        $region631: #{tpu_custom_call.1} parent=627 // loop_header_branch
          %1097 = sbr.rel (%p1095) target = $region635
        $region632: #{tpu_custom_call.1} parent=627 // loop_body
          %v1101 = vld [vmem:[%s1099] sm:%s1092]
          %1102 = vst [vmem:[%s1100] sm:%s1092] %v1101
        $region633: #{tpu_custom_call.1} parent=627 // loop_footer
          %s1098 = sadd.s32 1, %s1094
        $region634: #{tpu_custom_call.1} parent=627 // loop_footer_branch
          %1093 = sbr.rel target = $region630
        $region635: #{tpu_custom_call.1} parent=627 // loop_exit
          _
      $region628: #{tpu_custom_call.1} parent=529 // pred_fallthru
        _
      // Predicated region
      $region647: #{tpu_custom_call.1} parent=529 // pred_check
        _
      $region648: #{tpu_custom_call.1} parent=529 // pred_check_branch
        %1126 = sbr.rel (0) target = $region650
      $region649: #{tpu_custom_call.1} parent=529 // pred_region
        %1127 = vsyncadd %s1083, 16
      $region650: #{tpu_custom_call.1} parent=529 // pred_fallthru
        _
      %s1128 = sadd.s32 %s14, 20
      %s1129 = sld [smem:[#allocation5 + %s1128]]
      %s1130 = sadd.s32 %s25, 4
      %s1131 = sadd.s32 %s25, 4
      %s1132 = scalar_lea.vmem %s1, %s1129
      %s1133 = scalar_lea.vmem [#allocation2], %s1130
      %s1134 = scalar_lea.sflag [#allocation3], %s1131
      %p1136 = scmp.lt.u32.totalorder 1, 8
      %p1137 = pneg %p1136
      // Predicated region
      $region651: #{tpu_custom_call.1} parent=529 // pred_check
        _
      $region652: #{tpu_custom_call.1} parent=529 // pred_check_branch
        %1139 = sbr.rel (%p1136) target = $region654
      $region653: #{tpu_custom_call.1} parent=529 // pred_region
        %s1154 = sand.u32 1, 7
        %p1155 = scmp.eq.s32.totalorder %s1154, 0
        %p1156 = pneg %p1155
        // Predicated region
        $region666: #{tpu_custom_call.1} parent=653 // pred_check
          _
        $region667: #{tpu_custom_call.1} parent=653 // pred_check_branch
          %1158 = sbr.rel (%p1155) target = $region669
        $region668: #{tpu_custom_call.1} parent=653 // pred_region
          %s1159 = sand.u32 1, 7
          %s1160 = ssub.s32 1, %s1159
          %s1161 = scalar_lea.vmem %s1132, %s1160
          %s1162 = ssub.s32 1, %s1159
          %s1163 = scalar_lea.vmem %s1133, %s1162 [#allocation2]
          %s1164 = sshllo.u32 0, %s1159
          loop: start=0, step=1, limit=1
          $region670: #{tpu_custom_call.1} parent=668 // loop_pre_header
            _
          $region671: #{tpu_custom_call.1} parent=668 // loop_header
            %s1166 = sphi 0, %s1170
            %p1167 = scmp.ge.s32.totalorder %s1166, 1
            %s1171 = sphi %s1161, %s1161
            %s1172 = sphi %s1163, %s1163
          $region672: #{tpu_custom_call.1} parent=668 // loop_header_branch
            %1169 = sbr.rel (%p1167) target = $region676
          $region673: #{tpu_custom_call.1} parent=668 // loop_body
            %v1173 = vld [vmem:[%s1171] sm:%s1164]
            %1174 = vst [vmem:[%s1172] sm:%s1164] %v1173
          $region674: #{tpu_custom_call.1} parent=668 // loop_footer
            %s1170 = sadd.s32 1, %s1166
          $region675: #{tpu_custom_call.1} parent=668 // loop_footer_branch
            %1165 = sbr.rel target = $region671
          $region676: #{tpu_custom_call.1} parent=668 // loop_exit
            _
        $region669: #{tpu_custom_call.1} parent=653 // pred_fallthru
          _
      $region654: #{tpu_custom_call.1} parent=529 // pred_fallthru
        _
      // Predicated region
      $region655: #{tpu_custom_call.1} parent=529 // pred_check
        %p1140 = pneg %p1136
      $region656: #{tpu_custom_call.1} parent=529 // pred_check_branch
        %1142 = sbr.rel (%p1140) target = $region658
      $region657: #{tpu_custom_call.1} parent=529 // pred_region
        %s1143 = sshllo.u32 0, 1
        loop: start=0, step=1, limit=1
        $region659: #{tpu_custom_call.1} parent=657 // loop_pre_header
          _
        $region660: #{tpu_custom_call.1} parent=657 // loop_header
          %s1145 = sphi 0, %s1149
          %p1146 = scmp.ge.s32.totalorder %s1145, 1
          %s1150 = sphi %s1132, %s1132
          %s1151 = sphi %s1133, %s1133
        $region661: #{tpu_custom_call.1} parent=657 // loop_header_branch
          %1148 = sbr.rel (%p1146) target = $region665
        $region662: #{tpu_custom_call.1} parent=657 // loop_body
          %v1152 = vld [vmem:[%s1150] sm:%s1143]
          %1153 = vst [vmem:[%s1151] sm:%s1143] %v1152
        $region663: #{tpu_custom_call.1} parent=657 // loop_footer
          %s1149 = sadd.s32 1, %s1145
        $region664: #{tpu_custom_call.1} parent=657 // loop_footer_branch
          %1144 = sbr.rel target = $region660
        $region665: #{tpu_custom_call.1} parent=657 // loop_exit
          _
      $region658: #{tpu_custom_call.1} parent=529 // pred_fallthru
        _
      // Predicated region
      $region677: #{tpu_custom_call.1} parent=529 // pred_check
        _
      $region678: #{tpu_custom_call.1} parent=529 // pred_check_branch
        %1177 = sbr.rel (0) target = $region680
      $region679: #{tpu_custom_call.1} parent=529 // pred_region
        %1178 = vsyncadd %s1134, 16
      $region680: #{tpu_custom_call.1} parent=529 // pred_fallthru
        _
      %s1179 = sadd.s32 %s14, 21
      %s1180 = sld [smem:[#allocation5 + %s1179]]
      %s1181 = sadd.s32 %s25, 5
      %s1182 = sadd.s32 %s25, 5
      %s1183 = scalar_lea.vmem %s1, %s1180
      %s1184 = scalar_lea.vmem [#allocation2], %s1181
      %s1185 = scalar_lea.sflag [#allocation3], %s1182
      %p1187 = scmp.lt.u32.totalorder 1, 8
      %p1188 = pneg %p1187
      // Predicated region
      $region681: #{tpu_custom_call.1} parent=529 // pred_check
        _
      $region682: #{tpu_custom_call.1} parent=529 // pred_check_branch
        %1190 = sbr.rel (%p1187) target = $region684
      $region683: #{tpu_custom_call.1} parent=529 // pred_region
        %s1205 = sand.u32 1, 7
        %p1206 = scmp.eq.s32.totalorder %s1205, 0
        %p1207 = pneg %p1206
        // Predicated region
        $region696: #{tpu_custom_call.1} parent=683 // pred_check
          _
        $region697: #{tpu_custom_call.1} parent=683 // pred_check_branch
          %1209 = sbr.rel (%p1206) target = $region699
        $region698: #{tpu_custom_call.1} parent=683 // pred_region
          %s1210 = sand.u32 1, 7
          %s1211 = ssub.s32 1, %s1210
          %s1212 = scalar_lea.vmem %s1183, %s1211
          %s1213 = ssub.s32 1, %s1210
          %s1214 = scalar_lea.vmem %s1184, %s1213 [#allocation2]
          %s1215 = sshllo.u32 0, %s1210
          loop: start=0, step=1, limit=1
          $region700: #{tpu_custom_call.1} parent=698 // loop_pre_header
            _
          $region701: #{tpu_custom_call.1} parent=698 // loop_header
            %s1217 = sphi 0, %s1221
            %p1218 = scmp.ge.s32.totalorder %s1217, 1
            %s1222 = sphi %s1212, %s1212
            %s1223 = sphi %s1214, %s1214
          $region702: #{tpu_custom_call.1} parent=698 // loop_header_branch
            %1220 = sbr.rel (%p1218) target = $region706
          $region703: #{tpu_custom_call.1} parent=698 // loop_body
            %v1224 = vld [vmem:[%s1222] sm:%s1215]
            %1225 = vst [vmem:[%s1223] sm:%s1215] %v1224
          $region704: #{tpu_custom_call.1} parent=698 // loop_footer
            %s1221 = sadd.s32 1, %s1217
          $region705: #{tpu_custom_call.1} parent=698 // loop_footer_branch
            %1216 = sbr.rel target = $region701
          $region706: #{tpu_custom_call.1} parent=698 // loop_exit
            _
        $region699: #{tpu_custom_call.1} parent=683 // pred_fallthru
          _
      $region684: #{tpu_custom_call.1} parent=529 // pred_fallthru
        _
      // Predicated region
      $region685: #{tpu_custom_call.1} parent=529 // pred_check
        %p1191 = pneg %p1187
      $region686: #{tpu_custom_call.1} parent=529 // pred_check_branch
        %1193 = sbr.rel (%p1191) target = $region688
      $region687: #{tpu_custom_call.1} parent=529 // pred_region
        %s1194 = sshllo.u32 0, 1
        loop: start=0, step=1, limit=1
        $region689: #{tpu_custom_call.1} parent=687 // loop_pre_header
          _
        $region690: #{tpu_custom_call.1} parent=687 // loop_header
          %s1196 = sphi 0, %s1200
          %p1197 = scmp.ge.s32.totalorder %s1196, 1
          %s1201 = sphi %s1183, %s1183
          %s1202 = sphi %s1184, %s1184
        $region691: #{tpu_custom_call.1} parent=687 // loop_header_branch
          %1199 = sbr.rel (%p1197) target = $region695
        $region692: #{tpu_custom_call.1} parent=687 // loop_body
          %v1203 = vld [vmem:[%s1201] sm:%s1194]
          %1204 = vst [vmem:[%s1202] sm:%s1194] %v1203
        $region693: #{tpu_custom_call.1} parent=687 // loop_footer
          %s1200 = sadd.s32 1, %s1196
        $region694: #{tpu_custom_call.1} parent=687 // loop_footer_branch
          %1195 = sbr.rel target = $region690
        $region695: #{tpu_custom_call.1} parent=687 // loop_exit
          _
      $region688: #{tpu_custom_call.1} parent=529 // pred_fallthru
        _
      // Predicated region
      $region707: #{tpu_custom_call.1} parent=529 // pred_check
        _
      $region708: #{tpu_custom_call.1} parent=529 // pred_check_branch
        %1228 = sbr.rel (0) target = $region710
      $region709: #{tpu_custom_call.1} parent=529 // pred_region
        %1229 = vsyncadd %s1185, 16
      $region710: #{tpu_custom_call.1} parent=529 // pred_fallthru
        _
      %s1230 = sadd.s32 %s14, 22
      %s1231 = sld [smem:[#allocation5 + %s1230]]
      %s1232 = sadd.s32 %s25, 6
      %s1233 = sadd.s32 %s25, 6
      %s1234 = scalar_lea.vmem %s1, %s1231
      %s1235 = scalar_lea.vmem [#allocation2], %s1232
      %s1236 = scalar_lea.sflag [#allocation3], %s1233
      %p1238 = scmp.lt.u32.totalorder 1, 8
      %p1239 = pneg %p1238
      // Predicated region
      $region711: #{tpu_custom_call.1} parent=529 // pred_check
        _
      $region712: #{tpu_custom_call.1} parent=529 // pred_check_branch
        %1241 = sbr.rel (%p1238) target = $region714
      $region713: #{tpu_custom_call.1} parent=529 // pred_region
        %s1256 = sand.u32 1, 7
        %p1257 = scmp.eq.s32.totalorder %s1256, 0
        %p1258 = pneg %p1257
        // Predicated region
        $region726: #{tpu_custom_call.1} parent=713 // pred_check
          _
        $region727: #{tpu_custom_call.1} parent=713 // pred_check_branch
          %1260 = sbr.rel (%p1257) target = $region729
        $region728: #{tpu_custom_call.1} parent=713 // pred_region
          %s1261 = sand.u32 1, 7
          %s1262 = ssub.s32 1, %s1261
          %s1263 = scalar_lea.vmem %s1234, %s1262
          %s1264 = ssub.s32 1, %s1261
          %s1265 = scalar_lea.vmem %s1235, %s1264 [#allocation2]
          %s1266 = sshllo.u32 0, %s1261
          loop: start=0, step=1, limit=1
          $region730: #{tpu_custom_call.1} parent=728 // loop_pre_header
            _
          $region731: #{tpu_custom_call.1} parent=728 // loop_header
            %s1268 = sphi 0, %s1272
            %p1269 = scmp.ge.s32.totalorder %s1268, 1
            %s1273 = sphi %s1263, %s1263
            %s1274 = sphi %s1265, %s1265
          $region732: #{tpu_custom_call.1} parent=728 // loop_header_branch
            %1271 = sbr.rel (%p1269) target = $region736
          $region733: #{tpu_custom_call.1} parent=728 // loop_body
            %v1275 = vld [vmem:[%s1273] sm:%s1266]
            %1276 = vst [vmem:[%s1274] sm:%s1266] %v1275
          $region734: #{tpu_custom_call.1} parent=728 // loop_footer
            %s1272 = sadd.s32 1, %s1268
          $region735: #{tpu_custom_call.1} parent=728 // loop_footer_branch
            %1267 = sbr.rel target = $region731
          $region736: #{tpu_custom_call.1} parent=728 // loop_exit
            _
        $region729: #{tpu_custom_call.1} parent=713 // pred_fallthru
          _
      $region714: #{tpu_custom_call.1} parent=529 // pred_fallthru
        _
      // Predicated region
      $region715: #{tpu_custom_call.1} parent=529 // pred_check
        %p1242 = pneg %p1238
      $region716: #{tpu_custom_call.1} parent=529 // pred_check_branch
        %1244 = sbr.rel (%p1242) target = $region718
      $region717: #{tpu_custom_call.1} parent=529 // pred_region
        %s1245 = sshllo.u32 0, 1
        loop: start=0, step=1, limit=1
        $region719: #{tpu_custom_call.1} parent=717 // loop_pre_header
          _
        $region720: #{tpu_custom_call.1} parent=717 // loop_header
          %s1247 = sphi 0, %s1251
          %p1248 = scmp.ge.s32.totalorder %s1247, 1
          %s1252 = sphi %s1234, %s1234
          %s1253 = sphi %s1235, %s1235
        $region721: #{tpu_custom_call.1} parent=717 // loop_header_branch
          %1250 = sbr.rel (%p1248) target = $region725
        $region722: #{tpu_custom_call.1} parent=717 // loop_body
          %v1254 = vld [vmem:[%s1252] sm:%s1245]
          %1255 = vst [vmem:[%s1253] sm:%s1245] %v1254
        $region723: #{tpu_custom_call.1} parent=717 // loop_footer
          %s1251 = sadd.s32 1, %s1247
        $region724: #{tpu_custom_call.1} parent=717 // loop_footer_branch
          %1246 = sbr.rel target = $region720
        $region725: #{tpu_custom_call.1} parent=717 // loop_exit
          _
      $region718: #{tpu_custom_call.1} parent=529 // pred_fallthru
        _
      // Predicated region
      $region737: #{tpu_custom_call.1} parent=529 // pred_check
        _
      $region738: #{tpu_custom_call.1} parent=529 // pred_check_branch
        %1279 = sbr.rel (0) target = $region740
      $region739: #{tpu_custom_call.1} parent=529 // pred_region
        %1280 = vsyncadd %s1236, 16
      $region740: #{tpu_custom_call.1} parent=529 // pred_fallthru
        _
      %s1281 = sadd.s32 %s14, 23
      %s1282 = sld [smem:[#allocation5 + %s1281]]
      %s1283 = sadd.s32 %s25, 7
      %s1284 = sadd.s32 %s25, 7
      %s1285 = scalar_lea.vmem %s1, %s1282
      %s1286 = scalar_lea.vmem [#allocation2], %s1283
      %s1287 = scalar_lea.sflag [#allocation3], %s1284
      %p1289 = scmp.lt.u32.totalorder 1, 8
      %p1290 = pneg %p1289
      // Predicated region
      $region741: #{tpu_custom_call.1} parent=529 // pred_check
        _
      $region742: #{tpu_custom_call.1} parent=529 // pred_check_branch
        %1292 = sbr.rel (%p1289) target = $region744
      $region743: #{tpu_custom_call.1} parent=529 // pred_region
        %s1307 = sand.u32 1, 7
        %p1308 = scmp.eq.s32.totalorder %s1307, 0
        %p1309 = pneg %p1308
        // Predicated region
        $region756: #{tpu_custom_call.1} parent=743 // pred_check
          _
        $region757: #{tpu_custom_call.1} parent=743 // pred_check_branch
          %1311 = sbr.rel (%p1308) target = $region759
        $region758: #{tpu_custom_call.1} parent=743 // pred_region
          %s1312 = sand.u32 1, 7
          %s1313 = ssub.s32 1, %s1312
          %s1314 = scalar_lea.vmem %s1285, %s1313
          %s1315 = ssub.s32 1, %s1312
          %s1316 = scalar_lea.vmem %s1286, %s1315 [#allocation2]
          %s1317 = sshllo.u32 0, %s1312
          loop: start=0, step=1, limit=1
          $region760: #{tpu_custom_call.1} parent=758 // loop_pre_header
            _
          $region761: #{tpu_custom_call.1} parent=758 // loop_header
            %s1319 = sphi 0, %s1323
            %p1320 = scmp.ge.s32.totalorder %s1319, 1
            %s1324 = sphi %s1314, %s1314
            %s1325 = sphi %s1316, %s1316
          $region762: #{tpu_custom_call.1} parent=758 // loop_header_branch
            %1322 = sbr.rel (%p1320) target = $region766
          $region763: #{tpu_custom_call.1} parent=758 // loop_body
            %v1326 = vld [vmem:[%s1324] sm:%s1317]
            %1327 = vst [vmem:[%s1325] sm:%s1317] %v1326
          $region764: #{tpu_custom_call.1} parent=758 // loop_footer
            %s1323 = sadd.s32 1, %s1319
          $region765: #{tpu_custom_call.1} parent=758 // loop_footer_branch
            %1318 = sbr.rel target = $region761
          $region766: #{tpu_custom_call.1} parent=758 // loop_exit
            _
        $region759: #{tpu_custom_call.1} parent=743 // pred_fallthru
          _
      $region744: #{tpu_custom_call.1} parent=529 // pred_fallthru
        _
      // Predicated region
      $region745: #{tpu_custom_call.1} parent=529 // pred_check
        %p1293 = pneg %p1289
      $region746: #{tpu_custom_call.1} parent=529 // pred_check_branch
        %1295 = sbr.rel (%p1293) target = $region748
      $region747: #{tpu_custom_call.1} parent=529 // pred_region
        %s1296 = sshllo.u32 0, 1
        loop: start=0, step=1, limit=1
        $region749: #{tpu_custom_call.1} parent=747 // loop_pre_header
          _
        $region750: #{tpu_custom_call.1} parent=747 // loop_header
          %s1298 = sphi 0, %s1302
          %p1299 = scmp.ge.s32.totalorder %s1298, 1
          %s1303 = sphi %s1285, %s1285
          %s1304 = sphi %s1286, %s1286
        $region751: #{tpu_custom_call.1} parent=747 // loop_header_branch
          %1301 = sbr.rel (%p1299) target = $region755
        $region752: #{tpu_custom_call.1} parent=747 // loop_body
          %v1305 = vld [vmem:[%s1303] sm:%s1296]
          %1306 = vst [vmem:[%s1304] sm:%s1296] %v1305
        $region753: #{tpu_custom_call.1} parent=747 // loop_footer
          %s1302 = sadd.s32 1, %s1298
        $region754: #{tpu_custom_call.1} parent=747 // loop_footer_branch
          %1297 = sbr.rel target = $region750
        $region755: #{tpu_custom_call.1} parent=747 // loop_exit
          _
      $region748: #{tpu_custom_call.1} parent=529 // pred_fallthru
        _
      // Predicated region
      $region767: #{tpu_custom_call.1} parent=529 // pred_check
        _
      $region768: #{tpu_custom_call.1} parent=529 // pred_check_branch
        %1330 = sbr.rel (0) target = $region770
      $region769: #{tpu_custom_call.1} parent=529 // pred_region
        %1331 = vsyncadd %s1287, 16
      $region770: #{tpu_custom_call.1} parent=529 // pred_fallthru
        _
      %s1332 = sadd.s32 %s14, 24
      %s1333 = sld [smem:[#allocation5 + %s1332]]
      %s1334 = sadd.s32 %s25, 8
      %s1335 = sadd.s32 %s25, 8
      %s1336 = scalar_lea.vmem %s1, %s1333
      %s1337 = scalar_lea.vmem [#allocation2], %s1334
      %s1338 = scalar_lea.sflag [#allocation3], %s1335
      %p1340 = scmp.lt.u32.totalorder 1, 8
      %p1341 = pneg %p1340
      // Predicated region
      $region771: #{tpu_custom_call.1} parent=529 // pred_check
        _
      $region772: #{tpu_custom_call.1} parent=529 // pred_check_branch
        %1343 = sbr.rel (%p1340) target = $region774
      $region773: #{tpu_custom_call.1} parent=529 // pred_region
        %s1358 = sand.u32 1, 7
        %p1359 = scmp.eq.s32.totalorder %s1358, 0
        %p1360 = pneg %p1359
        // Predicated region
        $region786: #{tpu_custom_call.1} parent=773 // pred_check
          _
        $region787: #{tpu_custom_call.1} parent=773 // pred_check_branch
          %1362 = sbr.rel (%p1359) target = $region789
        $region788: #{tpu_custom_call.1} parent=773 // pred_region
          %s1363 = sand.u32 1, 7
          %s1364 = ssub.s32 1, %s1363
          %s1365 = scalar_lea.vmem %s1336, %s1364
          %s1366 = ssub.s32 1, %s1363
          %s1367 = scalar_lea.vmem %s1337, %s1366 [#allocation2]
          %s1368 = sshllo.u32 0, %s1363
          loop: start=0, step=1, limit=1
          $region790: #{tpu_custom_call.1} parent=788 // loop_pre_header
            _
          $region791: #{tpu_custom_call.1} parent=788 // loop_header
            %s1370 = sphi 0, %s1374
            %p1371 = scmp.ge.s32.totalorder %s1370, 1
            %s1375 = sphi %s1365, %s1365
            %s1376 = sphi %s1367, %s1367
          $region792: #{tpu_custom_call.1} parent=788 // loop_header_branch
            %1373 = sbr.rel (%p1371) target = $region796
          $region793: #{tpu_custom_call.1} parent=788 // loop_body
            %v1377 = vld [vmem:[%s1375] sm:%s1368]
            %1378 = vst [vmem:[%s1376] sm:%s1368] %v1377
          $region794: #{tpu_custom_call.1} parent=788 // loop_footer
            %s1374 = sadd.s32 1, %s1370
          $region795: #{tpu_custom_call.1} parent=788 // loop_footer_branch
            %1369 = sbr.rel target = $region791
          $region796: #{tpu_custom_call.1} parent=788 // loop_exit
            _
        $region789: #{tpu_custom_call.1} parent=773 // pred_fallthru
          _
      $region774: #{tpu_custom_call.1} parent=529 // pred_fallthru
        _
      // Predicated region
      $region775: #{tpu_custom_call.1} parent=529 // pred_check
        %p1344 = pneg %p1340
      $region776: #{tpu_custom_call.1} parent=529 // pred_check_branch
        %1346 = sbr.rel (%p1344) target = $region778
      $region777: #{tpu_custom_call.1} parent=529 // pred_region
        %s1347 = sshllo.u32 0, 1
        loop: start=0, step=1, limit=1
        $region779: #{tpu_custom_call.1} parent=777 // loop_pre_header
          _
        $region780: #{tpu_custom_call.1} parent=777 // loop_header
          %s1349 = sphi 0, %s1353
          %p1350 = scmp.ge.s32.totalorder %s1349, 1
          %s1354 = sphi %s1336, %s1336
          %s1355 = sphi %s1337, %s1337
        $region781: #{tpu_custom_call.1} parent=777 // loop_header_branch
          %1352 = sbr.rel (%p1350) target = $region785
        $region782: #{tpu_custom_call.1} parent=777 // loop_body
          %v1356 = vld [vmem:[%s1354] sm:%s1347]
          %1357 = vst [vmem:[%s1355] sm:%s1347] %v1356
        $region783: #{tpu_custom_call.1} parent=777 // loop_footer
          %s1353 = sadd.s32 1, %s1349
        $region784: #{tpu_custom_call.1} parent=777 // loop_footer_branch
          %1348 = sbr.rel target = $region780
        $region785: #{tpu_custom_call.1} parent=777 // loop_exit
          _
      $region778: #{tpu_custom_call.1} parent=529 // pred_fallthru
        _
      // Predicated region
      $region797: #{tpu_custom_call.1} parent=529 // pred_check
        _
      $region798: #{tpu_custom_call.1} parent=529 // pred_check_branch
        %1381 = sbr.rel (0) target = $region800
      $region799: #{tpu_custom_call.1} parent=529 // pred_region
        %1382 = vsyncadd %s1338, 16
      $region800: #{tpu_custom_call.1} parent=529 // pred_fallthru
        _
      %s1383 = sadd.s32 %s14, 25
      %s1384 = sld [smem:[#allocation5 + %s1383]]
      %s1385 = sadd.s32 %s25, 9
      %s1386 = sadd.s32 %s25, 9
      %s1387 = scalar_lea.vmem %s1, %s1384
      %s1388 = scalar_lea.vmem [#allocation2], %s1385
      %s1389 = scalar_lea.sflag [#allocation3], %s1386
      %p1391 = scmp.lt.u32.totalorder 1, 8
      %p1392 = pneg %p1391
      // Predicated region
      $region801: #{tpu_custom_call.1} parent=529 // pred_check
        _
      $region802: #{tpu_custom_call.1} parent=529 // pred_check_branch
        %1394 = sbr.rel (%p1391) target = $region804
      $region803: #{tpu_custom_call.1} parent=529 // pred_region
        %s1409 = sand.u32 1, 7
        %p1410 = scmp.eq.s32.totalorder %s1409, 0
        %p1411 = pneg %p1410
        // Predicated region
        $region816: #{tpu_custom_call.1} parent=803 // pred_check
          _
        $region817: #{tpu_custom_call.1} parent=803 // pred_check_branch
          %1413 = sbr.rel (%p1410) target = $region819
        $region818: #{tpu_custom_call.1} parent=803 // pred_region
          %s1414 = sand.u32 1, 7
          %s1415 = ssub.s32 1, %s1414
          %s1416 = scalar_lea.vmem %s1387, %s1415
          %s1417 = ssub.s32 1, %s1414
          %s1418 = scalar_lea.vmem %s1388, %s1417 [#allocation2]
          %s1419 = sshllo.u32 0, %s1414
          loop: start=0, step=1, limit=1
          $region820: #{tpu_custom_call.1} parent=818 // loop_pre_header
            _
          $region821: #{tpu_custom_call.1} parent=818 // loop_header
            %s1421 = sphi 0, %s1425
            %p1422 = scmp.ge.s32.totalorder %s1421, 1
            %s1426 = sphi %s1416, %s1416
            %s1427 = sphi %s1418, %s1418
          $region822: #{tpu_custom_call.1} parent=818 // loop_header_branch
            %1424 = sbr.rel (%p1422) target = $region826
          $region823: #{tpu_custom_call.1} parent=818 // loop_body
            %v1428 = vld [vmem:[%s1426] sm:%s1419]
            %1429 = vst [vmem:[%s1427] sm:%s1419] %v1428
          $region824: #{tpu_custom_call.1} parent=818 // loop_footer
            %s1425 = sadd.s32 1, %s1421
          $region825: #{tpu_custom_call.1} parent=818 // loop_footer_branch
            %1420 = sbr.rel target = $region821
          $region826: #{tpu_custom_call.1} parent=818 // loop_exit
            _
        $region819: #{tpu_custom_call.1} parent=803 // pred_fallthru
          _
      $region804: #{tpu_custom_call.1} parent=529 // pred_fallthru
        _
      // Predicated region
      $region805: #{tpu_custom_call.1} parent=529 // pred_check
        %p1395 = pneg %p1391
      $region806: #{tpu_custom_call.1} parent=529 // pred_check_branch
        %1397 = sbr.rel (%p1395) target = $region808
      $region807: #{tpu_custom_call.1} parent=529 // pred_region
        %s1398 = sshllo.u32 0, 1
        loop: start=0, step=1, limit=1
        $region809: #{tpu_custom_call.1} parent=807 // loop_pre_header
          _
        $region810: #{tpu_custom_call.1} parent=807 // loop_header
          %s1400 = sphi 0, %s1404
          %p1401 = scmp.ge.s32.totalorder %s1400, 1
          %s1405 = sphi %s1387, %s1387
          %s1406 = sphi %s1388, %s1388
        $region811: #{tpu_custom_call.1} parent=807 // loop_header_branch
          %1403 = sbr.rel (%p1401) target = $region815
        $region812: #{tpu_custom_call.1} parent=807 // loop_body
          %v1407 = vld [vmem:[%s1405] sm:%s1398]
          %1408 = vst [vmem:[%s1406] sm:%s1398] %v1407
        $region813: #{tpu_custom_call.1} parent=807 // loop_footer
          %s1404 = sadd.s32 1, %s1400
        $region814: #{tpu_custom_call.1} parent=807 // loop_footer_branch
          %1399 = sbr.rel target = $region810
        $region815: #{tpu_custom_call.1} parent=807 // loop_exit
          _
      $region808: #{tpu_custom_call.1} parent=529 // pred_fallthru
        _
      // Predicated region
      $region827: #{tpu_custom_call.1} parent=529 // pred_check
        _
      $region828: #{tpu_custom_call.1} parent=529 // pred_check_branch
        %1432 = sbr.rel (0) target = $region830
      $region829: #{tpu_custom_call.1} parent=529 // pred_region
        %1433 = vsyncadd %s1389, 16
      $region830: #{tpu_custom_call.1} parent=529 // pred_fallthru
        _
      %s1434 = sadd.s32 %s14, 26
      %s1435 = sld [smem:[#allocation5 + %s1434]]
      %s1436 = sadd.s32 %s25, 10
      %s1437 = sadd.s32 %s25, 10
      %s1438 = scalar_lea.vmem %s1, %s1435
      %s1439 = scalar_lea.vmem [#allocation2], %s1436
      %s1440 = scalar_lea.sflag [#allocation3], %s1437
      %p1442 = scmp.lt.u32.totalorder 1, 8
      %p1443 = pneg %p1442
      // Predicated region
      $region831: #{tpu_custom_call.1} parent=529 // pred_check
        _
      $region832: #{tpu_custom_call.1} parent=529 // pred_check_branch
        %1445 = sbr.rel (%p1442) target = $region834
      $region833: #{tpu_custom_call.1} parent=529 // pred_region
        %s1460 = sand.u32 1, 7
        %p1461 = scmp.eq.s32.totalorder %s1460, 0
        %p1462 = pneg %p1461
        // Predicated region
        $region846: #{tpu_custom_call.1} parent=833 // pred_check
          _
        $region847: #{tpu_custom_call.1} parent=833 // pred_check_branch
          %1464 = sbr.rel (%p1461) target = $region849
        $region848: #{tpu_custom_call.1} parent=833 // pred_region
          %s1465 = sand.u32 1, 7
          %s1466 = ssub.s32 1, %s1465
          %s1467 = scalar_lea.vmem %s1438, %s1466
          %s1468 = ssub.s32 1, %s1465
          %s1469 = scalar_lea.vmem %s1439, %s1468 [#allocation2]
          %s1470 = sshllo.u32 0, %s1465
          loop: start=0, step=1, limit=1
          $region850: #{tpu_custom_call.1} parent=848 // loop_pre_header
            _
          $region851: #{tpu_custom_call.1} parent=848 // loop_header
            %s1472 = sphi 0, %s1476
            %p1473 = scmp.ge.s32.totalorder %s1472, 1
            %s1477 = sphi %s1467, %s1467
            %s1478 = sphi %s1469, %s1469
          $region852: #{tpu_custom_call.1} parent=848 // loop_header_branch
            %1475 = sbr.rel (%p1473) target = $region856
          $region853: #{tpu_custom_call.1} parent=848 // loop_body
            %v1479 = vld [vmem:[%s1477] sm:%s1470]
            %1480 = vst [vmem:[%s1478] sm:%s1470] %v1479
          $region854: #{tpu_custom_call.1} parent=848 // loop_footer
            %s1476 = sadd.s32 1, %s1472
          $region855: #{tpu_custom_call.1} parent=848 // loop_footer_branch
            %1471 = sbr.rel target = $region851
          $region856: #{tpu_custom_call.1} parent=848 // loop_exit
            _
        $region849: #{tpu_custom_call.1} parent=833 // pred_fallthru
          _
      $region834: #{tpu_custom_call.1} parent=529 // pred_fallthru
        _
      // Predicated region
      $region835: #{tpu_custom_call.1} parent=529 // pred_check
        %p1446 = pneg %p1442
      $region836: #{tpu_custom_call.1} parent=529 // pred_check_branch
        %1448 = sbr.rel (%p1446) target = $region838
      $region837: #{tpu_custom_call.1} parent=529 // pred_region
        %s1449 = sshllo.u32 0, 1
        loop: start=0, step=1, limit=1
        $region839: #{tpu_custom_call.1} parent=837 // loop_pre_header
          _
        $region840: #{tpu_custom_call.1} parent=837 // loop_header
          %s1451 = sphi 0, %s1455
          %p1452 = scmp.ge.s32.totalorder %s1451, 1
          %s1456 = sphi %s1438, %s1438
          %s1457 = sphi %s1439, %s1439
        $region841: #{tpu_custom_call.1} parent=837 // loop_header_branch
          %1454 = sbr.rel (%p1452) target = $region845
        $region842: #{tpu_custom_call.1} parent=837 // loop_body
          %v1458 = vld [vmem:[%s1456] sm:%s1449]
          %1459 = vst [vmem:[%s1457] sm:%s1449] %v1458
        $region843: #{tpu_custom_call.1} parent=837 // loop_footer
          %s1455 = sadd.s32 1, %s1451
        $region844: #{tpu_custom_call.1} parent=837 // loop_footer_branch
          %1450 = sbr.rel target = $region840
        $region845: #{tpu_custom_call.1} parent=837 // loop_exit
          _
      $region838: #{tpu_custom_call.1} parent=529 // pred_fallthru
        _
      // Predicated region
      $region857: #{tpu_custom_call.1} parent=529 // pred_check
        _
      $region858: #{tpu_custom_call.1} parent=529 // pred_check_branch
        %1483 = sbr.rel (0) target = $region860
      $region859: #{tpu_custom_call.1} parent=529 // pred_region
        %1484 = vsyncadd %s1440, 16
      $region860: #{tpu_custom_call.1} parent=529 // pred_fallthru
        _
      %s1485 = sadd.s32 %s14, 27
      %s1486 = sld [smem:[#allocation5 + %s1485]]
      %s1487 = sadd.s32 %s25, 11
      %s1488 = sadd.s32 %s25, 11
      %s1489 = scalar_lea.vmem %s1, %s1486
      %s1490 = scalar_lea.vmem [#allocation2], %s1487
      %s1491 = scalar_lea.sflag [#allocation3], %s1488
      %p1493 = scmp.lt.u32.totalorder 1, 8
      %p1494 = pneg %p1493
      // Predicated region
      $region861: #{tpu_custom_call.1} parent=529 // pred_check
        _
      $region862: #{tpu_custom_call.1} parent=529 // pred_check_branch
        %1496 = sbr.rel (%p1493) target = $region864
      $region863: #{tpu_custom_call.1} parent=529 // pred_region
        %s1511 = sand.u32 1, 7
        %p1512 = scmp.eq.s32.totalorder %s1511, 0
        %p1513 = pneg %p1512
        // Predicated region
        $region876: #{tpu_custom_call.1} parent=863 // pred_check
          _
        $region877: #{tpu_custom_call.1} parent=863 // pred_check_branch
          %1515 = sbr.rel (%p1512) target = $region879
        $region878: #{tpu_custom_call.1} parent=863 // pred_region
          %s1516 = sand.u32 1, 7
          %s1517 = ssub.s32 1, %s1516
          %s1518 = scalar_lea.vmem %s1489, %s1517
          %s1519 = ssub.s32 1, %s1516
          %s1520 = scalar_lea.vmem %s1490, %s1519 [#allocation2]
          %s1521 = sshllo.u32 0, %s1516
          loop: start=0, step=1, limit=1
          $region880: #{tpu_custom_call.1} parent=878 // loop_pre_header
            _
          $region881: #{tpu_custom_call.1} parent=878 // loop_header
            %s1523 = sphi 0, %s1527
            %p1524 = scmp.ge.s32.totalorder %s1523, 1
            %s1528 = sphi %s1518, %s1518
            %s1529 = sphi %s1520, %s1520
          $region882: #{tpu_custom_call.1} parent=878 // loop_header_branch
            %1526 = sbr.rel (%p1524) target = $region886
          $region883: #{tpu_custom_call.1} parent=878 // loop_body
            %v1530 = vld [vmem:[%s1528] sm:%s1521]
            %1531 = vst [vmem:[%s1529] sm:%s1521] %v1530
          $region884: #{tpu_custom_call.1} parent=878 // loop_footer
            %s1527 = sadd.s32 1, %s1523
          $region885: #{tpu_custom_call.1} parent=878 // loop_footer_branch
            %1522 = sbr.rel target = $region881
          $region886: #{tpu_custom_call.1} parent=878 // loop_exit
            _
        $region879: #{tpu_custom_call.1} parent=863 // pred_fallthru
          _
      $region864: #{tpu_custom_call.1} parent=529 // pred_fallthru
        _
      // Predicated region
      $region865: #{tpu_custom_call.1} parent=529 // pred_check
        %p1497 = pneg %p1493
      $region866: #{tpu_custom_call.1} parent=529 // pred_check_branch
        %1499 = sbr.rel (%p1497) target = $region868
      $region867: #{tpu_custom_call.1} parent=529 // pred_region
        %s1500 = sshllo.u32 0, 1
        loop: start=0, step=1, limit=1
        $region869: #{tpu_custom_call.1} parent=867 // loop_pre_header
          _
        $region870: #{tpu_custom_call.1} parent=867 // loop_header
          %s1502 = sphi 0, %s1506
          %p1503 = scmp.ge.s32.totalorder %s1502, 1
          %s1507 = sphi %s1489, %s1489
          %s1508 = sphi %s1490, %s1490
        $region871: #{tpu_custom_call.1} parent=867 // loop_header_branch
          %1505 = sbr.rel (%p1503) target = $region875
        $region872: #{tpu_custom_call.1} parent=867 // loop_body
          %v1509 = vld [vmem:[%s1507] sm:%s1500]
          %1510 = vst [vmem:[%s1508] sm:%s1500] %v1509
        $region873: #{tpu_custom_call.1} parent=867 // loop_footer
          %s1506 = sadd.s32 1, %s1502
        $region874: #{tpu_custom_call.1} parent=867 // loop_footer_branch
          %1501 = sbr.rel target = $region870
        $region875: #{tpu_custom_call.1} parent=867 // loop_exit
          _
      $region868: #{tpu_custom_call.1} parent=529 // pred_fallthru
        _
      // Predicated region
      $region887: #{tpu_custom_call.1} parent=529 // pred_check
        _
      $region888: #{tpu_custom_call.1} parent=529 // pred_check_branch
        %1534 = sbr.rel (0) target = $region890
      $region889: #{tpu_custom_call.1} parent=529 // pred_region
        %1535 = vsyncadd %s1491, 16
      $region890: #{tpu_custom_call.1} parent=529 // pred_fallthru
        _
      %s1536 = sadd.s32 %s14, 28
      %s1537 = sld [smem:[#allocation5 + %s1536]]
      %s1538 = sadd.s32 %s25, 12
      %s1539 = sadd.s32 %s25, 12
      %s1540 = scalar_lea.vmem %s1, %s1537
      %s1541 = scalar_lea.vmem [#allocation2], %s1538
      %s1542 = scalar_lea.sflag [#allocation3], %s1539
      %p1544 = scmp.lt.u32.totalorder 1, 8
      %p1545 = pneg %p1544
      // Predicated region
      $region891: #{tpu_custom_call.1} parent=529 // pred_check
        _
      $region892: #{tpu_custom_call.1} parent=529 // pred_check_branch
        %1547 = sbr.rel (%p1544) target = $region894
      $region893: #{tpu_custom_call.1} parent=529 // pred_region
        %s1562 = sand.u32 1, 7
        %p1563 = scmp.eq.s32.totalorder %s1562, 0
        %p1564 = pneg %p1563
        // Predicated region
        $region906: #{tpu_custom_call.1} parent=893 // pred_check
          _
        $region907: #{tpu_custom_call.1} parent=893 // pred_check_branch
          %1566 = sbr.rel (%p1563) target = $region909
        $region908: #{tpu_custom_call.1} parent=893 // pred_region
          %s1567 = sand.u32 1, 7
          %s1568 = ssub.s32 1, %s1567
          %s1569 = scalar_lea.vmem %s1540, %s1568
          %s1570 = ssub.s32 1, %s1567
          %s1571 = scalar_lea.vmem %s1541, %s1570 [#allocation2]
          %s1572 = sshllo.u32 0, %s1567
          loop: start=0, step=1, limit=1
          $region910: #{tpu_custom_call.1} parent=908 // loop_pre_header
            _
          $region911: #{tpu_custom_call.1} parent=908 // loop_header
            %s1574 = sphi 0, %s1578
            %p1575 = scmp.ge.s32.totalorder %s1574, 1
            %s1579 = sphi %s1569, %s1569
            %s1580 = sphi %s1571, %s1571
          $region912: #{tpu_custom_call.1} parent=908 // loop_header_branch
            %1577 = sbr.rel (%p1575) target = $region916
          $region913: #{tpu_custom_call.1} parent=908 // loop_body
            %v1581 = vld [vmem:[%s1579] sm:%s1572]
            %1582 = vst [vmem:[%s1580] sm:%s1572] %v1581
          $region914: #{tpu_custom_call.1} parent=908 // loop_footer
            %s1578 = sadd.s32 1, %s1574
          $region915: #{tpu_custom_call.1} parent=908 // loop_footer_branch
            %1573 = sbr.rel target = $region911
          $region916: #{tpu_custom_call.1} parent=908 // loop_exit
            _
        $region909: #{tpu_custom_call.1} parent=893 // pred_fallthru
          _
      $region894: #{tpu_custom_call.1} parent=529 // pred_fallthru
        _
      // Predicated region
      $region895: #{tpu_custom_call.1} parent=529 // pred_check
        %p1548 = pneg %p1544
      $region896: #{tpu_custom_call.1} parent=529 // pred_check_branch
        %1550 = sbr.rel (%p1548) target = $region898
      $region897: #{tpu_custom_call.1} parent=529 // pred_region
        %s1551 = sshllo.u32 0, 1
        loop: start=0, step=1, limit=1
        $region899: #{tpu_custom_call.1} parent=897 // loop_pre_header
          _
        $region900: #{tpu_custom_call.1} parent=897 // loop_header
          %s1553 = sphi 0, %s1557
          %p1554 = scmp.ge.s32.totalorder %s1553, 1
          %s1558 = sphi %s1540, %s1540
          %s1559 = sphi %s1541, %s1541
        $region901: #{tpu_custom_call.1} parent=897 // loop_header_branch
          %1556 = sbr.rel (%p1554) target = $region905
        $region902: #{tpu_custom_call.1} parent=897 // loop_body
          %v1560 = vld [vmem:[%s1558] sm:%s1551]
          %1561 = vst [vmem:[%s1559] sm:%s1551] %v1560
        $region903: #{tpu_custom_call.1} parent=897 // loop_footer
          %s1557 = sadd.s32 1, %s1553
        $region904: #{tpu_custom_call.1} parent=897 // loop_footer_branch
          %1552 = sbr.rel target = $region900
        $region905: #{tpu_custom_call.1} parent=897 // loop_exit
          _
      $region898: #{tpu_custom_call.1} parent=529 // pred_fallthru
        _
      // Predicated region
      $region917: #{tpu_custom_call.1} parent=529 // pred_check
        _
      $region918: #{tpu_custom_call.1} parent=529 // pred_check_branch
        %1585 = sbr.rel (0) target = $region920
      $region919: #{tpu_custom_call.1} parent=529 // pred_region
        %1586 = vsyncadd %s1542, 16
      $region920: #{tpu_custom_call.1} parent=529 // pred_fallthru
        _
      %s1587 = sadd.s32 %s14, 29
      %s1588 = sld [smem:[#allocation5 + %s1587]]
      %s1589 = sadd.s32 %s25, 13
      %s1590 = sadd.s32 %s25, 13
      %s1591 = scalar_lea.vmem %s1, %s1588
      %s1592 = scalar_lea.vmem [#allocation2], %s1589
      %s1593 = scalar_lea.sflag [#allocation3], %s1590
      %p1595 = scmp.lt.u32.totalorder 1, 8
      %p1596 = pneg %p1595
      // Predicated region
      $region921: #{tpu_custom_call.1} parent=529 // pred_check
        _
      $region922: #{tpu_custom_call.1} parent=529 // pred_check_branch
        %1598 = sbr.rel (%p1595) target = $region924
      $region923: #{tpu_custom_call.1} parent=529 // pred_region
        %s1613 = sand.u32 1, 7
        %p1614 = scmp.eq.s32.totalorder %s1613, 0
        %p1615 = pneg %p1614
        // Predicated region
        $region936: #{tpu_custom_call.1} parent=923 // pred_check
          _
        $region937: #{tpu_custom_call.1} parent=923 // pred_check_branch
          %1617 = sbr.rel (%p1614) target = $region939
        $region938: #{tpu_custom_call.1} parent=923 // pred_region
          %s1618 = sand.u32 1, 7
          %s1619 = ssub.s32 1, %s1618
          %s1620 = scalar_lea.vmem %s1591, %s1619
          %s1621 = ssub.s32 1, %s1618
          %s1622 = scalar_lea.vmem %s1592, %s1621 [#allocation2]
          %s1623 = sshllo.u32 0, %s1618
          loop: start=0, step=1, limit=1
          $region940: #{tpu_custom_call.1} parent=938 // loop_pre_header
            _
          $region941: #{tpu_custom_call.1} parent=938 // loop_header
            %s1625 = sphi 0, %s1629
            %p1626 = scmp.ge.s32.totalorder %s1625, 1
            %s1630 = sphi %s1620, %s1620
            %s1631 = sphi %s1622, %s1622
          $region942: #{tpu_custom_call.1} parent=938 // loop_header_branch
            %1628 = sbr.rel (%p1626) target = $region946
          $region943: #{tpu_custom_call.1} parent=938 // loop_body
            %v1632 = vld [vmem:[%s1630] sm:%s1623]
            %1633 = vst [vmem:[%s1631] sm:%s1623] %v1632
          $region944: #{tpu_custom_call.1} parent=938 // loop_footer
            %s1629 = sadd.s32 1, %s1625
          $region945: #{tpu_custom_call.1} parent=938 // loop_footer_branch
            %1624 = sbr.rel target = $region941
          $region946: #{tpu_custom_call.1} parent=938 // loop_exit
            _
        $region939: #{tpu_custom_call.1} parent=923 // pred_fallthru
          _
      $region924: #{tpu_custom_call.1} parent=529 // pred_fallthru
        _
      // Predicated region
      $region925: #{tpu_custom_call.1} parent=529 // pred_check
        %p1599 = pneg %p1595
      $region926: #{tpu_custom_call.1} parent=529 // pred_check_branch
        %1601 = sbr.rel (%p1599) target = $region928
      $region927: #{tpu_custom_call.1} parent=529 // pred_region
        %s1602 = sshllo.u32 0, 1
        loop: start=0, step=1, limit=1
        $region929: #{tpu_custom_call.1} parent=927 // loop_pre_header
          _
        $region930: #{tpu_custom_call.1} parent=927 // loop_header
          %s1604 = sphi 0, %s1608
          %p1605 = scmp.ge.s32.totalorder %s1604, 1
          %s1609 = sphi %s1591, %s1591
          %s1610 = sphi %s1592, %s1592
        $region931: #{tpu_custom_call.1} parent=927 // loop_header_branch
          %1607 = sbr.rel (%p1605) target = $region935
        $region932: #{tpu_custom_call.1} parent=927 // loop_body
          %v1611 = vld [vmem:[%s1609] sm:%s1602]
          %1612 = vst [vmem:[%s1610] sm:%s1602] %v1611
        $region933: #{tpu_custom_call.1} parent=927 // loop_footer
          %s1608 = sadd.s32 1, %s1604
        $region934: #{tpu_custom_call.1} parent=927 // loop_footer_branch
          %1603 = sbr.rel target = $region930
        $region935: #{tpu_custom_call.1} parent=927 // loop_exit
          _
      $region928: #{tpu_custom_call.1} parent=529 // pred_fallthru
        _
      // Predicated region
      $region947: #{tpu_custom_call.1} parent=529 // pred_check
        _
      $region948: #{tpu_custom_call.1} parent=529 // pred_check_branch
        %1636 = sbr.rel (0) target = $region950
      $region949: #{tpu_custom_call.1} parent=529 // pred_region
        %1637 = vsyncadd %s1593, 16
      $region950: #{tpu_custom_call.1} parent=529 // pred_fallthru
        _
      %s1638 = sadd.s32 %s14, 30
      %s1639 = sld [smem:[#allocation5 + %s1638]]
      %s1640 = sadd.s32 %s25, 14
      %s1641 = sadd.s32 %s25, 14
      %s1642 = scalar_lea.vmem %s1, %s1639
      %s1643 = scalar_lea.vmem [#allocation2], %s1640
      %s1644 = scalar_lea.sflag [#allocation3], %s1641
      %p1646 = scmp.lt.u32.totalorder 1, 8
      %p1647 = pneg %p1646
      // Predicated region
      $region951: #{tpu_custom_call.1} parent=529 // pred_check
        _
      $region952: #{tpu_custom_call.1} parent=529 // pred_check_branch
        %1649 = sbr.rel (%p1646) target = $region954
      $region953: #{tpu_custom_call.1} parent=529 // pred_region
        %s1664 = sand.u32 1, 7
        %p1665 = scmp.eq.s32.totalorder %s1664, 0
        %p1666 = pneg %p1665
        // Predicated region
        $region966: #{tpu_custom_call.1} parent=953 // pred_check
          _
        $region967: #{tpu_custom_call.1} parent=953 // pred_check_branch
          %1668 = sbr.rel (%p1665) target = $region969
        $region968: #{tpu_custom_call.1} parent=953 // pred_region
          %s1669 = sand.u32 1, 7
          %s1670 = ssub.s32 1, %s1669
          %s1671 = scalar_lea.vmem %s1642, %s1670
          %s1672 = ssub.s32 1, %s1669
          %s1673 = scalar_lea.vmem %s1643, %s1672 [#allocation2]
          %s1674 = sshllo.u32 0, %s1669
          loop: start=0, step=1, limit=1
          $region970: #{tpu_custom_call.1} parent=968 // loop_pre_header
            _
          $region971: #{tpu_custom_call.1} parent=968 // loop_header
            %s1676 = sphi 0, %s1680
            %p1677 = scmp.ge.s32.totalorder %s1676, 1
            %s1681 = sphi %s1671, %s1671
            %s1682 = sphi %s1673, %s1673
          $region972: #{tpu_custom_call.1} parent=968 // loop_header_branch
            %1679 = sbr.rel (%p1677) target = $region976
          $region973: #{tpu_custom_call.1} parent=968 // loop_body
            %v1683 = vld [vmem:[%s1681] sm:%s1674]
            %1684 = vst [vmem:[%s1682] sm:%s1674] %v1683
          $region974: #{tpu_custom_call.1} parent=968 // loop_footer
            %s1680 = sadd.s32 1, %s1676
          $region975: #{tpu_custom_call.1} parent=968 // loop_footer_branch
            %1675 = sbr.rel target = $region971
          $region976: #{tpu_custom_call.1} parent=968 // loop_exit
            _
        $region969: #{tpu_custom_call.1} parent=953 // pred_fallthru
          _
      $region954: #{tpu_custom_call.1} parent=529 // pred_fallthru
        _
      // Predicated region
      $region955: #{tpu_custom_call.1} parent=529 // pred_check
        %p1650 = pneg %p1646
      $region956: #{tpu_custom_call.1} parent=529 // pred_check_branch
        %1652 = sbr.rel (%p1650) target = $region958
      $region957: #{tpu_custom_call.1} parent=529 // pred_region
        %s1653 = sshllo.u32 0, 1
        loop: start=0, step=1, limit=1
        $region959: #{tpu_custom_call.1} parent=957 // loop_pre_header
          _
        $region960: #{tpu_custom_call.1} parent=957 // loop_header
          %s1655 = sphi 0, %s1659
          %p1656 = scmp.ge.s32.totalorder %s1655, 1
          %s1660 = sphi %s1642, %s1642
          %s1661 = sphi %s1643, %s1643
        $region961: #{tpu_custom_call.1} parent=957 // loop_header_branch
          %1658 = sbr.rel (%p1656) target = $region965
        $region962: #{tpu_custom_call.1} parent=957 // loop_body
          %v1662 = vld [vmem:[%s1660] sm:%s1653]
          %1663 = vst [vmem:[%s1661] sm:%s1653] %v1662
        $region963: #{tpu_custom_call.1} parent=957 // loop_footer
          %s1659 = sadd.s32 1, %s1655
        $region964: #{tpu_custom_call.1} parent=957 // loop_footer_branch
          %1654 = sbr.rel target = $region960
        $region965: #{tpu_custom_call.1} parent=957 // loop_exit
          _
      $region958: #{tpu_custom_call.1} parent=529 // pred_fallthru
        _
      // Predicated region
      $region977: #{tpu_custom_call.1} parent=529 // pred_check
        _
      $region978: #{tpu_custom_call.1} parent=529 // pred_check_branch
        %1687 = sbr.rel (0) target = $region980
      $region979: #{tpu_custom_call.1} parent=529 // pred_region
        %1688 = vsyncadd %s1644, 16
      $region980: #{tpu_custom_call.1} parent=529 // pred_fallthru
        _
      %s1689 = sadd.s32 %s14, 31
      %s1690 = sld [smem:[#allocation5 + %s1689]]
      %s1691 = sadd.s32 %s25, 15
      %s1692 = sadd.s32 %s25, 15
      %s1693 = scalar_lea.vmem %s1, %s1690
      %s1694 = scalar_lea.vmem [#allocation2], %s1691
      %s1695 = scalar_lea.sflag [#allocation3], %s1692
      %p1697 = scmp.lt.u32.totalorder 1, 8
      %p1698 = pneg %p1697
      // Predicated region
      $region981: #{tpu_custom_call.1} parent=529 // pred_check
        _
      $region982: #{tpu_custom_call.1} parent=529 // pred_check_branch
        %1700 = sbr.rel (%p1697) target = $region984
      $region983: #{tpu_custom_call.1} parent=529 // pred_region
        %s1715 = sand.u32 1, 7
        %p1716 = scmp.eq.s32.totalorder %s1715, 0
        %p1717 = pneg %p1716
        // Predicated region
        $region996: #{tpu_custom_call.1} parent=983 // pred_check
          _
        $region997: #{tpu_custom_call.1} parent=983 // pred_check_branch
          %1719 = sbr.rel (%p1716) target = $region999
        $region998: #{tpu_custom_call.1} parent=983 // pred_region
          %s1720 = sand.u32 1, 7
          %s1721 = ssub.s32 1, %s1720
          %s1722 = scalar_lea.vmem %s1693, %s1721
          %s1723 = ssub.s32 1, %s1720
          %s1724 = scalar_lea.vmem %s1694, %s1723 [#allocation2]
          %s1725 = sshllo.u32 0, %s1720
          loop: start=0, step=1, limit=1
          $region1000: #{tpu_custom_call.1} parent=998 // loop_pre_header
            _
          $region1001: #{tpu_custom_call.1} parent=998 // loop_header
            %s1727 = sphi 0, %s1731
            %p1728 = scmp.ge.s32.totalorder %s1727, 1
            %s1732 = sphi %s1722, %s1722
            %s1733 = sphi %s1724, %s1724
          $region1002: #{tpu_custom_call.1} parent=998 // loop_header_branch
            %1730 = sbr.rel (%p1728) target = $region1006
          $region1003: #{tpu_custom_call.1} parent=998 // loop_body
            %v1734 = vld [vmem:[%s1732] sm:%s1725]
            %1735 = vst [vmem:[%s1733] sm:%s1725] %v1734
          $region1004: #{tpu_custom_call.1} parent=998 // loop_footer
            %s1731 = sadd.s32 1, %s1727
          $region1005: #{tpu_custom_call.1} parent=998 // loop_footer_branch
            %1726 = sbr.rel target = $region1001
          $region1006: #{tpu_custom_call.1} parent=998 // loop_exit
            _
        $region999: #{tpu_custom_call.1} parent=983 // pred_fallthru
          _
      $region984: #{tpu_custom_call.1} parent=529 // pred_fallthru
        _
      // Predicated region
      $region985: #{tpu_custom_call.1} parent=529 // pred_check
        %p1701 = pneg %p1697
      $region986: #{tpu_custom_call.1} parent=529 // pred_check_branch
        %1703 = sbr.rel (%p1701) target = $region988
      $region987: #{tpu_custom_call.1} parent=529 // pred_region
        %s1704 = sshllo.u32 0, 1
        loop: start=0, step=1, limit=1
        $region989: #{tpu_custom_call.1} parent=987 // loop_pre_header
          _
        $region990: #{tpu_custom_call.1} parent=987 // loop_header
          %s1706 = sphi 0, %s1710
          %p1707 = scmp.ge.s32.totalorder %s1706, 1
          %s1711 = sphi %s1693, %s1693
          %s1712 = sphi %s1694, %s1694
        $region991: #{tpu_custom_call.1} parent=987 // loop_header_branch
          %1709 = sbr.rel (%p1707) target = $region995
        $region992: #{tpu_custom_call.1} parent=987 // loop_body
          %v1713 = vld [vmem:[%s1711] sm:%s1704]
          %1714 = vst [vmem:[%s1712] sm:%s1704] %v1713
        $region993: #{tpu_custom_call.1} parent=987 // loop_footer
          %s1710 = sadd.s32 1, %s1706
        $region994: #{tpu_custom_call.1} parent=987 // loop_footer_branch
          %1705 = sbr.rel target = $region990
        $region995: #{tpu_custom_call.1} parent=987 // loop_exit
          _
      $region988: #{tpu_custom_call.1} parent=529 // pred_fallthru
        _
      // Predicated region
      $region1007: #{tpu_custom_call.1} parent=529 // pred_check
        _
      $region1008: #{tpu_custom_call.1} parent=529 // pred_check_branch
        %1738 = sbr.rel (0) target = $region1010
      $region1009: #{tpu_custom_call.1} parent=529 // pred_region
        %1739 = vsyncadd %s1695, 16
      $region1010: #{tpu_custom_call.1} parent=529 // pred_fallthru
        _
    $region530: #{tpu_custom_call.1} parent=1 // pred_fallthru
      _
    // Predicated region
    $region1011: #{tpu_custom_call.1} parent=1 // pred_check
      _
    $region1012: #{tpu_custom_call.1} parent=1 // pred_check_branch
      %1741 = sbr.rel (0) target = $region1014
    $region1013: #{tpu_custom_call.1} parent=1 // pred_region
      %s1743 = ssub.s32 256, 256
      %1744 = vsyncadd [#allocation7], %s1743
      %s1745 = sshll.u32 [#allocation6], 4
      %s1746 = int_to_ptr.vmem [resolvable:$true] %s1745
      %1751 = dma.vmem_to_hbm [thread:$0]  %s1746, 256, %s2, [#allocation7], 128, 128, 8
    $region1014: #{tpu_custom_call.1} parent=1 // pred_fallthru
      _
    // Predicated region
    $region1015: #{tpu_custom_call.1} parent=1 // pred_check
      _
    $region1016: #{tpu_custom_call.1} parent=1 // pred_check_branch
      %1753 = sbr.rel (0) target = $region1018
    $region1017: #{tpu_custom_call.1} parent=1 // pred_region
      %1754 = dma.done [#allocation7], 256
    $region1018: #{tpu_custom_call.1} parent=1 // pred_fallthru
      _
    %1755 = vsyncpa [#allocation7], 1
  %1756 = vsyncmov [#allocation3]
  %s1757 = vpop.sfrf %1756
  %p1758 = scmp.eq.s32.totalorder %s1757, 0
  %p1759 = pneg %p1758
  %1761 = shalt.err (%p1759)
  %s1762 = scalar_lea.sflag [#allocation3], 1
  %1763 = vsyncmov %s1762
  %s1764 = vpop.sfrf %1763
  %p1765 = scmp.eq.s32.totalorder %s1764, 0
  %p1766 = pneg %p1765
  %1768 = shalt.err (%p1766)
  %s1769 = scalar_lea.sflag [#allocation3], 2
  %1770 = vsyncmov %s1769
  %s1771 = vpop.sfrf %1770
  %p1772 = scmp.eq.s32.totalorder %s1771, 0
  %p1773 = pneg %p1772
  %1775 = shalt.err (%p1773)
  %s1776 = scalar_lea.sflag [#allocation3], 3
  %1777 = vsyncmov %s1776
  %s1778 = vpop.sfrf %1777
  %p1779 = scmp.eq.s32.totalorder %s1778, 0
  %p1780 = pneg %p1779
  %1782 = shalt.err (%p1780)
  %s1783 = scalar_lea.sflag [#allocation3], 4
  %1784 = vsyncmov %s1783
  %s1785 = vpop.sfrf %1784
  %p1786 = scmp.eq.s32.totalorder %s1785, 0
  %p1787 = pneg %p1786
  %1789 = shalt.err (%p1787)
  %s1790 = scalar_lea.sflag [#allocation3], 5
  %1791 = vsyncmov %s1790
  %s1792 = vpop.sfrf %1791
  %p1793 = scmp.eq.s32.totalorder %s1792, 0
  %p1794 = pneg %p1793
  %1796 = shalt.err (%p1794)
  %s1797 = scalar_lea.sflag [#allocation3], 6
  %1798 = vsyncmov %s1797
  %s1799 = vpop.sfrf %1798
  %p1800 = scmp.eq.s32.totalorder %s1799, 0
  %p1801 = pneg %p1800
  %1803 = shalt.err (%p1801)
  %s1804 = scalar_lea.sflag [#allocation3], 7
  %1805 = vsyncmov %s1804
  %s1806 = vpop.sfrf %1805
  %p1807 = scmp.eq.s32.totalorder %s1806, 0
  %p1808 = pneg %p1807
  %1810 = shalt.err (%p1808)
  %s1811 = scalar_lea.sflag [#allocation3], 8
  %1812 = vsyncmov %s1811
  %s1813 = vpop.sfrf %1812
  %p1814 = scmp.eq.s32.totalorder %s1813, 0
  %p1815 = pneg %p1814
  %1817 = shalt.err (%p1815)
  %s1818 = scalar_lea.sflag [#allocation3], 9
  %1819 = vsyncmov %s1818
  %s1820 = vpop.sfrf %1819
  %p1821 = scmp.eq.s32.totalorder %s1820, 0
  %p1822 = pneg %p1821
  %1824 = shalt.err (%p1822)
  %s1825 = scalar_lea.sflag [#allocation3], 10
  %1826 = vsyncmov %s1825
  %s1827 = vpop.sfrf %1826
  %p1828 = scmp.eq.s32.totalorder %s1827, 0
  %p1829 = pneg %p1828
  %1831 = shalt.err (%p1829)
  %s1832 = scalar_lea.sflag [#allocation3], 11
  %1833 = vsyncmov %s1832
  %s1834 = vpop.sfrf %1833
  %p1835 = scmp.eq.s32.totalorder %s1834, 0
  %p1836 = pneg %p1835
  %1838 = shalt.err (%p1836)
  %s1839 = scalar_lea.sflag [#allocation3], 12
  %1840 = vsyncmov %s1839
  %s1841 = vpop.sfrf %1840
  %p1842 = scmp.eq.s32.totalorder %s1841, 0
  %p1843 = pneg %p1842
  %1845 = shalt.err (%p1843)
  %s1846 = scalar_lea.sflag [#allocation3], 13
  %1847 = vsyncmov %s1846
  %s1848 = vpop.sfrf %1847
  %p1849 = scmp.eq.s32.totalorder %s1848, 0
  %p1850 = pneg %p1849
  %1852 = shalt.err (%p1850)
  %s1853 = scalar_lea.sflag [#allocation3], 14
  %1854 = vsyncmov %s1853
  %s1855 = vpop.sfrf %1854
  %p1856 = scmp.eq.s32.totalorder %s1855, 0
  %p1857 = pneg %p1856
  %1859 = shalt.err (%p1857)
  %s1860 = scalar_lea.sflag [#allocation3], 15
  %1861 = vsyncmov %s1860
  %s1862 = vpop.sfrf %1861
  %p1863 = scmp.eq.s32.totalorder %s1862, 0
  %p1864 = pneg %p1863
  %1866 = shalt.err (%p1864)
  %s1867 = scalar_lea.sflag [#allocation3], 16
  %1868 = vsyncmov %s1867
  %s1869 = vpop.sfrf %1868
  %p1870 = scmp.eq.s32.totalorder %s1869, 0
  %p1871 = pneg %p1870
  %1873 = shalt.err (%p1871)
  %s1874 = scalar_lea.sflag [#allocation3], 17
  %1875 = vsyncmov %s1874
  %s1876 = vpop.sfrf %1875
  %p1877 = scmp.eq.s32.totalorder %s1876, 0
  %p1878 = pneg %p1877
  %1880 = shalt.err (%p1878)
  %s1881 = scalar_lea.sflag [#allocation3], 18
  %1882 = vsyncmov %s1881
  %s1883 = vpop.sfrf %1882
  %p1884 = scmp.eq.s32.totalorder %s1883, 0
  %p1885 = pneg %p1884
  %1887 = shalt.err (%p1885)
  %s1888 = scalar_lea.sflag [#allocation3], 19
  %1889 = vsyncmov %s1888
  %s1890 = vpop.sfrf %1889
  %p1891 = scmp.eq.s32.totalorder %s1890, 0
  %p1892 = pneg %p1891
  %1894 = shalt.err (%p1892)
  %s1895 = scalar_lea.sflag [#allocation3], 20
  %1896 = vsyncmov %s1895
  %s1897 = vpop.sfrf %1896
  %p1898 = scmp.eq.s32.totalorder %s1897, 0
  %p1899 = pneg %p1898
  %1901 = shalt.err (%p1899)
  %s1902 = scalar_lea.sflag [#allocation3], 21
  %1903 = vsyncmov %s1902
  %s1904 = vpop.sfrf %1903
  %p1905 = scmp.eq.s32.totalorder %s1904, 0
  %p1906 = pneg %p1905
  %1908 = shalt.err (%p1906)
  %s1909 = scalar_lea.sflag [#allocation3], 22
  %1910 = vsyncmov %s1909
  %s1911 = vpop.sfrf %1910
  %p1912 = scmp.eq.s32.totalorder %s1911, 0
  %p1913 = pneg %p1912
  %1915 = shalt.err (%p1913)
  %s1916 = scalar_lea.sflag [#allocation3], 23
  %1917 = vsyncmov %s1916
  %s1918 = vpop.sfrf %1917
  %p1919 = scmp.eq.s32.totalorder %s1918, 0
  %p1920 = pneg %p1919
  %1922 = shalt.err (%p1920)
  %s1923 = scalar_lea.sflag [#allocation3], 24
  %1924 = vsyncmov %s1923
  %s1925 = vpop.sfrf %1924
  %p1926 = scmp.eq.s32.totalorder %s1925, 0
  %p1927 = pneg %p1926
  %1929 = shalt.err (%p1927)
  %s1930 = scalar_lea.sflag [#allocation3], 25
  %1931 = vsyncmov %s1930
  %s1932 = vpop.sfrf %1931
  %p1933 = scmp.eq.s32.totalorder %s1932, 0
  %p1934 = pneg %p1933
  %1936 = shalt.err (%p1934)
  %s1937 = scalar_lea.sflag [#allocation3], 26
  %1938 = vsyncmov %s1937
  %s1939 = vpop.sfrf %1938
  %p1940 = scmp.eq.s32.totalorder %s1939, 0
  %p1941 = pneg %p1940
  %1943 = shalt.err (%p1941)
  %s1944 = scalar_lea.sflag [#allocation3], 27
  %1945 = vsyncmov %s1944
  %s1946 = vpop.sfrf %1945
  %p1947 = scmp.eq.s32.totalorder %s1946, 0
  %p1948 = pneg %p1947
  %1950 = shalt.err (%p1948)
  %s1951 = scalar_lea.sflag [#allocation3], 28
  %1952 = vsyncmov %s1951
  %s1953 = vpop.sfrf %1952
  %p1954 = scmp.eq.s32.totalorder %s1953, 0
  %p1955 = pneg %p1954
  %1957 = shalt.err (%p1955)
  %s1958 = scalar_lea.sflag [#allocation3], 29
  %1959 = vsyncmov %s1958
  %s1960 = vpop.sfrf %1959
  %p1961 = scmp.eq.s32.totalorder %s1960, 0
  %p1962 = pneg %p1961
  %1964 = shalt.err (%p1962)
  %s1965 = scalar_lea.sflag [#allocation3], 30
  %1966 = vsyncmov %s1965
  %s1967 = vpop.sfrf %1966
  %p1968 = scmp.eq.s32.totalorder %s1967, 0
  %p1969 = pneg %p1968
  %1971 = shalt.err (%p1969)
  %s1972 = scalar_lea.sflag [#allocation3], 31
  %1973 = vsyncmov %s1972
  %s1974 = vpop.sfrf %1973
  %p1975 = scmp.eq.s32.totalorder %s1974, 0
  %p1976 = pneg %p1975
  %1978 = shalt.err (%p1976)

</llo_original>
